<compile_context>
chip_gen: v7x
topology: tpu7x:2x2x1
jax: 0.10.0
libtpu: 0.0.40
codegen_flags: <defaults>
</compile_context>

<pallas_src>
import functools
import math

import jax
import jax.numpy as jnp
from jax import lax
from jax.experimental import pallas as pl
from jax.experimental.pallas import tpu as pltpu

H = 4          # attention heads   (module default h=8, scaled down)
D = 32         # model dim         (module default d=512, scaled down)
D_FF = 64      # ffn hidden dim    (module default d_ff=2048, scaled down)
EPS = 1e-5
NEG_INF = -1e9
K_TILE = 256   # online-softmax key-tile width (full Tk used when Tk < K_TILE)


def _layer_norm(x, gamma, beta):
    mu = jnp.mean(x, axis=-1, keepdims=True)
    var = jnp.mean((x - mu) ** 2, axis=-1, keepdims=True)
    return (x - mu) * lax.rsqrt(var + EPS) * gamma + beta


# ----------------------------------------------------------------------------
# Fused decoder-layer kernel (one batch element per grid step)
# ----------------------------------------------------------------------------
def _decoder_layer_kernel(
        x_ref, src_ref, tgt_pad_ref, src_pad_ref,
        sa_lng, sa_lnb, sa_wqkv, sa_bqkv, sa_wo, sa_bo,
        ca_lng, ca_lnb, ca_wq, ca_bq, ca_wkv, ca_bkv, ca_wo, ca_bo,
        ff_lng, ff_lnb, ff_w1, ff_b1, ff_w2, ff_b2,
        out_ref, *, num_heads, k_tile):
    f32, bf16 = jnp.float32, jnp.bfloat16

    x = x_ref[0]                                # (Tq, d) f32, VMEM-resident all layer
    src = src_ref[0]                            # (Ts, d) f32
    Tq, d = x.shape

    # ---- additive attention biases generated in-kernel (no dense HBM masks) ----
    q_idx = lax.broadcasted_iota(jnp.int32, (Tq, Tq), 0)
    k_idx = lax.broadcasted_iota(jnp.int32, (Tq, Tq), 1)
    tgt_ok = (q_idx >= k_idx) & (tgt_pad_ref[0] > 0.0)            # causal & key pad
    self_bias = jnp.where(tgt_ok, 0.0, NEG_INF)                   # (Tq, Tq)
    cross_bias = jnp.where(src_pad_ref[0] > 0.0, 0.0, NEG_INF)    # (1, Ts)

    def proj(t_b, w_b, b_f):
        # (T, d) @ (d, dk) + (1, dk): clean 2-D MXU matmul, no lane slicing.
        return (jnp.dot(t_b, w_b, preferred_element_type=f32) + b_f).astype(bf16)

    def attend_head(q_h, k_h, v_h, bias):
        # q_h (Tq, dk) bf16 (1/sqrt(dk) pre-folded); k_h, v_h (Tk, dk) bf16.
        # bias (Tq, Tk) or (1, Tk) f32 additive.
        # Online softmax over Tk tiles; normalize after the PV matmul ((Tq,dk)
        # multiply instead of (Tq,Tk)).
        tq, dk = q_h.shape
        tk_total = k_h.shape[0]
        m = jnp.full((tq, 1), -jnp.inf, f32)
        l = jnp.zeros((tq, 1), f32)
        acc = jnp.zeros((tq, dk), f32)
        # Static trip count (1 at the toy shapes below).
        # TODO(synk): at production Tk (~2k) switch to lax.fori_loop(..., unroll=True)
        #             and skip fully-masked causal K tiles once a Tq grid axis exists.
        for lo in range(0, tk_total, k_tile):
            hi = min(lo + k_tile, tk_total)
            s = lax.dot_general(q_h, k_h[lo:hi], (((1,), (1,)), ((), ())),
                                preferred_element_type=f32)       # q @ k_tile^T
            s = s + bias[:, lo:hi]
            m_new = jnp.maximum(m, jnp.max(s, axis=-1, keepdims=True))
            alpha = jnp.exp(m - m_new)
            # TODO(synk): on v6e/v7x a bf16 exp (f32 accumulators) halves EUP time;
            #             kept f32 so the same kernel stays exact on v5e (no bf16 EUP).
            e = jnp.exp(s - m_new)
            l = alpha * l + jnp.sum(e, axis=-1, keepdims=True)
            acc = alpha * acc + jnp.dot(e.astype(bf16), v_h[lo:hi],
                                        preferred_element_type=f32)
            m = m_new
        return acc * pl.reciprocal(l, approx=True)                # (Tq, dk) f32

    # ---- 1. self-attention, pre-norm residual ----
    xn = _layer_norm(x, sa_lng[...], sa_lnb[...]).astype(bf16)
    attn = jnp.zeros((Tq, d), f32)
    for h in range(num_heads):
        q_h = proj(xn, sa_wqkv[0, h], sa_bqkv[0, h])
        k_h = proj(xn, sa_wqkv[1, h], sa_bqkv[1, h])
        v_h = proj(xn, sa_wqkv[2, h], sa_bqkv[2, h])
        ctx = attend_head(q_h, k_h, v_h, self_bias)
        # concat(heads) @ Wo == sum_h ctx_h @ Wo[h]   (accumulated, no lane concat)
        attn = attn + jnp.dot(ctx.astype(bf16), sa_wo[h], preferred_element_type=f32)
    x = x + attn + sa_bo[...]

    # ---- 2. cross-attention (keys/values from raw source_emb) ----
    xn = _layer_norm(x, ca_lng[...], ca_lnb[...]).astype(bf16)
    src_b = src.astype(bf16)
    attn = jnp.zeros((Tq, d), f32)
    for h in range(num_heads):
        q_h = proj(xn, ca_wq[h], ca_bq[h])
        k_h = proj(src_b, ca_wkv[0, h], ca_bkv[0, h])
        v_h = proj(src_b, ca_wkv[1, h], ca_bkv[1, h])
        ctx = attend_head(q_h, k_h, v_h, cross_bias)
        attn = attn + jnp.dot(ctx.astype(bf16), ca_wo[h], preferred_element_type=f32)
    x = x + attn + ca_bo[...]

    # ---- 3. feed-forward ----
    # TODO(synk): on v7x, fp8 w1/w2 with per-channel scales would halve weight DMA
    #             and double MXU throughput on these two (largest) matmuls.
    xn = _layer_norm(x, ff_lng[...], ff_lnb[...]).astype(bf16)
    h1 = jnp.maximum(
        jnp.dot(xn, ff_w1[...], preferred_element_type=f32) + ff_b1[...], 0.0)
    y = jnp.dot(h1.astype(bf16), ff_w2[...], preferred_element_type=f32) + ff_b2[...]
    out_ref[0] = (x + y).astype(out_ref.dtype)


# ----------------------------------------------------------------------------
# pallas_call wrapper
# ----------------------------------------------------------------------------
def _const_spec(shape):
    """BlockSpec for grid-invariant weights/biases: single-buffered (the block
    never changes across grid steps, so double-buffering only wastes VMEM)."""
    idx = lambda b: (0,) * len(shape)
    try:
        return pl.BlockSpec(shape, idx, pipeline_mode=pl.Buffered(1))
    except (TypeError, AttributeError):   # older jax without pipeline_mode/Buffered
        return pl.BlockSpec(shape, idx)


def decoder_layer(X, source_emb, target_pad, source_pad, params):
    """X: (B,Tq,D); source_emb: (B,Ts,D).
    target_pad: (B,Tq) in {0,1} (1 = valid); causal structure applied in-kernel.
    source_pad: (B,Ts) in {0,1} (1 = attend)."""
    B, Tq, d = X.shape
    Ts = source_emb.shape[1]
    dk = d // H
    scale = 1.0 / math.sqrt(dk)
    f32, bf16 = jnp.float32, jnp.bfloat16

    tgt_pad = target_pad.reshape(B, 1, Tq).astype(f32)
    src_pad = source_pad.reshape(B, 1, Ts).astype(f32)

    sa, ca, ff = params["self_attn"], params["cross_attn"], params["ffn"]

    # Pre-split projection weights per head (no in-kernel lane slicing) and fold
    # the 1/sqrt(dk) softmax scale into the Q projection weights & bias.
    qkv_scale = jnp.array([scale, 1.0, 1.0], f32).reshape(3, 1, 1, 1)
    sa_wqkv = (sa["w_qkv"].reshape(d, 3, H, dk).transpose(1, 2, 0, 3)
               * qkv_scale).astype(bf16)                        # (3,H,d,dk) bf16
    sa_bqkv = sa["b_qkv"].reshape(3, H, 1, dk) * qkv_scale      # (3,H,1,dk) f32
    ca_wq = (ca["wq"].reshape(d, H, dk).transpose(1, 0, 2) * scale).astype(bf16)
    ca_bq = ca["bq"].reshape(H, 1, dk) * scale
    ca_wkv = ca["w_kv"].reshape(d, 2, H, dk).transpose(1, 2, 0, 3).astype(bf16)
    ca_bkv = ca["b_kv"].reshape(2, H, 1, dk)

    args = [
        X, source_emb, tgt_pad, src_pad,
        # self-attn
        sa["ln_g"], sa["ln_b"], sa_wqkv, sa_bqkv,
        sa["wo"].reshape(H, dk, d).astype(bf16), sa["bo"],
        # cross-attn
        ca["ln_g"], ca["ln_b"], ca_wq, ca_bq, ca_wkv, ca_bkv,
        ca["wo"].reshape(H, dk, d).astype(bf16), ca["bo"],
        # ffn
        ff["ln_g"], ff["ln_b"], ff["w1"].astype(bf16), ff["b1"],
        ff["w2"].astype(bf16), ff["b2"],
    ]

    in_specs = [
        pl.BlockSpec((1, Tq, d), lambda b: (b, 0, 0)),
        pl.BlockSpec((1, Ts, d), lambda b: (b, 0, 0)),
        pl.BlockSpec((1, 1, Tq), lambda b: (b, 0, 0)),
        pl.BlockSpec((1, 1, Ts), lambda b: (b, 0, 0)),
    ] + [_const_spec(a.shape) for a in args[4:]]

    # Explicit scoped-VMEM budget: single-buffered weights + double-buffered
    # per-batch activation blocks + headroom for intermediates, capped below
    # v7x's 64 MiB/TC so the same kernel compiles on v5e/v6e/v7x.
    weight_bytes = sum(int(a.size) * a.dtype.itemsize for a in args[4:])
    act_bytes = 2 * 4 * (Tq * d + Ts * d + Tq + Ts) * 2
    vmem_limit = int(min(48 * 2**20, max(16 * 2**20, 6 * (weight_bytes + act_bytes))))

    # TODO(synk): at toy d=32 the (1,Tq,32) blocks are lane-sparse (masked vst);
    #             at production d>=128 they are lane-dense.
    # TODO(synk): add a second "parallel" query-tile grid axis for v7x's 2 TCs
    #             (needs a separate full-X pass for self-attention K/V).
    kernel = functools.partial(_decoder_layer_kernel, num_heads=H, k_tile=K_TILE)
    return pl.pallas_call(
        kernel,
        out_shape=jax.ShapeDtypeStruct((B, Tq, d), X.dtype),
        grid=(B,),
        in_specs=in_specs,
        out_specs=pl.BlockSpec((1, Tq, d), lambda b: (b, 0, 0)),
        compiler_params=pltpu.CompilerParams(
            dimension_semantics=("parallel",),
            vmem_limit_bytes=vmem_limit),
    )(*args)


# ----------------------------------------------------------------------------
# Deterministic parameter init + pure-JAX f32 reference for verification
# ----------------------------------------------------------------------------
def init_params(key):
    ks = jax.random.split(key, 20)
    w = lambda k, din, dout: 0.02 * jax.random.normal(k, (din, dout), jnp.float32)
    b = lambda k, dout: 0.02 * jax.random.normal(k, (1, dout), jnp.float32)
    g = lambda k: 1.0 + 0.1 * jax.random.normal(k, (1, D), jnp.float32)
    bb = lambda k: 0.1 * jax.random.normal(k, (1, D), jnp.float32)

    self_attn = dict(ln_g=g(ks[0]), ln_b=bb(ks[1]),
                     w_qkv=w(ks[2], D, 3 * D), b_qkv=b(ks[3], 3 * D),
                     wo=w(ks[4], D, D), bo=b(ks[5], D))
    cross_attn = dict(ln_g=g(ks[6]), ln_b=bb(ks[7]),
                      wq=w(ks[8], D, D), bq=b(ks[9], D),
                      w_kv=w(ks[10], D, 2 * D), b_kv=b(ks[11], 2 * D),
                      wo=w(ks[12], D, D), bo=b(ks[13], D))
    ffn = dict(ln_g=g(ks[14]), ln_b=bb(ks[15]),
               w1=w(ks[16], D, D_FF), b1=b(ks[17], D_FF),
               w2=w(ks[18], D_FF, D), b2=b(ks[19], D))
    return dict(self_attn=self_attn, cross_attn=cross_attn, ffn=ffn)


def _mha_ref(q_in, kv_in, mask, wq, bq, wk, bk, wv, bv, wo, bo):
    B, Tq, d = q_in.shape
    Tk = kv_in.shape[1]
    dk = d // H
    Q = q_in @ wq + bq
    K = kv_in @ wk + bk
    V = kv_in @ wv + bv
    Qh = Q.reshape(B, Tq, H, dk).transpose(0, 2, 1, 3)
    Kh = K.reshape(B, Tk, H, dk).transpose(0, 2, 1, 3)
    Vh = V.reshape(B, Tk, H, dk).transpose(0, 2, 1, 3)
    s = jnp.einsum("bhqd,bhkd->bhqk", Qh, Kh) / math.sqrt(dk)
    s = jnp.where(mask[:, None] > 0, s, NEG_INF)
    pa = jax.nn.softmax(s, axis=-1)
    ctx = jnp.einsum("bhqk,bhkd->bhqd", pa, Vh).transpose(0, 2, 1, 3).reshape(B, Tq, d)
    return ctx @ wo + bo


def decoder_layer_ref(X, src, target_pad, source_pad, params):
    B, Tq, d = X.shape
    Ts = src.shape[1]
    causal = jnp.tril(jnp.ones((Tq, Tq), jnp.float32))
    tgt_mask = causal[None, :, :] * target_pad[:, None, :]              # (B,Tq,Tq)
    src_mask = jnp.broadcast_to(source_pad[:, None, :], (B, Tq, Ts))    # (B,Tq,Ts)

    sa = params["self_attn"]
    wq, wk, wv = jnp.split(sa["w_qkv"], 3, axis=1)
    bq, bk, bv = jnp.split(sa["b_qkv"], 3, axis=1)
    xn = _layer_norm(X, sa["ln_g"], sa["ln_b"])
    X = X + _mha_ref(xn, xn, tgt_mask, wq, bq, wk, bk, wv, bv, sa["wo"], sa["bo"])

    ca = params["cross_attn"]
    wk, wv = jnp.split(ca["w_kv"], 2, axis=1)
    bk, bv = jnp.split(ca["b_kv"], 2, axis=1)
    xn = _layer_norm(X, ca["ln_g"], ca["ln_b"])
    X = X + _mha_ref(xn, src, src_mask, ca["wq"], ca["bq"], wk, bk, wv, bv, ca["wo"], ca["bo"])

    ff = params["ffn"]
    xn = _layer_norm(X, ff["ln_g"], ff["ln_b"])
    return X + jnp.maximum(xn @ ff["w1"] + ff["b1"], 0.0) @ ff["w2"] + ff["b2"]


if __name__ == "__main__":
    B, TQ, TS = 2, 8, 8
    key = jax.random.PRNGKey(0)
    k_x, k_src, k_param = jax.random.split(key, 3)

    X = jax.random.normal(k_x, (B, TQ, D), jnp.float32)
    source_emb = jax.random.normal(k_src, (B, TS, D), jnp.float32)

    # compact key-padding vectors (1 = attend); causal structure is built in-kernel.
    target_pad = jnp.array([[1.0] * TQ, [1.0] * (TQ - 1) + [0.0]], jnp.float32)
    source_pad = jnp.array([[1.0] * TS, [1.0] * (TS - 2) + [0.0] * 2], jnp.float32)

    params = init_params(k_param)

    out = decoder_layer(X, source_emb, target_pad, source_pad, params)
    out = jax.block_until_ready(out)

    ref = decoder_layer_ref(X, source_emb, target_pad, source_pad, params)
    assert out.shape == (B, TQ, D)
    max_err = float(jnp.max(jnp.abs(out - ref)))
    # bf16 matmul operands (f32 accumulation) -> slightly looser tolerance than pure f32
    assert jnp.allclose(out, ref, rtol=2e-2, atol=2e-2), max_err

    print("KERNEL_OK")
</pallas_src>

<mosaic_0001>
module attributes {stable_mosaic.version = 11 : i64} {
  func.func @_decoder_layer_kernel(%arg0: i32, %arg1: memref<1x8x32xf32, #tpu.memory_space<vmem>>, %arg2: memref<1x8x32xf32, #tpu.memory_space<vmem>>, %arg3: memref<1x1x8xf32, #tpu.memory_space<vmem>>, %arg4: memref<1x1x8xf32, #tpu.memory_space<vmem>>, %arg5: memref<1x32xf32, #tpu.memory_space<vmem>>, %arg6: memref<1x32xf32, #tpu.memory_space<vmem>>, %arg7: memref<3x4x32x8xbf16, #tpu.memory_space<vmem>>, %arg8: memref<3x4x1x8xf32, #tpu.memory_space<vmem>>, %arg9: memref<4x8x32xbf16, #tpu.memory_space<vmem>>, %arg10: memref<1x32xf32, #tpu.memory_space<vmem>>, %arg11: memref<1x32xf32, #tpu.memory_space<vmem>>, %arg12: memref<1x32xf32, #tpu.memory_space<vmem>>, %arg13: memref<4x32x8xbf16, #tpu.memory_space<vmem>>, %arg14: memref<4x1x8xf32, #tpu.memory_space<vmem>>, %arg15: memref<2x4x32x8xbf16, #tpu.memory_space<vmem>>, %arg16: memref<2x4x1x8xf32, #tpu.memory_space<vmem>>, %arg17: memref<4x8x32xbf16, #tpu.memory_space<vmem>>, %arg18: memref<1x32xf32, #tpu.memory_space<vmem>>, %arg19: memref<1x32xf32, #tpu.memory_space<vmem>>, %arg20: memref<1x32xf32, #tpu.memory_space<vmem>>, %arg21: memref<32x64xbf16, #tpu.memory_space<vmem>>, %arg22: memref<1x64xf32, #tpu.memory_space<vmem>>, %arg23: memref<64x32xbf16, #tpu.memory_space<vmem>>, %arg24: memref<1x32xf32, #tpu.memory_space<vmem>>, %arg25: memref<1x8x32xf32, #tpu.memory_space<vmem>>) attributes {dimension_semantics = [#tpu.dimension_semantics<parallel>], iteration_bounds = array<i64: 2>, scalar_prefetch = 0 : i64, scratch_operands = 0 : i64, tpu.core_type = #tpu.core_type<tc>, window_params = [{transform_indices = @transform_0, window_bounds = array<i64: 1, 8, 32>}, {transform_indices = @transform_1, window_bounds = array<i64: 1, 8, 32>}, {transform_indices = @transform_2, window_bounds = array<i64: 1, 1, 8>}, {transform_indices = @transform_3, window_bounds = array<i64: 1, 1, 8>}, {pipeline_mode = #tpu.pipeline_mode<synchronous>, transform_indices = @transform_4, window_bounds = array<i64: 1, 32>}, {pipeline_mode = #tpu.pipeline_mode<synchronous>, transform_indices = @transform_5, window_bounds = array<i64: 1, 32>}, {pipeline_mode = #tpu.pipeline_mode<synchronous>, transform_indices = @transform_6, window_bounds = array<i64: 3, 4, 32, 8>}, {pipeline_mode = #tpu.pipeline_mode<synchronous>, transform_indices = @transform_7, window_bounds = array<i64: 3, 4, 1, 8>}, {pipeline_mode = #tpu.pipeline_mode<synchronous>, transform_indices = @transform_8, window_bounds = array<i64: 4, 8, 32>}, {pipeline_mode = #tpu.pipeline_mode<synchronous>, transform_indices = @transform_9, window_bounds = array<i64: 1, 32>}, {pipeline_mode = #tpu.pipeline_mode<synchronous>, transform_indices = @transform_10, window_bounds = array<i64: 1, 32>}, {pipeline_mode = #tpu.pipeline_mode<synchronous>, transform_indices = @transform_11, window_bounds = array<i64: 1, 32>}, {pipeline_mode = #tpu.pipeline_mode<synchronous>, transform_indices = @transform_12, window_bounds = array<i64: 4, 32, 8>}, {pipeline_mode = #tpu.pipeline_mode<synchronous>, transform_indices = @transform_13, window_bounds = array<i64: 4, 1, 8>}, {pipeline_mode = #tpu.pipeline_mode<synchronous>, transform_indices = @transform_14, window_bounds = array<i64: 2, 4, 32, 8>}, {pipeline_mode = #tpu.pipeline_mode<synchronous>, transform_indices = @transform_15, window_bounds = array<i64: 2, 4, 1, 8>}, {pipeline_mode = #tpu.pipeline_mode<synchronous>, transform_indices = @transform_16, window_bounds = array<i64: 4, 8, 32>}, {pipeline_mode = #tpu.pipeline_mode<synchronous>, transform_indices = @transform_17, window_bounds = array<i64: 1, 32>}, {pipeline_mode = #tpu.pipeline_mode<synchronous>, transform_indices = @transform_18, window_bounds = array<i64: 1, 32>}, {pipeline_mode = #tpu.pipeline_mode<synchronous>, transform_indices = @transform_19, window_bounds = array<i64: 1, 32>}, {pipeline_mode = #tpu.pipeline_mode<synchronous>, transform_indices = @transform_20, window_bounds = array<i64: 32, 64>}, {pipeline_mode = #tpu.pipeline_mode<synchronous>, transform_indices = @transform_21, window_bounds = array<i64: 1, 64>}, {pipeline_mode = #tpu.pipeline_mode<synchronous>, transform_indices = @transform_22, window_bounds = array<i64: 64, 32>}, {pipeline_mode = #tpu.pipeline_mode<synchronous>, transform_indices = @transform_23, window_bounds = array<i64: 1, 32>}, {transform_indices = @transform_24, window_bounds = array<i64: 1, 8, 32>}]} {
    %c0 = arith.constant 0 : index
    %c0_0 = arith.constant 0 : index
    %c0_1 = arith.constant 0 : index
    %0 = vector.load %arg1[%c0, %c0_0, %c0_1] : memref<1x8x32xf32, #tpu.memory_space<vmem>>, vector<1x8x32xf32>
    %1 = vector.shape_cast %0 : vector<1x8x32xf32> to vector<8x32xf32>
    %c0_2 = arith.constant 0 : index
    %c0_3 = arith.constant 0 : index
    %c0_4 = arith.constant 0 : index
    %2 = vector.load %arg2[%c0_2, %c0_3, %c0_4] : memref<1x8x32xf32, #tpu.memory_space<vmem>>, vector<1x8x32xf32>
    %3 = vector.shape_cast %2 : vector<1x8x32xf32> to vector<8x32xf32>
    %4 = tpu.iota {dimensions = array<i32: 0>} : vector<8x8xi32>
    %5 = tpu.iota {dimensions = array<i32: 1>} : vector<8x8xi32>
    %6 = arith.cmpi sge, %4, %5 : vector<8x8xi32>
    %c0_5 = arith.constant 0 : index
    %c0_6 = arith.constant 0 : index
    %c0_7 = arith.constant 0 : index
    %7 = vector.load %arg3[%c0_5, %c0_6, %c0_7] : memref<1x1x8xf32, #tpu.memory_space<vmem>>, vector<1x1x8xf32>
    %8 = vector.shape_cast %7 : vector<1x1x8xf32> to vector<1x8xf32>
    %cst = arith.constant 0.000000e+00 : f32
    %9 = vector.broadcast %cst : f32 to vector<1x8xf32>
    %10 = arith.cmpf ogt, %8, %9 : vector<1x8xf32>
    %11 = vector.broadcast %10 : vector<1x8xi1> to vector<8x8xi1>
    %12 = arith.andi %6, %11 : vector<8x8xi1>
    %cst_8 = arith.constant 0.000000e+00 : f32
    %cst_9 = arith.constant -1.000000e+09 : f32
    %13 = vector.broadcast %cst_8 : f32 to vector<8x8xf32>
    %14 = vector.broadcast %cst_9 : f32 to vector<8x8xf32>
    %15 = arith.select %12, %13, %14 : vector<8x8xi1>, vector<8x8xf32>
    %c0_10 = arith.constant 0 : index
    %c0_11 = arith.constant 0 : index
    %c0_12 = arith.constant 0 : index
    %16 = vector.load %arg4[%c0_10, %c0_11, %c0_12] : memref<1x1x8xf32, #tpu.memory_space<vmem>>, vector<1x1x8xf32>
    %17 = vector.shape_cast %16 : vector<1x1x8xf32> to vector<1x8xf32>
    %cst_13 = arith.constant 0.000000e+00 : f32
    %18 = vector.broadcast %cst_13 : f32 to vector<1x8xf32>
    %19 = arith.cmpf ogt, %17, %18 : vector<1x8xf32>
    %cst_14 = arith.constant 0.000000e+00 : f32
    %cst_15 = arith.constant -1.000000e+09 : f32
    %20 = vector.broadcast %cst_14 : f32 to vector<1x8xf32>
    %21 = vector.broadcast %cst_15 : f32 to vector<1x8xf32>
    %22 = arith.select %19, %20, %21 : vector<1x8xi1>, vector<1x8xf32>
    %c0_16 = arith.constant 0 : index
    %c0_17 = arith.constant 0 : index
    %23 = vector.load %arg5[%c0_16, %c0_17] : memref<1x32xf32, #tpu.memory_space<vmem>>, vector<1x32xf32>
    %c0_18 = arith.constant 0 : index
    %c0_19 = arith.constant 0 : index
    %24 = vector.load %arg6[%c0_18, %c0_19] : memref<1x32xf32, #tpu.memory_space<vmem>>, vector<1x32xf32>
    %cst_20 = arith.constant dense<0.000000e+00> : vector<8xf32>
    %25 = vector.multi_reduction <add>, %1, %cst_20 [1] : vector<8x32xf32> to vector<8xf32>
    %26 = vector.shape_cast %25 : vector<8xf32> to vector<8x1xf32>
    %cst_21 = arith.constant 3.200000e+01 : f32
    %27 = vector.broadcast %cst_21 : f32 to vector<8x1xf32>
    %28 = arith.divf %26, %27 : vector<8x1xf32>
    %29 = vector.broadcast %28 : vector<8x1xf32> to vector<8x32xf32>
    %30 = arith.subf %1, %29 : vector<8x32xf32>
    %31 = arith.mulf %30, %30 : vector<8x32xf32>
    %cst_22 = arith.constant dense<0.000000e+00> : vector<8xf32>
    %32 = vector.multi_reduction <add>, %31, %cst_22 [1] : vector<8x32xf32> to vector<8xf32>
    %33 = vector.shape_cast %32 : vector<8xf32> to vector<8x1xf32>
    %cst_23 = arith.constant 3.200000e+01 : f32
    %34 = vector.broadcast %cst_23 : f32 to vector<8x1xf32>
    %35 = arith.divf %33, %34 : vector<8x1xf32>
    %36 = vector.broadcast %28 : vector<8x1xf32> to vector<8x32xf32>
    %37 = arith.subf %1, %36 : vector<8x32xf32>
    %cst_24 = arith.constant 9.99999974E-6 : f32
    %38 = vector.broadcast %cst_24 : f32 to vector<8x1xf32>
    %39 = arith.addf %35, %38 : vector<8x1xf32>
    %40 = math.rsqrt %39 : vector<8x1xf32>
    %41 = vector.broadcast %40 : vector<8x1xf32> to vector<8x32xf32>
    %42 = arith.mulf %37, %41 : vector<8x32xf32>
    %43 = vector.broadcast %23 : vector<1x32xf32> to vector<8x32xf32>
    %44 = arith.mulf %42, %43 : vector<8x32xf32>
    %45 = vector.broadcast %24 : vector<1x32xf32> to vector<8x32xf32>
    %46 = arith.addf %44, %45 : vector<8x32xf32>
    %47 = arith.truncf %46 : vector<8x32xf32> to vector<8x32xbf16>
    %cst_25 = arith.constant 0.000000e+00 : f32
    %48 = vector.broadcast %cst_25 : f32 to vector<8x32xf32>
    %c0_26 = arith.constant 0 : index
    %c0_27 = arith.constant 0 : index
    %c0_28 = arith.constant 0 : index
    %c0_29 = arith.constant 0 : index
    %49 = vector.load %arg7[%c0_26, %c0_27, %c0_28, %c0_29] : memref<3x4x32x8xbf16, #tpu.memory_space<vmem>>, vector<1x1x32x8xbf16>
    %50 = vector.shape_cast %49 : vector<1x1x32x8xbf16> to vector<32x8xbf16>
    %c0_30 = arith.constant 0 : index
    %c0_31 = arith.constant 0 : index
    %c0_32 = arith.constant 0 : index
    %c0_33 = arith.constant 0 : index
    %51 = vector.load %arg8[%c0_30, %c0_31, %c0_32, %c0_33] : memref<3x4x1x8xf32, #tpu.memory_space<vmem>>, vector<1x1x1x8xf32>
    %52 = vector.shape_cast %51 : vector<1x1x1x8xf32> to vector<1x8xf32>
    %cst_34 = arith.constant dense<0.000000e+00> : vector<8x8xf32>
    %53 = tpu.matmul %47, %50, %cst_34 {dimension_numbers = #tpu.dot_dimension_numbers<[1], [0], [0], [1], [0, 0, 1, 1], [], []>} : vector<8x32xbf16>, vector<32x8xbf16>, vector<8x8xf32> -> vector<8x8xf32>
    %54 = vector.broadcast %52 : vector<1x8xf32> to vector<8x8xf32>
    %55 = arith.addf %53, %54 : vector<8x8xf32>
    %56 = arith.truncf %55 : vector<8x8xf32> to vector<8x8xbf16>
    %c1 = arith.constant 1 : index
    %c0_35 = arith.constant 0 : index
    %c0_36 = arith.constant 0 : index
    %c0_37 = arith.constant 0 : index
    %57 = vector.load %arg7[%c1, %c0_35, %c0_36, %c0_37] : memref<3x4x32x8xbf16, #tpu.memory_space<vmem>>, vector<1x1x32x8xbf16>
    %58 = vector.shape_cast %57 : vector<1x1x32x8xbf16> to vector<32x8xbf16>
    %c1_38 = arith.constant 1 : index
    %c0_39 = arith.constant 0 : index
    %c0_40 = arith.constant 0 : index
    %c0_41 = arith.constant 0 : index
    %59 = vector.load %arg8[%c1_38, %c0_39, %c0_40, %c0_41] : memref<3x4x1x8xf32, #tpu.memory_space<vmem>>, vector<1x1x1x8xf32>
    %60 = vector.shape_cast %59 : vector<1x1x1x8xf32> to vector<1x8xf32>
    %cst_42 = arith.constant dense<0.000000e+00> : vector<8x8xf32>
    %61 = tpu.matmul %47, %58, %cst_42 {dimension_numbers = #tpu.dot_dimension_numbers<[1], [0], [0], [1], [0, 0, 1, 1], [], []>} : vector<8x32xbf16>, vector<32x8xbf16>, vector<8x8xf32> -> vector<8x8xf32>
    %62 = vector.broadcast %60 : vector<1x8xf32> to vector<8x8xf32>
    %63 = arith.addf %61, %62 : vector<8x8xf32>
    %64 = arith.truncf %63 : vector<8x8xf32> to vector<8x8xbf16>
    %c2 = arith.constant 2 : index
    %c0_43 = arith.constant 0 : index
    %c0_44 = arith.constant 0 : index
    %c0_45 = arith.constant 0 : index
    %65 = vector.load %arg7[%c2, %c0_43, %c0_44, %c0_45] : memref<3x4x32x8xbf16, #tpu.memory_space<vmem>>, vector<1x1x32x8xbf16>
    %66 = vector.shape_cast %65 : vector<1x1x32x8xbf16> to vector<32x8xbf16>
    %c2_46 = arith.constant 2 : index
    %c0_47 = arith.constant 0 : index
    %c0_48 = arith.constant 0 : index
    %c0_49 = arith.constant 0 : index
    %67 = vector.load %arg8[%c2_46, %c0_47, %c0_48, %c0_49] : memref<3x4x1x8xf32, #tpu.memory_space<vmem>>, vector<1x1x1x8xf32>
    %68 = vector.shape_cast %67 : vector<1x1x1x8xf32> to vector<1x8xf32>
    %cst_50 = arith.constant dense<0.000000e+00> : vector<8x8xf32>
    %69 = tpu.matmul %47, %66, %cst_50 {dimension_numbers = #tpu.dot_dimension_numbers<[1], [0], [0], [1], [0, 0, 1, 1], [], []>} : vector<8x32xbf16>, vector<32x8xbf16>, vector<8x8xf32> -> vector<8x8xf32>
    %70 = vector.broadcast %68 : vector<1x8xf32> to vector<8x8xf32>
    %71 = arith.addf %69, %70 : vector<8x8xf32>
    %72 = arith.truncf %71 : vector<8x8xf32> to vector<8x8xbf16>
    %cst_51 = arith.constant 0xFF800000 : f32
    %73 = vector.broadcast %cst_51 : f32 to vector<8x1xf32>
    %cst_52 = arith.constant 0.000000e+00 : f32
    %74 = vector.broadcast %cst_52 : f32 to vector<8x1xf32>
    %cst_53 = arith.constant 0.000000e+00 : f32
    %75 = vector.broadcast %cst_53 : f32 to vector<8x8xf32>
    %cst_54 = arith.constant dense<0.000000e+00> : vector<8x8xf32>
    %76 = tpu.matmul %56, %64, %cst_54 {dimension_numbers = #tpu.dot_dimension_numbers<[1], [1], [0], [0], [0, 0, 1, 0], [], []>} : vector<8x8xbf16>, vector<8x8xbf16>, vector<8x8xf32> -> vector<8x8xf32>
    %77 = arith.addf %76, %15 : vector<8x8xf32>
    %cst_55 = arith.constant dense<0xFF800000> : vector<8xf32>
    %78 = vector.multi_reduction <maximumf>, %77, %cst_55 [1] : vector<8x8xf32> to vector<8xf32>
    %79 = vector.shape_cast %78 : vector<8xf32> to vector<8x1xf32>
    %80 = arith.maximumf %73, %79 : vector<8x1xf32>
    %81 = arith.subf %73, %80 : vector<8x1xf32>
    %82 = math.exp %81 : vector<8x1xf32>
    %83 = vector.broadcast %80 : vector<8x1xf32> to vector<8x8xf32>
    %84 = arith.subf %77, %83 : vector<8x8xf32>
    %85 = math.exp %84 : vector<8x8xf32>
    %86 = arith.mulf %82, %74 : vector<8x1xf32>
    %cst_56 = arith.constant dense<0.000000e+00> : vector<8xf32>
    %87 = vector.multi_reduction <add>, %85, %cst_56 [1] : vector<8x8xf32> to vector<8xf32>
    %88 = vector.shape_cast %87 : vector<8xf32> to vector<8x1xf32>
    %89 = arith.addf %86, %88 : vector<8x1xf32>
    %90 = vector.broadcast %82 : vector<8x1xf32> to vector<8x8xf32>
    %91 = arith.mulf %90, %75 : vector<8x8xf32>
    %92 = arith.truncf %85 : vector<8x8xf32> to vector<8x8xbf16>
    %cst_57 = arith.constant dense<0.000000e+00> : vector<8x8xf32>
    %93 = tpu.matmul %92, %72, %cst_57 {dimension_numbers = #tpu.dot_dimension_numbers<[1], [0], [0], [1], [0, 0, 1, 1], [], []>} : vector<8x8xbf16>, vector<8x8xbf16>, vector<8x8xf32> -> vector<8x8xf32>
    %94 = arith.addf %91, %93 : vector<8x8xf32>
    %95 = tpu.reciprocal %89 {approx = true} : vector<8x1xf32> -> vector<8x1xf32>
    %96 = vector.broadcast %95 : vector<8x1xf32> to vector<8x8xf32>
    %97 = arith.mulf %94, %96 : vector<8x8xf32>
    %98 = arith.truncf %97 : vector<8x8xf32> to vector<8x8xbf16>
    %c0_58 = arith.constant 0 : index
    %c0_59 = arith.constant 0 : index
    %c0_60 = arith.constant 0 : index
    %99 = vector.load %arg9[%c0_58, %c0_59, %c0_60] : memref<4x8x32xbf16, #tpu.memory_space<vmem>>, vector<1x8x32xbf16>
    %100 = vector.shape_cast %99 : vector<1x8x32xbf16> to vector<8x32xbf16>
    %cst_61 = arith.constant dense<0.000000e+00> : vector<8x32xf32>
    %101 = tpu.matmul %98, %100, %cst_61 {dimension_numbers = #tpu.dot_dimension_numbers<[1], [0], [0], [1], [0, 0, 1, 1], [], []>} : vector<8x8xbf16>, vector<8x32xbf16>, vector<8x32xf32> -> vector<8x32xf32>
    %102 = arith.addf %48, %101 : vector<8x32xf32>
    %c0_62 = arith.constant 0 : index
    %c1_63 = arith.constant 1 : index
    %c0_64 = arith.constant 0 : index
    %c0_65 = arith.constant 0 : index
    %103 = vector.load %arg7[%c0_62, %c1_63, %c0_64, %c0_65] : memref<3x4x32x8xbf16, #tpu.memory_space<vmem>>, vector<1x1x32x8xbf16>
    %104 = vector.shape_cast %103 : vector<1x1x32x8xbf16> to vector<32x8xbf16>
    %c0_66 = arith.constant 0 : index
    %c1_67 = arith.constant 1 : index
    %c0_68 = arith.constant 0 : index
    %c0_69 = arith.constant 0 : index
    %105 = vector.load %arg8[%c0_66, %c1_67, %c0_68, %c0_69] : memref<3x4x1x8xf32, #tpu.memory_space<vmem>>, vector<1x1x1x8xf32>
    %106 = vector.shape_cast %105 : vector<1x1x1x8xf32> to vector<1x8xf32>
    %cst_70 = arith.constant dense<0.000000e+00> : vector<8x8xf32>
    %107 = tpu.matmul %47, %104, %cst_70 {dimension_numbers = #tpu.dot_dimension_numbers<[1], [0], [0], [1], [0, 0, 1, 1], [], []>} : vector<8x32xbf16>, vector<32x8xbf16>, vector<8x8xf32> -> vector<8x8xf32>
    %108 = vector.broadcast %106 : vector<1x8xf32> to vector<8x8xf32>
    %109 = arith.addf %107, %108 : vector<8x8xf32>
    %110 = arith.truncf %109 : vector<8x8xf32> to vector<8x8xbf16>
    %c1_71 = arith.constant 1 : index
    %c1_72 = arith.constant 1 : index
    %c0_73 = arith.constant 0 : index
    %c0_74 = arith.constant 0 : index
    %111 = vector.load %arg7[%c1_71, %c1_72, %c0_73, %c0_74] : memref<3x4x32x8xbf16, #tpu.memory_space<vmem>>, vector<1x1x32x8xbf16>
    %112 = vector.shape_cast %111 : vector<1x1x32x8xbf16> to vector<32x8xbf16>
    %c1_75 = arith.constant 1 : index
    %c1_76 = arith.constant 1 : index
    %c0_77 = arith.constant 0 : index
    %c0_78 = arith.constant 0 : index
    %113 = vector.load %arg8[%c1_75, %c1_76, %c0_77, %c0_78] : memref<3x4x1x8xf32, #tpu.memory_space<vmem>>, vector<1x1x1x8xf32>
    %114 = vector.shape_cast %113 : vector<1x1x1x8xf32> to vector<1x8xf32>
    %cst_79 = arith.constant dense<0.000000e+00> : vector<8x8xf32>
    %115 = tpu.matmul %47, %112, %cst_79 {dimension_numbers = #tpu.dot_dimension_numbers<[1], [0], [0], [1], [0, 0, 1, 1], [], []>} : vector<8x32xbf16>, vector<32x8xbf16>, vector<8x8xf32> -> vector<8x8xf32>
    %116 = vector.broadcast %114 : vector<1x8xf32> to vector<8x8xf32>
    %117 = arith.addf %115, %116 : vector<8x8xf32>
    %118 = arith.truncf %117 : vector<8x8xf32> to vector<8x8xbf16>
    %c2_80 = arith.constant 2 : index
    %c1_81 = arith.constant 1 : index
    %c0_82 = arith.constant 0 : index
    %c0_83 = arith.constant 0 : index
    %119 = vector.load %arg7[%c2_80, %c1_81, %c0_82, %c0_83] : memref<3x4x32x8xbf16, #tpu.memory_space<vmem>>, vector<1x1x32x8xbf16>
    %120 = vector.shape_cast %119 : vector<1x1x32x8xbf16> to vector<32x8xbf16>
    %c2_84 = arith.constant 2 : index
    %c1_85 = arith.constant 1 : index
    %c0_86 = arith.constant 0 : index
    %c0_87 = arith.constant 0 : index
    %121 = vector.load %arg8[%c2_84, %c1_85, %c0_86, %c0_87] : memref<3x4x1x8xf32, #tpu.memory_space<vmem>>, vector<1x1x1x8xf32>
    %122 = vector.shape_cast %121 : vector<1x1x1x8xf32> to vector<1x8xf32>
    %cst_88 = arith.constant dense<0.000000e+00> : vector<8x8xf32>
    %123 = tpu.matmul %47, %120, %cst_88 {dimension_numbers = #tpu.dot_dimension_numbers<[1], [0], [0], [1], [0, 0, 1, 1], [], []>} : vector<8x32xbf16>, vector<32x8xbf16>, vector<8x8xf32> -> vector<8x8xf32>
    %124 = vector.broadcast %122 : vector<1x8xf32> to vector<8x8xf32>
    %125 = arith.addf %123, %124 : vector<8x8xf32>
    %126 = arith.truncf %125 : vector<8x8xf32> to vector<8x8xbf16>
    %cst_89 = arith.constant 0xFF800000 : f32
    %127 = vector.broadcast %cst_89 : f32 to vector<8x1xf32>
    %cst_90 = arith.constant 0.000000e+00 : f32
    %128 = vector.broadcast %cst_90 : f32 to vector<8x1xf32>
    %cst_91 = arith.constant 0.000000e+00 : f32
    %129 = vector.broadcast %cst_91 : f32 to vector<8x8xf32>
    %cst_92 = arith.constant dense<0.000000e+00> : vector<8x8xf32>
    %130 = tpu.matmul %110, %118, %cst_92 {dimension_numbers = #tpu.dot_dimension_numbers<[1], [1], [0], [0], [0, 0, 1, 0], [], []>} : vector<8x8xbf16>, vector<8x8xbf16>, vector<8x8xf32> -> vector<8x8xf32>
    %131 = arith.addf %130, %15 : vector<8x8xf32>
    %cst_93 = arith.constant dense<0xFF800000> : vector<8xf32>
    %132 = vector.multi_reduction <maximumf>, %131, %cst_93 [1] : vector<8x8xf32> to vector<8xf32>
    %133 = vector.shape_cast %132 : vector<8xf32> to vector<8x1xf32>
    %134 = arith.maximumf %127, %133 : vector<8x1xf32>
    %135 = arith.subf %127, %134 : vector<8x1xf32>
    %136 = math.exp %135 : vector<8x1xf32>
    %137 = vector.broadcast %134 : vector<8x1xf32> to vector<8x8xf32>
    %138 = arith.subf %131, %137 : vector<8x8xf32>
    %139 = math.exp %138 : vector<8x8xf32>
    %140 = arith.mulf %136, %128 : vector<8x1xf32>
    %cst_94 = arith.constant dense<0.000000e+00> : vector<8xf32>
    %141 = vector.multi_reduction <add>, %139, %cst_94 [1] : vector<8x8xf32> to vector<8xf32>
    %142 = vector.shape_cast %141 : vector<8xf32> to vector<8x1xf32>
    %143 = arith.addf %140, %142 : vector<8x1xf32>
    %144 = vector.broadcast %136 : vector<8x1xf32> to vector<8x8xf32>
    %145 = arith.mulf %144, %129 : vector<8x8xf32>
    %146 = arith.truncf %139 : vector<8x8xf32> to vector<8x8xbf16>
    %cst_95 = arith.constant dense<0.000000e+00> : vector<8x8xf32>
    %147 = tpu.matmul %146, %126, %cst_95 {dimension_numbers = #tpu.dot_dimension_numbers<[1], [0], [0], [1], [0, 0, 1, 1], [], []>} : vector<8x8xbf16>, vector<8x8xbf16>, vector<8x8xf32> -> vector<8x8xf32>
    %148 = arith.addf %145, %147 : vector<8x8xf32>
    %149 = tpu.reciprocal %143 {approx = true} : vector<8x1xf32> -> vector<8x1xf32>
    %150 = vector.broadcast %149 : vector<8x1xf32> to vector<8x8xf32>
    %151 = arith.mulf %148, %150 : vector<8x8xf32>
    %152 = arith.truncf %151 : vector<8x8xf32> to vector<8x8xbf16>
    %c1_96 = arith.constant 1 : index
    %c0_97 = arith.constant 0 : index
    %c0_98 = arith.constant 0 : index
    %153 = vector.load %arg9[%c1_96, %c0_97, %c0_98] : memref<4x8x32xbf16, #tpu.memory_space<vmem>>, vector<1x8x32xbf16>
    %154 = vector.shape_cast %153 : vector<1x8x32xbf16> to vector<8x32xbf16>
    %cst_99 = arith.constant dense<0.000000e+00> : vector<8x32xf32>
    %155 = tpu.matmul %152, %154, %cst_99 {dimension_numbers = #tpu.dot_dimension_numbers<[1], [0], [0], [1], [0, 0, 1, 1], [], []>} : vector<8x8xbf16>, vector<8x32xbf16>, vector<8x32xf32> -> vector<8x32xf32>
    %156 = arith.addf %102, %155 : vector<8x32xf32>
    %c0_100 = arith.constant 0 : index
    %c2_101 = arith.constant 2 : index
    %c0_102 = arith.constant 0 : index
    %c0_103 = arith.constant 0 : index
    %157 = vector.load %arg7[%c0_100, %c2_101, %c0_102, %c0_103] : memref<3x4x32x8xbf16, #tpu.memory_space<vmem>>, vector<1x1x32x8xbf16>
    %158 = vector.shape_cast %157 : vector<1x1x32x8xbf16> to vector<32x8xbf16>
    %c0_104 = arith.constant 0 : index
    %c2_105 = arith.constant 2 : index
    %c0_106 = arith.constant 0 : index
    %c0_107 = arith.constant 0 : index
    %159 = vector.load %arg8[%c0_104, %c2_105, %c0_106, %c0_107] : memref<3x4x1x8xf32, #tpu.memory_space<vmem>>, vector<1x1x1x8xf32>
    %160 = vector.shape_cast %159 : vector<1x1x1x8xf32> to vector<1x8xf32>
    %cst_108 = arith.constant dense<0.000000e+00> : vector<8x8xf32>
    %161 = tpu.matmul %47, %158, %cst_108 {dimension_numbers = #tpu.dot_dimension_numbers<[1], [0], [0], [1], [0, 0, 1, 1], [], []>} : vector<8x32xbf16>, vector<32x8xbf16>, vector<8x8xf32> -> vector<8x8xf32>
    %162 = vector.broadcast %160 : vector<1x8xf32> to vector<8x8xf32>
    %163 = arith.addf %161, %162 : vector<8x8xf32>
    %164 = arith.truncf %163 : vector<8x8xf32> to vector<8x8xbf16>
    %c1_109 = arith.constant 1 : index
    %c2_110 = arith.constant 2 : index
    %c0_111 = arith.constant 0 : index
    %c0_112 = arith.constant 0 : index
    %165 = vector.load %arg7[%c1_109, %c2_110, %c0_111, %c0_112] : memref<3x4x32x8xbf16, #tpu.memory_space<vmem>>, vector<1x1x32x8xbf16>
    %166 = vector.shape_cast %165 : vector<1x1x32x8xbf16> to vector<32x8xbf16>
    %c1_113 = arith.constant 1 : index
    %c2_114 = arith.constant 2 : index
    %c0_115 = arith.constant 0 : index
    %c0_116 = arith.constant 0 : index
    %167 = vector.load %arg8[%c1_113, %c2_114, %c0_115, %c0_116] : memref<3x4x1x8xf32, #tpu.memory_space<vmem>>, vector<1x1x1x8xf32>
    %168 = vector.shape_cast %167 : vector<1x1x1x8xf32> to vector<1x8xf32>
    %cst_117 = arith.constant dense<0.000000e+00> : vector<8x8xf32>
    %169 = tpu.matmul %47, %166, %cst_117 {dimension_numbers = #tpu.dot_dimension_numbers<[1], [0], [0], [1], [0, 0, 1, 1], [], []>} : vector<8x32xbf16>, vector<32x8xbf16>, vector<8x8xf32> -> vector<8x8xf32>
    %170 = vector.broadcast %168 : vector<1x8xf32> to vector<8x8xf32>
    %171 = arith.addf %169, %170 : vector<8x8xf32>
    %172 = arith.truncf %171 : vector<8x8xf32> to vector<8x8xbf16>
    %c2_118 = arith.constant 2 : index
    %c2_119 = arith.constant 2 : index
    %c0_120 = arith.constant 0 : index
    %c0_121 = arith.constant 0 : index
    %173 = vector.load %arg7[%c2_118, %c2_119, %c0_120, %c0_121] : memref<3x4x32x8xbf16, #tpu.memory_space<vmem>>, vector<1x1x32x8xbf16>
    %174 = vector.shape_cast %173 : vector<1x1x32x8xbf16> to vector<32x8xbf16>
    %c2_122 = arith.constant 2 : index
    %c2_123 = arith.constant 2 : index
    %c0_124 = arith.constant 0 : index
    %c0_125 = arith.constant 0 : index
    %175 = vector.load %arg8[%c2_122, %c2_123, %c0_124, %c0_125] : memref<3x4x1x8xf32, #tpu.memory_space<vmem>>, vector<1x1x1x8xf32>
    %176 = vector.shape_cast %175 : vector<1x1x1x8xf32> to vector<1x8xf32>
    %cst_126 = arith.constant dense<0.000000e+00> : vector<8x8xf32>
    %177 = tpu.matmul %47, %174, %cst_126 {dimension_numbers = #tpu.dot_dimension_numbers<[1], [0], [0], [1], [0, 0, 1, 1], [], []>} : vector<8x32xbf16>, vector<32x8xbf16>, vector<8x8xf32> -> vector<8x8xf32>
    %178 = vector.broadcast %176 : vector<1x8xf32> to vector<8x8xf32>
    %179 = arith.addf %177, %178 : vector<8x8xf32>
    %180 = arith.truncf %179 : vector<8x8xf32> to vector<8x8xbf16>
    %cst_127 = arith.constant 0xFF800000 : f32
    %181 = vector.broadcast %cst_127 : f32 to vector<8x1xf32>
    %cst_128 = arith.constant 0.000000e+00 : f32
    %182 = vector.broadcast %cst_128 : f32 to vector<8x1xf32>
    %cst_129 = arith.constant 0.000000e+00 : f32
    %183 = vector.broadcast %cst_129 : f32 to vector<8x8xf32>
    %cst_130 = arith.constant dense<0.000000e+00> : vector<8x8xf32>
    %184 = tpu.matmul %164, %172, %cst_130 {dimension_numbers = #tpu.dot_dimension_numbers<[1], [1], [0], [0], [0, 0, 1, 0], [], []>} : vector<8x8xbf16>, vector<8x8xbf16>, vector<8x8xf32> -> vector<8x8xf32>
    %185 = arith.addf %184, %15 : vector<8x8xf32>
    %cst_131 = arith.constant dense<0xFF800000> : vector<8xf32>
    %186 = vector.multi_reduction <maximumf>, %185, %cst_131 [1] : vector<8x8xf32> to vector<8xf32>
    %187 = vector.shape_cast %186 : vector<8xf32> to vector<8x1xf32>
    %188 = arith.maximumf %181, %187 : vector<8x1xf32>
    %189 = arith.subf %181, %188 : vector<8x1xf32>
    %190 = math.exp %189 : vector<8x1xf32>
    %191 = vector.broadcast %188 : vector<8x1xf32> to vector<8x8xf32>
    %192 = arith.subf %185, %191 : vector<8x8xf32>
    %193 = math.exp %192 : vector<8x8xf32>
    %194 = arith.mulf %190, %182 : vector<8x1xf32>
    %cst_132 = arith.constant dense<0.000000e+00> : vector<8xf32>
    %195 = vector.multi_reduction <add>, %193, %cst_132 [1] : vector<8x8xf32> to vector<8xf32>
    %196 = vector.shape_cast %195 : vector<8xf32> to vector<8x1xf32>
    %197 = arith.addf %194, %196 : vector<8x1xf32>
    %198 = vector.broadcast %190 : vector<8x1xf32> to vector<8x8xf32>
    %199 = arith.mulf %198, %183 : vector<8x8xf32>
    %200 = arith.truncf %193 : vector<8x8xf32> to vector<8x8xbf16>
    %cst_133 = arith.constant dense<0.000000e+00> : vector<8x8xf32>
    %201 = tpu.matmul %200, %180, %cst_133 {dimension_numbers = #tpu.dot_dimension_numbers<[1], [0], [0], [1], [0, 0, 1, 1], [], []>} : vector<8x8xbf16>, vector<8x8xbf16>, vector<8x8xf32> -> vector<8x8xf32>
    %202 = arith.addf %199, %201 : vector<8x8xf32>
    %203 = tpu.reciprocal %197 {approx = true} : vector<8x1xf32> -> vector<8x1xf32>
    %204 = vector.broadcast %203 : vector<8x1xf32> to vector<8x8xf32>
    %205 = arith.mulf %202, %204 : vector<8x8xf32>
    %206 = arith.truncf %205 : vector<8x8xf32> to vector<8x8xbf16>
    %c2_134 = arith.constant 2 : index
    %c0_135 = arith.constant 0 : index
    %c0_136 = arith.constant 0 : index
    %207 = vector.load %arg9[%c2_134, %c0_135, %c0_136] : memref<4x8x32xbf16, #tpu.memory_space<vmem>>, vector<1x8x32xbf16>
    %208 = vector.shape_cast %207 : vector<1x8x32xbf16> to vector<8x32xbf16>
    %cst_137 = arith.constant dense<0.000000e+00> : vector<8x32xf32>
    %209 = tpu.matmul %206, %208, %cst_137 {dimension_numbers = #tpu.dot_dimension_numbers<[1], [0], [0], [1], [0, 0, 1, 1], [], []>} : vector<8x8xbf16>, vector<8x32xbf16>, vector<8x32xf32> -> vector<8x32xf32>
    %210 = arith.addf %156, %209 : vector<8x32xf32>
    %c0_138 = arith.constant 0 : index
    %c3 = arith.constant 3 : index
    %c0_139 = arith.constant 0 : index
    %c0_140 = arith.constant 0 : index
    %211 = vector.load %arg7[%c0_138, %c3, %c0_139, %c0_140] : memref<3x4x32x8xbf16, #tpu.memory_space<vmem>>, vector<1x1x32x8xbf16>
    %212 = vector.shape_cast %211 : vector<1x1x32x8xbf16> to vector<32x8xbf16>
    %c0_141 = arith.constant 0 : index
    %c3_142 = arith.constant 3 : index
    %c0_143 = arith.constant 0 : index
    %c0_144 = arith.constant 0 : index
    %213 = vector.load %arg8[%c0_141, %c3_142, %c0_143, %c0_144] : memref<3x4x1x8xf32, #tpu.memory_space<vmem>>, vector<1x1x1x8xf32>
    %214 = vector.shape_cast %213 : vector<1x1x1x8xf32> to vector<1x8xf32>
    %cst_145 = arith.constant dense<0.000000e+00> : vector<8x8xf32>
    %215 = tpu.matmul %47, %212, %cst_145 {dimension_numbers = #tpu.dot_dimension_numbers<[1], [0], [0], [1], [0, 0, 1, 1], [], []>} : vector<8x32xbf16>, vector<32x8xbf16>, vector<8x8xf32> -> vector<8x8xf32>
    %216 = vector.broadcast %214 : vector<1x8xf32> to vector<8x8xf32>
    %217 = arith.addf %215, %216 : vector<8x8xf32>
    %218 = arith.truncf %217 : vector<8x8xf32> to vector<8x8xbf16>
    %c1_146 = arith.constant 1 : index
    %c3_147 = arith.constant 3 : index
    %c0_148 = arith.constant 0 : index
    %c0_149 = arith.constant 0 : index
    %219 = vector.load %arg7[%c1_146, %c3_147, %c0_148, %c0_149] : memref<3x4x32x8xbf16, #tpu.memory_space<vmem>>, vector<1x1x32x8xbf16>
    %220 = vector.shape_cast %219 : vector<1x1x32x8xbf16> to vector<32x8xbf16>
    %c1_150 = arith.constant 1 : index
    %c3_151 = arith.constant 3 : index
    %c0_152 = arith.constant 0 : index
    %c0_153 = arith.constant 0 : index
    %221 = vector.load %arg8[%c1_150, %c3_151, %c0_152, %c0_153] : memref<3x4x1x8xf32, #tpu.memory_space<vmem>>, vector<1x1x1x8xf32>
    %222 = vector.shape_cast %221 : vector<1x1x1x8xf32> to vector<1x8xf32>
    %cst_154 = arith.constant dense<0.000000e+00> : vector<8x8xf32>
    %223 = tpu.matmul %47, %220, %cst_154 {dimension_numbers = #tpu.dot_dimension_numbers<[1], [0], [0], [1], [0, 0, 1, 1], [], []>} : vector<8x32xbf16>, vector<32x8xbf16>, vector<8x8xf32> -> vector<8x8xf32>
    %224 = vector.broadcast %222 : vector<1x8xf32> to vector<8x8xf32>
    %225 = arith.addf %223, %224 : vector<8x8xf32>
    %226 = arith.truncf %225 : vector<8x8xf32> to vector<8x8xbf16>
    %c2_155 = arith.constant 2 : index
    %c3_156 = arith.constant 3 : index
    %c0_157 = arith.constant 0 : index
    %c0_158 = arith.constant 0 : index
    %227 = vector.load %arg7[%c2_155, %c3_156, %c0_157, %c0_158] : memref<3x4x32x8xbf16, #tpu.memory_space<vmem>>, vector<1x1x32x8xbf16>
    %228 = vector.shape_cast %227 : vector<1x1x32x8xbf16> to vector<32x8xbf16>
    %c2_159 = arith.constant 2 : index
    %c3_160 = arith.constant 3 : index
    %c0_161 = arith.constant 0 : index
    %c0_162 = arith.constant 0 : index
    %229 = vector.load %arg8[%c2_159, %c3_160, %c0_161, %c0_162] : memref<3x4x1x8xf32, #tpu.memory_space<vmem>>, vector<1x1x1x8xf32>
    %230 = vector.shape_cast %229 : vector<1x1x1x8xf32> to vector<1x8xf32>
    %cst_163 = arith.constant dense<0.000000e+00> : vector<8x8xf32>
    %231 = tpu.matmul %47, %228, %cst_163 {dimension_numbers = #tpu.dot_dimension_numbers<[1], [0], [0], [1], [0, 0, 1, 1], [], []>} : vector<8x32xbf16>, vector<32x8xbf16>, vector<8x8xf32> -> vector<8x8xf32>
    %232 = vector.broadcast %230 : vector<1x8xf32> to vector<8x8xf32>
    %233 = arith.addf %231, %232 : vector<8x8xf32>
    %234 = arith.truncf %233 : vector<8x8xf32> to vector<8x8xbf16>
    %cst_164 = arith.constant 0xFF800000 : f32
    %235 = vector.broadcast %cst_164 : f32 to vector<8x1xf32>
    %cst_165 = arith.constant 0.000000e+00 : f32
    %236 = vector.broadcast %cst_165 : f32 to vector<8x1xf32>
    %cst_166 = arith.constant 0.000000e+00 : f32
    %237 = vector.broadcast %cst_166 : f32 to vector<8x8xf32>
    %cst_167 = arith.constant dense<0.000000e+00> : vector<8x8xf32>
    %238 = tpu.matmul %218, %226, %cst_167 {dimension_numbers = #tpu.dot_dimension_numbers<[1], [1], [0], [0], [0, 0, 1, 0], [], []>} : vector<8x8xbf16>, vector<8x8xbf16>, vector<8x8xf32> -> vector<8x8xf32>
    %239 = arith.addf %238, %15 : vector<8x8xf32>
    %cst_168 = arith.constant dense<0xFF800000> : vector<8xf32>
    %240 = vector.multi_reduction <maximumf>, %239, %cst_168 [1] : vector<8x8xf32> to vector<8xf32>
    %241 = vector.shape_cast %240 : vector<8xf32> to vector<8x1xf32>
    %242 = arith.maximumf %235, %241 : vector<8x1xf32>
    %243 = arith.subf %235, %242 : vector<8x1xf32>
    %244 = math.exp %243 : vector<8x1xf32>
    %245 = vector.broadcast %242 : vector<8x1xf32> to vector<8x8xf32>
    %246 = arith.subf %239, %245 : vector<8x8xf32>
    %247 = math.exp %246 : vector<8x8xf32>
    %248 = arith.mulf %244, %236 : vector<8x1xf32>
    %cst_169 = arith.constant dense<0.000000e+00> : vector<8xf32>
    %249 = vector.multi_reduction <add>, %247, %cst_169 [1] : vector<8x8xf32> to vector<8xf32>
    %250 = vector.shape_cast %249 : vector<8xf32> to vector<8x1xf32>
    %251 = arith.addf %248, %250 : vector<8x1xf32>
    %252 = vector.broadcast %244 : vector<8x1xf32> to vector<8x8xf32>
    %253 = arith.mulf %252, %237 : vector<8x8xf32>
    %254 = arith.truncf %247 : vector<8x8xf32> to vector<8x8xbf16>
    %cst_170 = arith.constant dense<0.000000e+00> : vector<8x8xf32>
    %255 = tpu.matmul %254, %234, %cst_170 {dimension_numbers = #tpu.dot_dimension_numbers<[1], [0], [0], [1], [0, 0, 1, 1], [], []>} : vector<8x8xbf16>, vector<8x8xbf16>, vector<8x8xf32> -> vector<8x8xf32>
    %256 = arith.addf %253, %255 : vector<8x8xf32>
    %257 = tpu.reciprocal %251 {approx = true} : vector<8x1xf32> -> vector<8x1xf32>
    %258 = vector.broadcast %257 : vector<8x1xf32> to vector<8x8xf32>
    %259 = arith.mulf %256, %258 : vector<8x8xf32>
    %260 = arith.truncf %259 : vector<8x8xf32> to vector<8x8xbf16>
    %c3_171 = arith.constant 3 : index
    %c0_172 = arith.constant 0 : index
    %c0_173 = arith.constant 0 : index
    %261 = vector.load %arg9[%c3_171, %c0_172, %c0_173] : memref<4x8x32xbf16, #tpu.memory_space<vmem>>, vector<1x8x32xbf16>
    %262 = vector.shape_cast %261 : vector<1x8x32xbf16> to vector<8x32xbf16>
    %cst_174 = arith.constant dense<0.000000e+00> : vector<8x32xf32>
    %263 = tpu.matmul %260, %262, %cst_174 {dimension_numbers = #tpu.dot_dimension_numbers<[1], [0], [0], [1], [0, 0, 1, 1], [], []>} : vector<8x8xbf16>, vector<8x32xbf16>, vector<8x32xf32> -> vector<8x32xf32>
    %264 = arith.addf %210, %263 : vector<8x32xf32>
    %265 = arith.addf %1, %264 : vector<8x32xf32>
    %c0_175 = arith.constant 0 : index
    %c0_176 = arith.constant 0 : index
    %266 = vector.load %arg10[%c0_175, %c0_176] : memref<1x32xf32, #tpu.memory_space<vmem>>, vector<1x32xf32>
    %267 = vector.broadcast %266 : vector<1x32xf32> to vector<8x32xf32>
    %268 = arith.addf %265, %267 : vector<8x32xf32>
    %c0_177 = arith.constant 0 : index
    %c0_178 = arith.constant 0 : index
    %269 = vector.load %arg11[%c0_177, %c0_178] : memref<1x32xf32, #tpu.memory_space<vmem>>, vector<1x32xf32>
    %c0_179 = arith.constant 0 : index
    %c0_180 = arith.constant 0 : index
    %270 = vector.load %arg12[%c0_179, %c0_180] : memref<1x32xf32, #tpu.memory_space<vmem>>, vector<1x32xf32>
    %cst_181 = arith.constant dense<0.000000e+00> : vector<8xf32>
    %271 = vector.multi_reduction <add>, %268, %cst_181 [1] : vector<8x32xf32> to vector<8xf32>
    %272 = vector.shape_cast %271 : vector<8xf32> to vector<8x1xf32>
    %cst_182 = arith.constant 3.200000e+01 : f32
    %273 = vector.broadcast %cst_182 : f32 to vector<8x1xf32>
    %274 = arith.divf %272, %273 : vector<8x1xf32>
    %275 = vector.broadcast %274 : vector<8x1xf32> to vector<8x32xf32>
    %276 = arith.subf %268, %275 : vector<8x32xf32>
    %277 = arith.mulf %276, %276 : vector<8x32xf32>
    %cst_183 = arith.constant dense<0.000000e+00> : vector<8xf32>
    %278 = vector.multi_reduction <add>, %277, %cst_183 [1] : vector<8x32xf32> to vector<8xf32>
    %279 = vector.shape_cast %278 : vector<8xf32> to vector<8x1xf32>
    %cst_184 = arith.constant 3.200000e+01 : f32
    %280 = vector.broadcast %cst_184 : f32 to vector<8x1xf32>
    %281 = arith.divf %279, %280 : vector<8x1xf32>
    %282 = vector.broadcast %274 : vector<8x1xf32> to vector<8x32xf32>
    %283 = arith.subf %268, %282 : vector<8x32xf32>
    %cst_185 = arith.constant 9.99999974E-6 : f32
    %284 = vector.broadcast %cst_185 : f32 to vector<8x1xf32>
    %285 = arith.addf %281, %284 : vector<8x1xf32>
    %286 = math.rsqrt %285 : vector<8x1xf32>
    %287 = vector.broadcast %286 : vector<8x1xf32> to vector<8x32xf32>
    %288 = arith.mulf %283, %287 : vector<8x32xf32>
    %289 = vector.broadcast %269 : vector<1x32xf32> to vector<8x32xf32>
    %290 = arith.mulf %288, %289 : vector<8x32xf32>
    %291 = vector.broadcast %270 : vector<1x32xf32> to vector<8x32xf32>
    %292 = arith.addf %290, %291 : vector<8x32xf32>
    %293 = arith.truncf %292 : vector<8x32xf32> to vector<8x32xbf16>
    %294 = arith.truncf %3 : vector<8x32xf32> to vector<8x32xbf16>
    %cst_186 = arith.constant 0.000000e+00 : f32
    %295 = vector.broadcast %cst_186 : f32 to vector<8x32xf32>
    %c0_187 = arith.constant 0 : index
    %c0_188 = arith.constant 0 : index
    %c0_189 = arith.constant 0 : index
    %296 = vector.load %arg13[%c0_187, %c0_188, %c0_189] : memref<4x32x8xbf16, #tpu.memory_space<vmem>>, vector<1x32x8xbf16>
    %297 = vector.shape_cast %296 : vector<1x32x8xbf16> to vector<32x8xbf16>
    %c0_190 = arith.constant 0 : index
    %c0_191 = arith.constant 0 : index
    %c0_192 = arith.constant 0 : index
    %298 = vector.load %arg14[%c0_190, %c0_191, %c0_192] : memref<4x1x8xf32, #tpu.memory_space<vmem>>, vector<1x1x8xf32>
    %299 = vector.shape_cast %298 : vector<1x1x8xf32> to vector<1x8xf32>
    %cst_193 = arith.constant dense<0.000000e+00> : vector<8x8xf32>
    %300 = tpu.matmul %293, %297, %cst_193 {dimension_numbers = #tpu.dot_dimension_numbers<[1], [0], [0], [1], [0, 0, 1, 1], [], []>} : vector<8x32xbf16>, vector<32x8xbf16>, vector<8x8xf32> -> vector<8x8xf32>
    %301 = vector.broadcast %299 : vector<1x8xf32> to vector<8x8xf32>
    %302 = arith.addf %300, %301 : vector<8x8xf32>
    %303 = arith.truncf %302 : vector<8x8xf32> to vector<8x8xbf16>
    %c0_194 = arith.constant 0 : index
    %c0_195 = arith.constant 0 : index
    %c0_196 = arith.constant 0 : index
    %c0_197 = arith.constant 0 : index
    %304 = vector.load %arg15[%c0_194, %c0_195, %c0_196, %c0_197] : memref<2x4x32x8xbf16, #tpu.memory_space<vmem>>, vector<1x1x32x8xbf16>
    %305 = vector.shape_cast %304 : vector<1x1x32x8xbf16> to vector<32x8xbf16>
    %c0_198 = arith.constant 0 : index
    %c0_199 = arith.constant 0 : index
    %c0_200 = arith.constant 0 : index
    %c0_201 = arith.constant 0 : index
    %306 = vector.load %arg16[%c0_198, %c0_199, %c0_200, %c0_201] : memref<2x4x1x8xf32, #tpu.memory_space<vmem>>, vector<1x1x1x8xf32>
    %307 = vector.shape_cast %306 : vector<1x1x1x8xf32> to vector<1x8xf32>
    %cst_202 = arith.constant dense<0.000000e+00> : vector<8x8xf32>
    %308 = tpu.matmul %294, %305, %cst_202 {dimension_numbers = #tpu.dot_dimension_numbers<[1], [0], [0], [1], [0, 0, 1, 1], [], []>} : vector<8x32xbf16>, vector<32x8xbf16>, vector<8x8xf32> -> vector<8x8xf32>
    %309 = vector.broadcast %307 : vector<1x8xf32> to vector<8x8xf32>
    %310 = arith.addf %308, %309 : vector<8x8xf32>
    %311 = arith.truncf %310 : vector<8x8xf32> to vector<8x8xbf16>
    %c1_203 = arith.constant 1 : index
    %c0_204 = arith.constant 0 : index
    %c0_205 = arith.constant 0 : index
    %c0_206 = arith.constant 0 : index
    %312 = vector.load %arg15[%c1_203, %c0_204, %c0_205, %c0_206] : memref<2x4x32x8xbf16, #tpu.memory_space<vmem>>, vector<1x1x32x8xbf16>
    %313 = vector.shape_cast %312 : vector<1x1x32x8xbf16> to vector<32x8xbf16>
    %c1_207 = arith.constant 1 : index
    %c0_208 = arith.constant 0 : index
    %c0_209 = arith.constant 0 : index
    %c0_210 = arith.constant 0 : index
    %314 = vector.load %arg16[%c1_207, %c0_208, %c0_209, %c0_210] : memref<2x4x1x8xf32, #tpu.memory_space<vmem>>, vector<1x1x1x8xf32>
    %315 = vector.shape_cast %314 : vector<1x1x1x8xf32> to vector<1x8xf32>
    %cst_211 = arith.constant dense<0.000000e+00> : vector<8x8xf32>
    %316 = tpu.matmul %294, %313, %cst_211 {dimension_numbers = #tpu.dot_dimension_numbers<[1], [0], [0], [1], [0, 0, 1, 1], [], []>} : vector<8x32xbf16>, vector<32x8xbf16>, vector<8x8xf32> -> vector<8x8xf32>
    %317 = vector.broadcast %315 : vector<1x8xf32> to vector<8x8xf32>
    %318 = arith.addf %316, %317 : vector<8x8xf32>
    %319 = arith.truncf %318 : vector<8x8xf32> to vector<8x8xbf16>
    %cst_212 = arith.constant 0xFF800000 : f32
    %320 = vector.broadcast %cst_212 : f32 to vector<8x1xf32>
    %cst_213 = arith.constant 0.000000e+00 : f32
    %321 = vector.broadcast %cst_213 : f32 to vector<8x1xf32>
    %cst_214 = arith.constant 0.000000e+00 : f32
    %322 = vector.broadcast %cst_214 : f32 to vector<8x8xf32>
    %cst_215 = arith.constant dense<0.000000e+00> : vector<8x8xf32>
    %323 = tpu.matmul %303, %311, %cst_215 {dimension_numbers = #tpu.dot_dimension_numbers<[1], [1], [0], [0], [0, 0, 1, 0], [], []>} : vector<8x8xbf16>, vector<8x8xbf16>, vector<8x8xf32> -> vector<8x8xf32>
    %324 = vector.broadcast %22 : vector<1x8xf32> to vector<8x8xf32>
    %325 = arith.addf %323, %324 : vector<8x8xf32>
    %cst_216 = arith.constant dense<0xFF800000> : vector<8xf32>
    %326 = vector.multi_reduction <maximumf>, %325, %cst_216 [1] : vector<8x8xf32> to vector<8xf32>
    %327 = vector.shape_cast %326 : vector<8xf32> to vector<8x1xf32>
    %328 = arith.maximumf %320, %327 : vector<8x1xf32>
    %329 = arith.subf %320, %328 : vector<8x1xf32>
    %330 = math.exp %329 : vector<8x1xf32>
    %331 = vector.broadcast %328 : vector<8x1xf32> to vector<8x8xf32>
    %332 = arith.subf %325, %331 : vector<8x8xf32>
    %333 = math.exp %332 : vector<8x8xf32>
    %334 = arith.mulf %330, %321 : vector<8x1xf32>
    %cst_217 = arith.constant dense<0.000000e+00> : vector<8xf32>
    %335 = vector.multi_reduction <add>, %333, %cst_217 [1] : vector<8x8xf32> to vector<8xf32>
    %336 = vector.shape_cast %335 : vector<8xf32> to vector<8x1xf32>
    %337 = arith.addf %334, %336 : vector<8x1xf32>
    %338 = vector.broadcast %330 : vector<8x1xf32> to vector<8x8xf32>
    %339 = arith.mulf %338, %322 : vector<8x8xf32>
    %340 = arith.truncf %333 : vector<8x8xf32> to vector<8x8xbf16>
    %cst_218 = arith.constant dense<0.000000e+00> : vector<8x8xf32>
    %341 = tpu.matmul %340, %319, %cst_218 {dimension_numbers = #tpu.dot_dimension_numbers<[1], [0], [0], [1], [0, 0, 1, 1], [], []>} : vector<8x8xbf16>, vector<8x8xbf16>, vector<8x8xf32> -> vector<8x8xf32>
    %342 = arith.addf %339, %341 : vector<8x8xf32>
    %343 = tpu.reciprocal %337 {approx = true} : vector<8x1xf32> -> vector<8x1xf32>
    %344 = vector.broadcast %343 : vector<8x1xf32> to vector<8x8xf32>
    %345 = arith.mulf %342, %344 : vector<8x8xf32>
    %346 = arith.truncf %345 : vector<8x8xf32> to vector<8x8xbf16>
    %c0_219 = arith.constant 0 : index
    %c0_220 = arith.constant 0 : index
    %c0_221 = arith.constant 0 : index
    %347 = vector.load %arg17[%c0_219, %c0_220, %c0_221] : memref<4x8x32xbf16, #tpu.memory_space<vmem>>, vector<1x8x32xbf16>
    %348 = vector.shape_cast %347 : vector<1x8x32xbf16> to vector<8x32xbf16>
    %cst_222 = arith.constant dense<0.000000e+00> : vector<8x32xf32>
    %349 = tpu.matmul %346, %348, %cst_222 {dimension_numbers = #tpu.dot_dimension_numbers<[1], [0], [0], [1], [0, 0, 1, 1], [], []>} : vector<8x8xbf16>, vector<8x32xbf16>, vector<8x32xf32> -> vector<8x32xf32>
    %350 = arith.addf %295, %349 : vector<8x32xf32>
    %c1_223 = arith.constant 1 : index
    %c0_224 = arith.constant 0 : index
    %c0_225 = arith.constant 0 : index
    %351 = vector.load %arg13[%c1_223, %c0_224, %c0_225] : memref<4x32x8xbf16, #tpu.memory_space<vmem>>, vector<1x32x8xbf16>
    %352 = vector.shape_cast %351 : vector<1x32x8xbf16> to vector<32x8xbf16>
    %c1_226 = arith.constant 1 : index
    %c0_227 = arith.constant 0 : index
    %c0_228 = arith.constant 0 : index
    %353 = vector.load %arg14[%c1_226, %c0_227, %c0_228] : memref<4x1x8xf32, #tpu.memory_space<vmem>>, vector<1x1x8xf32>
    %354 = vector.shape_cast %353 : vector<1x1x8xf32> to vector<1x8xf32>
    %cst_229 = arith.constant dense<0.000000e+00> : vector<8x8xf32>
    %355 = tpu.matmul %293, %352, %cst_229 {dimension_numbers = #tpu.dot_dimension_numbers<[1], [0], [0], [1], [0, 0, 1, 1], [], []>} : vector<8x32xbf16>, vector<32x8xbf16>, vector<8x8xf32> -> vector<8x8xf32>
    %356 = vector.broadcast %354 : vector<1x8xf32> to vector<8x8xf32>
    %357 = arith.addf %355, %356 : vector<8x8xf32>
    %358 = arith.truncf %357 : vector<8x8xf32> to vector<8x8xbf16>
    %c0_230 = arith.constant 0 : index
    %c1_231 = arith.constant 1 : index
    %c0_232 = arith.constant 0 : index
    %c0_233 = arith.constant 0 : index
    %359 = vector.load %arg15[%c0_230, %c1_231, %c0_232, %c0_233] : memref<2x4x32x8xbf16, #tpu.memory_space<vmem>>, vector<1x1x32x8xbf16>
    %360 = vector.shape_cast %359 : vector<1x1x32x8xbf16> to vector<32x8xbf16>
    %c0_234 = arith.constant 0 : index
    %c1_235 = arith.constant 1 : index
    %c0_236 = arith.constant 0 : index
    %c0_237 = arith.constant 0 : index
    %361 = vector.load %arg16[%c0_234, %c1_235, %c0_236, %c0_237] : memref<2x4x1x8xf32, #tpu.memory_space<vmem>>, vector<1x1x1x8xf32>
    %362 = vector.shape_cast %361 : vector<1x1x1x8xf32> to vector<1x8xf32>
    %cst_238 = arith.constant dense<0.000000e+00> : vector<8x8xf32>
    %363 = tpu.matmul %294, %360, %cst_238 {dimension_numbers = #tpu.dot_dimension_numbers<[1], [0], [0], [1], [0, 0, 1, 1], [], []>} : vector<8x32xbf16>, vector<32x8xbf16>, vector<8x8xf32> -> vector<8x8xf32>
    %364 = vector.broadcast %362 : vector<1x8xf32> to vector<8x8xf32>
    %365 = arith.addf %363, %364 : vector<8x8xf32>
    %366 = arith.truncf %365 : vector<8x8xf32> to vector<8x8xbf16>
    %c1_239 = arith.constant 1 : index
    %c1_240 = arith.constant 1 : index
    %c0_241 = arith.constant 0 : index
    %c0_242 = arith.constant 0 : index
    %367 = vector.load %arg15[%c1_239, %c1_240, %c0_241, %c0_242] : memref<2x4x32x8xbf16, #tpu.memory_space<vmem>>, vector<1x1x32x8xbf16>
    %368 = vector.shape_cast %367 : vector<1x1x32x8xbf16> to vector<32x8xbf16>
    %c1_243 = arith.constant 1 : index
    %c1_244 = arith.constant 1 : index
    %c0_245 = arith.constant 0 : index
    %c0_246 = arith.constant 0 : index
    %369 = vector.load %arg16[%c1_243, %c1_244, %c0_245, %c0_246] : memref<2x4x1x8xf32, #tpu.memory_space<vmem>>, vector<1x1x1x8xf32>
    %370 = vector.shape_cast %369 : vector<1x1x1x8xf32> to vector<1x8xf32>
    %cst_247 = arith.constant dense<0.000000e+00> : vector<8x8xf32>
    %371 = tpu.matmul %294, %368, %cst_247 {dimension_numbers = #tpu.dot_dimension_numbers<[1], [0], [0], [1], [0, 0, 1, 1], [], []>} : vector<8x32xbf16>, vector<32x8xbf16>, vector<8x8xf32> -> vector<8x8xf32>
    %372 = vector.broadcast %370 : vector<1x8xf32> to vector<8x8xf32>
    %373 = arith.addf %371, %372 : vector<8x8xf32>
    %374 = arith.truncf %373 : vector<8x8xf32> to vector<8x8xbf16>
    %cst_248 = arith.constant 0xFF800000 : f32
    %375 = vector.broadcast %cst_248 : f32 to vector<8x1xf32>
    %cst_249 = arith.constant 0.000000e+00 : f32
    %376 = vector.broadcast %cst_249 : f32 to vector<8x1xf32>
    %cst_250 = arith.constant 0.000000e+00 : f32
    %377 = vector.broadcast %cst_250 : f32 to vector<8x8xf32>
    %cst_251 = arith.constant dense<0.000000e+00> : vector<8x8xf32>
    %378 = tpu.matmul %358, %366, %cst_251 {dimension_numbers = #tpu.dot_dimension_numbers<[1], [1], [0], [0], [0, 0, 1, 0], [], []>} : vector<8x8xbf16>, vector<8x8xbf16>, vector<8x8xf32> -> vector<8x8xf32>
    %379 = vector.broadcast %22 : vector<1x8xf32> to vector<8x8xf32>
    %380 = arith.addf %378, %379 : vector<8x8xf32>
    %cst_252 = arith.constant dense<0xFF800000> : vector<8xf32>
    %381 = vector.multi_reduction <maximumf>, %380, %cst_252 [1] : vector<8x8xf32> to vector<8xf32>
    %382 = vector.shape_cast %381 : vector<8xf32> to vector<8x1xf32>
    %383 = arith.maximumf %375, %382 : vector<8x1xf32>
    %384 = arith.subf %375, %383 : vector<8x1xf32>
    %385 = math.exp %384 : vector<8x1xf32>
    %386 = vector.broadcast %383 : vector<8x1xf32> to vector<8x8xf32>
    %387 = arith.subf %380, %386 : vector<8x8xf32>
    %388 = math.exp %387 : vector<8x8xf32>
    %389 = arith.mulf %385, %376 : vector<8x1xf32>
    %cst_253 = arith.constant dense<0.000000e+00> : vector<8xf32>
    %390 = vector.multi_reduction <add>, %388, %cst_253 [1] : vector<8x8xf32> to vector<8xf32>
    %391 = vector.shape_cast %390 : vector<8xf32> to vector<8x1xf32>
    %392 = arith.addf %389, %391 : vector<8x1xf32>
    %393 = vector.broadcast %385 : vector<8x1xf32> to vector<8x8xf32>
    %394 = arith.mulf %393, %377 : vector<8x8xf32>
    %395 = arith.truncf %388 : vector<8x8xf32> to vector<8x8xbf16>
    %cst_254 = arith.constant dense<0.000000e+00> : vector<8x8xf32>
    %396 = tpu.matmul %395, %374, %cst_254 {dimension_numbers = #tpu.dot_dimension_numbers<[1], [0], [0], [1], [0, 0, 1, 1], [], []>} : vector<8x8xbf16>, vector<8x8xbf16>, vector<8x8xf32> -> vector<8x8xf32>
    %397 = arith.addf %394, %396 : vector<8x8xf32>
    %398 = tpu.reciprocal %392 {approx = true} : vector<8x1xf32> -> vector<8x1xf32>
    %399 = vector.broadcast %398 : vector<8x1xf32> to vector<8x8xf32>
    %400 = arith.mulf %397, %399 : vector<8x8xf32>
    %401 = arith.truncf %400 : vector<8x8xf32> to vector<8x8xbf16>
    %c1_255 = arith.constant 1 : index
    %c0_256 = arith.constant 0 : index
    %c0_257 = arith.constant 0 : index
    %402 = vector.load %arg17[%c1_255, %c0_256, %c0_257] : memref<4x8x32xbf16, #tpu.memory_space<vmem>>, vector<1x8x32xbf16>
    %403 = vector.shape_cast %402 : vector<1x8x32xbf16> to vector<8x32xbf16>
    %cst_258 = arith.constant dense<0.000000e+00> : vector<8x32xf32>
    %404 = tpu.matmul %401, %403, %cst_258 {dimension_numbers = #tpu.dot_dimension_numbers<[1], [0], [0], [1], [0, 0, 1, 1], [], []>} : vector<8x8xbf16>, vector<8x32xbf16>, vector<8x32xf32> -> vector<8x32xf32>
    %405 = arith.addf %350, %404 : vector<8x32xf32>
    %c2_259 = arith.constant 2 : index
    %c0_260 = arith.constant 0 : index
    %c0_261 = arith.constant 0 : index
    %406 = vector.load %arg13[%c2_259, %c0_260, %c0_261] : memref<4x32x8xbf16, #tpu.memory_space<vmem>>, vector<1x32x8xbf16>
    %407 = vector.shape_cast %406 : vector<1x32x8xbf16> to vector<32x8xbf16>
    %c2_262 = arith.constant 2 : index
    %c0_263 = arith.constant 0 : index
    %c0_264 = arith.constant 0 : index
    %408 = vector.load %arg14[%c2_262, %c0_263, %c0_264] : memref<4x1x8xf32, #tpu.memory_space<vmem>>, vector<1x1x8xf32>
    %409 = vector.shape_cast %408 : vector<1x1x8xf32> to vector<1x8xf32>
    %cst_265 = arith.constant dense<0.000000e+00> : vector<8x8xf32>
    %410 = tpu.matmul %293, %407, %cst_265 {dimension_numbers = #tpu.dot_dimension_numbers<[1], [0], [0], [1], [0, 0, 1, 1], [], []>} : vector<8x32xbf16>, vector<32x8xbf16>, vector<8x8xf32> -> vector<8x8xf32>
    %411 = vector.broadcast %409 : vector<1x8xf32> to vector<8x8xf32>
    %412 = arith.addf %410, %411 : vector<8x8xf32>
    %413 = arith.truncf %412 : vector<8x8xf32> to vector<8x8xbf16>
    %c0_266 = arith.constant 0 : index
    %c2_267 = arith.constant 2 : index
    %c0_268 = arith.constant 0 : index
    %c0_269 = arith.constant 0 : index
    %414 = vector.load %arg15[%c0_266, %c2_267, %c0_268, %c0_269] : memref<2x4x32x8xbf16, #tpu.memory_space<vmem>>, vector<1x1x32x8xbf16>
    %415 = vector.shape_cast %414 : vector<1x1x32x8xbf16> to vector<32x8xbf16>
    %c0_270 = arith.constant 0 : index
    %c2_271 = arith.constant 2 : index
    %c0_272 = arith.constant 0 : index
    %c0_273 = arith.constant 0 : index
    %416 = vector.load %arg16[%c0_270, %c2_271, %c0_272, %c0_273] : memref<2x4x1x8xf32, #tpu.memory_space<vmem>>, vector<1x1x1x8xf32>
    %417 = vector.shape_cast %416 : vector<1x1x1x8xf32> to vector<1x8xf32>
    %cst_274 = arith.constant dense<0.000000e+00> : vector<8x8xf32>
    %418 = tpu.matmul %294, %415, %cst_274 {dimension_numbers = #tpu.dot_dimension_numbers<[1], [0], [0], [1], [0, 0, 1, 1], [], []>} : vector<8x32xbf16>, vector<32x8xbf16>, vector<8x8xf32> -> vector<8x8xf32>
    %419 = vector.broadcast %417 : vector<1x8xf32> to vector<8x8xf32>
    %420 = arith.addf %418, %419 : vector<8x8xf32>
    %421 = arith.truncf %420 : vector<8x8xf32> to vector<8x8xbf16>
    %c1_275 = arith.constant 1 : index
    %c2_276 = arith.constant 2 : index
    %c0_277 = arith.constant 0 : index
    %c0_278 = arith.constant 0 : index
    %422 = vector.load %arg15[%c1_275, %c2_276, %c0_277, %c0_278] : memref<2x4x32x8xbf16, #tpu.memory_space<vmem>>, vector<1x1x32x8xbf16>
    %423 = vector.shape_cast %422 : vector<1x1x32x8xbf16> to vector<32x8xbf16>
    %c1_279 = arith.constant 1 : index
    %c2_280 = arith.constant 2 : index
    %c0_281 = arith.constant 0 : index
    %c0_282 = arith.constant 0 : index
    %424 = vector.load %arg16[%c1_279, %c2_280, %c0_281, %c0_282] : memref<2x4x1x8xf32, #tpu.memory_space<vmem>>, vector<1x1x1x8xf32>
    %425 = vector.shape_cast %424 : vector<1x1x1x8xf32> to vector<1x8xf32>
    %cst_283 = arith.constant dense<0.000000e+00> : vector<8x8xf32>
    %426 = tpu.matmul %294, %423, %cst_283 {dimension_numbers = #tpu.dot_dimension_numbers<[1], [0], [0], [1], [0, 0, 1, 1], [], []>} : vector<8x32xbf16>, vector<32x8xbf16>, vector<8x8xf32> -> vector<8x8xf32>
    %427 = vector.broadcast %425 : vector<1x8xf32> to vector<8x8xf32>
    %428 = arith.addf %426, %427 : vector<8x8xf32>
    %429 = arith.truncf %428 : vector<8x8xf32> to vector<8x8xbf16>
    %cst_284 = arith.constant 0xFF800000 : f32
    %430 = vector.broadcast %cst_284 : f32 to vector<8x1xf32>
    %cst_285 = arith.constant 0.000000e+00 : f32
    %431 = vector.broadcast %cst_285 : f32 to vector<8x1xf32>
    %cst_286 = arith.constant 0.000000e+00 : f32
    %432 = vector.broadcast %cst_286 : f32 to vector<8x8xf32>
    %cst_287 = arith.constant dense<0.000000e+00> : vector<8x8xf32>
    %433 = tpu.matmul %413, %421, %cst_287 {dimension_numbers = #tpu.dot_dimension_numbers<[1], [1], [0], [0], [0, 0, 1, 0], [], []>} : vector<8x8xbf16>, vector<8x8xbf16>, vector<8x8xf32> -> vector<8x8xf32>
    %434 = vector.broadcast %22 : vector<1x8xf32> to vector<8x8xf32>
    %435 = arith.addf %433, %434 : vector<8x8xf32>
    %cst_288 = arith.constant dense<0xFF800000> : vector<8xf32>
    %436 = vector.multi_reduction <maximumf>, %435, %cst_288 [1] : vector<8x8xf32> to vector<8xf32>
    %437 = vector.shape_cast %436 : vector<8xf32> to vector<8x1xf32>
    %438 = arith.maximumf %430, %437 : vector<8x1xf32>
    %439 = arith.subf %430, %438 : vector<8x1xf32>
    %440 = math.exp %439 : vector<8x1xf32>
    %441 = vector.broadcast %438 : vector<8x1xf32> to vector<8x8xf32>
    %442 = arith.subf %435, %441 : vector<8x8xf32>
    %443 = math.exp %442 : vector<8x8xf32>
    %444 = arith.mulf %440, %431 : vector<8x1xf32>
    %cst_289 = arith.constant dense<0.000000e+00> : vector<8xf32>
    %445 = vector.multi_reduction <add>, %443, %cst_289 [1] : vector<8x8xf32> to vector<8xf32>
    %446 = vector.shape_cast %445 : vector<8xf32> to vector<8x1xf32>
    %447 = arith.addf %444, %446 : vector<8x1xf32>
    %448 = vector.broadcast %440 : vector<8x1xf32> to vector<8x8xf32>
    %449 = arith.mulf %448, %432 : vector<8x8xf32>
    %450 = arith.truncf %443 : vector<8x8xf32> to vector<8x8xbf16>
    %cst_290 = arith.constant dense<0.000000e+00> : vector<8x8xf32>
    %451 = tpu.matmul %450, %429, %cst_290 {dimension_numbers = #tpu.dot_dimension_numbers<[1], [0], [0], [1], [0, 0, 1, 1], [], []>} : vector<8x8xbf16>, vector<8x8xbf16>, vector<8x8xf32> -> vector<8x8xf32>
    %452 = arith.addf %449, %451 : vector<8x8xf32>
    %453 = tpu.reciprocal %447 {approx = true} : vector<8x1xf32> -> vector<8x1xf32>
    %454 = vector.broadcast %453 : vector<8x1xf32> to vector<8x8xf32>
    %455 = arith.mulf %452, %454 : vector<8x8xf32>
    %456 = arith.truncf %455 : vector<8x8xf32> to vector<8x8xbf16>
    %c2_291 = arith.constant 2 : index
    %c0_292 = arith.constant 0 : index
    %c0_293 = arith.constant 0 : index
    %457 = vector.load %arg17[%c2_291, %c0_292, %c0_293] : memref<4x8x32xbf16, #tpu.memory_space<vmem>>, vector<1x8x32xbf16>
    %458 = vector.shape_cast %457 : vector<1x8x32xbf16> to vector<8x32xbf16>
    %cst_294 = arith.constant dense<0.000000e+00> : vector<8x32xf32>
    %459 = tpu.matmul %456, %458, %cst_294 {dimension_numbers = #tpu.dot_dimension_numbers<[1], [0], [0], [1], [0, 0, 1, 1], [], []>} : vector<8x8xbf16>, vector<8x32xbf16>, vector<8x32xf32> -> vector<8x32xf32>
    %460 = arith.addf %405, %459 : vector<8x32xf32>
    %c3_295 = arith.constant 3 : index
    %c0_296 = arith.constant 0 : index
    %c0_297 = arith.constant 0 : index
    %461 = vector.load %arg13[%c3_295, %c0_296, %c0_297] : memref<4x32x8xbf16, #tpu.memory_space<vmem>>, vector<1x32x8xbf16>
    %462 = vector.shape_cast %461 : vector<1x32x8xbf16> to vector<32x8xbf16>
    %c3_298 = arith.constant 3 : index
    %c0_299 = arith.constant 0 : index
    %c0_300 = arith.constant 0 : index
    %463 = vector.load %arg14[%c3_298, %c0_299, %c0_300] : memref<4x1x8xf32, #tpu.memory_space<vmem>>, vector<1x1x8xf32>
    %464 = vector.shape_cast %463 : vector<1x1x8xf32> to vector<1x8xf32>
    %cst_301 = arith.constant dense<0.000000e+00> : vector<8x8xf32>
    %465 = tpu.matmul %293, %462, %cst_301 {dimension_numbers = #tpu.dot_dimension_numbers<[1], [0], [0], [1], [0, 0, 1, 1], [], []>} : vector<8x32xbf16>, vector<32x8xbf16>, vector<8x8xf32> -> vector<8x8xf32>
    %466 = vector.broadcast %464 : vector<1x8xf32> to vector<8x8xf32>
    %467 = arith.addf %465, %466 : vector<8x8xf32>
    %468 = arith.truncf %467 : vector<8x8xf32> to vector<8x8xbf16>
    %c0_302 = arith.constant 0 : index
    %c3_303 = arith.constant 3 : index
    %c0_304 = arith.constant 0 : index
    %c0_305 = arith.constant 0 : index
    %469 = vector.load %arg15[%c0_302, %c3_303, %c0_304, %c0_305] : memref<2x4x32x8xbf16, #tpu.memory_space<vmem>>, vector<1x1x32x8xbf16>
    %470 = vector.shape_cast %469 : vector<1x1x32x8xbf16> to vector<32x8xbf16>
    %c0_306 = arith.constant 0 : index
    %c3_307 = arith.constant 3 : index
    %c0_308 = arith.constant 0 : index
    %c0_309 = arith.constant 0 : index
    %471 = vector.load %arg16[%c0_306, %c3_307, %c0_308, %c0_309] : memref<2x4x1x8xf32, #tpu.memory_space<vmem>>, vector<1x1x1x8xf32>
    %472 = vector.shape_cast %471 : vector<1x1x1x8xf32> to vector<1x8xf32>
    %cst_310 = arith.constant dense<0.000000e+00> : vector<8x8xf32>
    %473 = tpu.matmul %294, %470, %cst_310 {dimension_numbers = #tpu.dot_dimension_numbers<[1], [0], [0], [1], [0, 0, 1, 1], [], []>} : vector<8x32xbf16>, vector<32x8xbf16>, vector<8x8xf32> -> vector<8x8xf32>
    %474 = vector.broadcast %472 : vector<1x8xf32> to vector<8x8xf32>
    %475 = arith.addf %473, %474 : vector<8x8xf32>
    %476 = arith.truncf %475 : vector<8x8xf32> to vector<8x8xbf16>
    %c1_311 = arith.constant 1 : index
    %c3_312 = arith.constant 3 : index
    %c0_313 = arith.constant 0 : index
    %c0_314 = arith.constant 0 : index
    %477 = vector.load %arg15[%c1_311, %c3_312, %c0_313, %c0_314] : memref<2x4x32x8xbf16, #tpu.memory_space<vmem>>, vector<1x1x32x8xbf16>
    %478 = vector.shape_cast %477 : vector<1x1x32x8xbf16> to vector<32x8xbf16>
    %c1_315 = arith.constant 1 : index
    %c3_316 = arith.constant 3 : index
    %c0_317 = arith.constant 0 : index
    %c0_318 = arith.constant 0 : index
    %479 = vector.load %arg16[%c1_315, %c3_316, %c0_317, %c0_318] : memref<2x4x1x8xf32, #tpu.memory_space<vmem>>, vector<1x1x1x8xf32>
    %480 = vector.shape_cast %479 : vector<1x1x1x8xf32> to vector<1x8xf32>
    %cst_319 = arith.constant dense<0.000000e+00> : vector<8x8xf32>
    %481 = tpu.matmul %294, %478, %cst_319 {dimension_numbers = #tpu.dot_dimension_numbers<[1], [0], [0], [1], [0, 0, 1, 1], [], []>} : vector<8x32xbf16>, vector<32x8xbf16>, vector<8x8xf32> -> vector<8x8xf32>
    %482 = vector.broadcast %480 : vector<1x8xf32> to vector<8x8xf32>
    %483 = arith.addf %481, %482 : vector<8x8xf32>
    %484 = arith.truncf %483 : vector<8x8xf32> to vector<8x8xbf16>
    %cst_320 = arith.constant 0xFF800000 : f32
    %485 = vector.broadcast %cst_320 : f32 to vector<8x1xf32>
    %cst_321 = arith.constant 0.000000e+00 : f32
    %486 = vector.broadcast %cst_321 : f32 to vector<8x1xf32>
    %cst_322 = arith.constant 0.000000e+00 : f32
    %487 = vector.broadcast %cst_322 : f32 to vector<8x8xf32>
    %cst_323 = arith.constant dense<0.000000e+00> : vector<8x8xf32>
    %488 = tpu.matmul %468, %476, %cst_323 {dimension_numbers = #tpu.dot_dimension_numbers<[1], [1], [0], [0], [0, 0, 1, 0], [], []>} : vector<8x8xbf16>, vector<8x8xbf16>, vector<8x8xf32> -> vector<8x8xf32>
    %489 = vector.broadcast %22 : vector<1x8xf32> to vector<8x8xf32>
    %490 = arith.addf %488, %489 : vector<8x8xf32>
    %cst_324 = arith.constant dense<0xFF800000> : vector<8xf32>
    %491 = vector.multi_reduction <maximumf>, %490, %cst_324 [1] : vector<8x8xf32> to vector<8xf32>
    %492 = vector.shape_cast %491 : vector<8xf32> to vector<8x1xf32>
    %493 = arith.maximumf %485, %492 : vector<8x1xf32>
    %494 = arith.subf %485, %493 : vector<8x1xf32>
    %495 = math.exp %494 : vector<8x1xf32>
    %496 = vector.broadcast %493 : vector<8x1xf32> to vector<8x8xf32>
    %497 = arith.subf %490, %496 : vector<8x8xf32>
    %498 = math.exp %497 : vector<8x8xf32>
    %499 = arith.mulf %495, %486 : vector<8x1xf32>
    %cst_325 = arith.constant dense<0.000000e+00> : vector<8xf32>
    %500 = vector.multi_reduction <add>, %498, %cst_325 [1] : vector<8x8xf32> to vector<8xf32>
    %501 = vector.shape_cast %500 : vector<8xf32> to vector<8x1xf32>
    %502 = arith.addf %499, %501 : vector<8x1xf32>
    %503 = vector.broadcast %495 : vector<8x1xf32> to vector<8x8xf32>
    %504 = arith.mulf %503, %487 : vector<8x8xf32>
    %505 = arith.truncf %498 : vector<8x8xf32> to vector<8x8xbf16>
    %cst_326 = arith.constant dense<0.000000e+00> : vector<8x8xf32>
    %506 = tpu.matmul %505, %484, %cst_326 {dimension_numbers = #tpu.dot_dimension_numbers<[1], [0], [0], [1], [0, 0, 1, 1], [], []>} : vector<8x8xbf16>, vector<8x8xbf16>, vector<8x8xf32> -> vector<8x8xf32>
    %507 = arith.addf %504, %506 : vector<8x8xf32>
    %508 = tpu.reciprocal %502 {approx = true} : vector<8x1xf32> -> vector<8x1xf32>
    %509 = vector.broadcast %508 : vector<8x1xf32> to vector<8x8xf32>
    %510 = arith.mulf %507, %509 : vector<8x8xf32>
    %511 = arith.truncf %510 : vector<8x8xf32> to vector<8x8xbf16>
    %c3_327 = arith.constant 3 : index
    %c0_328 = arith.constant 0 : index
    %c0_329 = arith.constant 0 : index
    %512 = vector.load %arg17[%c3_327, %c0_328, %c0_329] : memref<4x8x32xbf16, #tpu.memory_space<vmem>>, vector<1x8x32xbf16>
    %513 = vector.shape_cast %512 : vector<1x8x32xbf16> to vector<8x32xbf16>
    %cst_330 = arith.constant dense<0.000000e+00> : vector<8x32xf32>
    %514 = tpu.matmul %511, %513, %cst_330 {dimension_numbers = #tpu.dot_dimension_numbers<[1], [0], [0], [1], [0, 0, 1, 1], [], []>} : vector<8x8xbf16>, vector<8x32xbf16>, vector<8x32xf32> -> vector<8x32xf32>
    %515 = arith.addf %460, %514 : vector<8x32xf32>
    %516 = arith.addf %268, %515 : vector<8x32xf32>
    %c0_331 = arith.constant 0 : index
    %c0_332 = arith.constant 0 : index
    %517 = vector.load %arg18[%c0_331, %c0_332] : memref<1x32xf32, #tpu.memory_space<vmem>>, vector<1x32xf32>
    %518 = vector.broadcast %517 : vector<1x32xf32> to vector<8x32xf32>
    %519 = arith.addf %516, %518 : vector<8x32xf32>
    %c0_333 = arith.constant 0 : index
    %c0_334 = arith.constant 0 : index
    %520 = vector.load %arg19[%c0_333, %c0_334] : memref<1x32xf32, #tpu.memory_space<vmem>>, vector<1x32xf32>
    %c0_335 = arith.constant 0 : index
    %c0_336 = arith.constant 0 : index
    %521 = vector.load %arg20[%c0_335, %c0_336] : memref<1x32xf32, #tpu.memory_space<vmem>>, vector<1x32xf32>
    %cst_337 = arith.constant dense<0.000000e+00> : vector<8xf32>
    %522 = vector.multi_reduction <add>, %519, %cst_337 [1] : vector<8x32xf32> to vector<8xf32>
    %523 = vector.shape_cast %522 : vector<8xf32> to vector<8x1xf32>
    %cst_338 = arith.constant 3.200000e+01 : f32
    %524 = vector.broadcast %cst_338 : f32 to vector<8x1xf32>
    %525 = arith.divf %523, %524 : vector<8x1xf32>
    %526 = vector.broadcast %525 : vector<8x1xf32> to vector<8x32xf32>
    %527 = arith.subf %519, %526 : vector<8x32xf32>
    %528 = arith.mulf %527, %527 : vector<8x32xf32>
    %cst_339 = arith.constant dense<0.000000e+00> : vector<8xf32>
    %529 = vector.multi_reduction <add>, %528, %cst_339 [1] : vector<8x32xf32> to vector<8xf32>
    %530 = vector.shape_cast %529 : vector<8xf32> to vector<8x1xf32>
    %cst_340 = arith.constant 3.200000e+01 : f32
    %531 = vector.broadcast %cst_340 : f32 to vector<8x1xf32>
    %532 = arith.divf %530, %531 : vector<8x1xf32>
    %533 = vector.broadcast %525 : vector<8x1xf32> to vector<8x32xf32>
    %534 = arith.subf %519, %533 : vector<8x32xf32>
    %cst_341 = arith.constant 9.99999974E-6 : f32
    %535 = vector.broadcast %cst_341 : f32 to vector<8x1xf32>
    %536 = arith.addf %532, %535 : vector<8x1xf32>
    %537 = math.rsqrt %536 : vector<8x1xf32>
    %538 = vector.broadcast %537 : vector<8x1xf32> to vector<8x32xf32>
    %539 = arith.mulf %534, %538 : vector<8x32xf32>
    %540 = vector.broadcast %520 : vector<1x32xf32> to vector<8x32xf32>
    %541 = arith.mulf %539, %540 : vector<8x32xf32>
    %542 = vector.broadcast %521 : vector<1x32xf32> to vector<8x32xf32>
    %543 = arith.addf %541, %542 : vector<8x32xf32>
    %544 = arith.truncf %543 : vector<8x32xf32> to vector<8x32xbf16>
    %c0_342 = arith.constant 0 : index
    %c0_343 = arith.constant 0 : index
    %545 = vector.load %arg21[%c0_342, %c0_343] : memref<32x64xbf16, #tpu.memory_space<vmem>>, vector<32x64xbf16>
    %cst_344 = arith.constant dense<0.000000e+00> : vector<8x64xf32>
    %546 = tpu.matmul %544, %545, %cst_344 {dimension_numbers = #tpu.dot_dimension_numbers<[1], [0], [0], [1], [0, 0, 1, 1], [], []>} : vector<8x32xbf16>, vector<32x64xbf16>, vector<8x64xf32> -> vector<8x64xf32>
    %c0_345 = arith.constant 0 : index
    %c0_346 = arith.constant 0 : index
    %547 = vector.load %arg22[%c0_345, %c0_346] : memref<1x64xf32, #tpu.memory_space<vmem>>, vector<1x64xf32>
    %548 = vector.broadcast %547 : vector<1x64xf32> to vector<8x64xf32>
    %549 = arith.addf %546, %548 : vector<8x64xf32>
    %cst_347 = arith.constant 0.000000e+00 : f32
    %550 = vector.broadcast %cst_347 : f32 to vector<8x64xf32>
    %551 = arith.maximumf %549, %550 : vector<8x64xf32>
    %552 = arith.truncf %551 : vector<8x64xf32> to vector<8x64xbf16>
    %c0_348 = arith.constant 0 : index
    %c0_349 = arith.constant 0 : index
    %553 = vector.load %arg23[%c0_348, %c0_349] : memref<64x32xbf16, #tpu.memory_space<vmem>>, vector<64x32xbf16>
    %cst_350 = arith.constant dense<0.000000e+00> : vector<8x32xf32>
    %554 = tpu.matmul %552, %553, %cst_350 {dimension_numbers = #tpu.dot_dimension_numbers<[1], [0], [0], [1], [0, 0, 1, 1], [], []>} : vector<8x64xbf16>, vector<64x32xbf16>, vector<8x32xf32> -> vector<8x32xf32>
    %c0_351 = arith.constant 0 : index
    %c0_352 = arith.constant 0 : index
    %555 = vector.load %arg24[%c0_351, %c0_352] : memref<1x32xf32, #tpu.memory_space<vmem>>, vector<1x32xf32>
    %556 = vector.broadcast %555 : vector<1x32xf32> to vector<8x32xf32>
    %557 = arith.addf %554, %556 : vector<8x32xf32>
    %558 = arith.addf %519, %557 : vector<8x32xf32>
    %c0_353 = arith.constant 0 : index
    %c0_354 = arith.constant 0 : index
    %c0_355 = arith.constant 0 : index
    %559 = vector.load %arg25[%c0_353, %c0_354, %c0_355] : memref<1x8x32xf32, #tpu.memory_space<vmem>>, vector<1x8x32xf32>
    %560 = vector.shape_cast %559 : vector<1x8x32xf32> to vector<8x32xf32>
    %561 = vector.shape_cast %558 : vector<8x32xf32> to vector<1x8x32xf32>
    tpu.vector_store %arg25[%c0_353, %c0_354, %c0_355], %561 {strides = array<i32>} : memref<1x8x32xf32, #tpu.memory_space<vmem>>, vector<1x8x32xf32>,
    return
  }
  func.func @transform_0(%arg0: i32) -> (i32, i32, i32) {
    %c0_i32 = arith.constant 0 : i32
    %c0_i32_0 = arith.constant 0 : i32
    %c0_i32_1 = arith.constant 0 : i32
    return %arg0, %c0_i32, %c0_i32_0 : i32, i32, i32
  }
  func.func @transform_1(%arg0: i32) -> (i32, i32, i32) {
    %c0_i32 = arith.constant 0 : i32
    %c0_i32_0 = arith.constant 0 : i32
    %c0_i32_1 = arith.constant 0 : i32
    return %arg0, %c0_i32, %c0_i32_0 : i32, i32, i32
  }
  func.func @transform_2(%arg0: i32) -> (i32, i32, i32) {
    %c0_i32 = arith.constant 0 : i32
    %c0_i32_0 = arith.constant 0 : i32
    %c0_i32_1 = arith.constant 0 : i32
    return %arg0, %c0_i32, %c0_i32_0 : i32, i32, i32
  }
  func.func @transform_3(%arg0: i32) -> (i32, i32, i32) {
    %c0_i32 = arith.constant 0 : i32
    %c0_i32_0 = arith.constant 0 : i32
    %c0_i32_1 = arith.constant 0 : i32
    return %arg0, %c0_i32, %c0_i32_0 : i32, i32, i32
  }
  func.func @transform_4(%arg0: i32) -> (i32, i32) {
    %c0_i32 = arith.constant 0 : i32
    %c0_i32_0 = arith.constant 0 : i32
    %c0_i32_1 = arith.constant 0 : i32
    return %c0_i32, %c0_i32_0 : i32, i32
  }
  func.func @transform_5(%arg0: i32) -> (i32, i32) {
    %c0_i32 = arith.constant 0 : i32
    %c0_i32_0 = arith.constant 0 : i32
    %c0_i32_1 = arith.constant 0 : i32
    return %c0_i32, %c0_i32_0 : i32, i32
  }
  func.func @transform_6(%arg0: i32) -> (i32, i32, i32, i32) {
    %c0_i32 = arith.constant 0 : i32
    %c0_i32_0 = arith.constant 0 : i32
    %c0_i32_1 = arith.constant 0 : i32
    %c0_i32_2 = arith.constant 0 : i32
    %c0_i32_3 = arith.constant 0 : i32
    return %c0_i32, %c0_i32_0, %c0_i32_1, %c0_i32_2 : i32, i32, i32, i32
  }
  func.func @transform_7(%arg0: i32) -> (i32, i32, i32, i32) {
    %c0_i32 = arith.constant 0 : i32
    %c0_i32_0 = arith.constant 0 : i32
    %c0_i32_1 = arith.constant 0 : i32
    %c0_i32_2 = arith.constant 0 : i32
    %c0_i32_3 = arith.constant 0 : i32
    return %c0_i32, %c0_i32_0, %c0_i32_1, %c0_i32_2 : i32, i32, i32, i32
  }
  func.func @transform_8(%arg0: i32) -> (i32, i32, i32) {
    %c0_i32 = arith.constant 0 : i32
    %c0_i32_0 = arith.constant 0 : i32
    %c0_i32_1 = arith.constant 0 : i32
    %c0_i32_2 = arith.constant 0 : i32
    return %c0_i32, %c0_i32_0, %c0_i32_1 : i32, i32, i32
  }
  func.func @transform_9(%arg0: i32) -> (i32, i32) {
    %c0_i32 = arith.constant 0 : i32
    %c0_i32_0 = arith.constant 0 : i32
    %c0_i32_1 = arith.constant 0 : i32
    return %c0_i32, %c0_i32_0 : i32, i32
  }
  func.func @transform_10(%arg0: i32) -> (i32, i32) {
    %c0_i32 = arith.constant 0 : i32
    %c0_i32_0 = arith.constant 0 : i32
    %c0_i32_1 = arith.constant 0 : i32
    return %c0_i32, %c0_i32_0 : i32, i32
  }
  func.func @transform_11(%arg0: i32) -> (i32, i32) {
    %c0_i32 = arith.constant 0 : i32
    %c0_i32_0 = arith.constant 0 : i32
    %c0_i32_1 = arith.constant 0 : i32
    return %c0_i32, %c0_i32_0 : i32, i32
  }
  func.func @transform_12(%arg0: i32) -> (i32, i32, i32) {
    %c0_i32 = arith.constant 0 : i32
    %c0_i32_0 = arith.constant 0 : i32
    %c0_i32_1 = arith.constant 0 : i32
    %c0_i32_2 = arith.constant 0 : i32
    return %c0_i32, %c0_i32_0, %c0_i32_1 : i32, i32, i32
  }
  func.func @transform_13(%arg0: i32) -> (i32, i32, i32) {
    %c0_i32 = arith.constant 0 : i32
    %c0_i32_0 = arith.constant 0 : i32
    %c0_i32_1 = arith.constant 0 : i32
    %c0_i32_2 = arith.constant 0 : i32
    return %c0_i32, %c0_i32_0, %c0_i32_1 : i32, i32, i32
  }
  func.func @transform_14(%arg0: i32) -> (i32, i32, i32, i32) {
    %c0_i32 = arith.constant 0 : i32
    %c0_i32_0 = arith.constant 0 : i32
    %c0_i32_1 = arith.constant 0 : i32
    %c0_i32_2 = arith.constant 0 : i32
    %c0_i32_3 = arith.constant 0 : i32
    return %c0_i32, %c0_i32_0, %c0_i32_1, %c0_i32_2 : i32, i32, i32, i32
  }
  func.func @transform_15(%arg0: i32) -> (i32, i32, i32, i32) {
    %c0_i32 = arith.constant 0 : i32
    %c0_i32_0 = arith.constant 0 : i32
    %c0_i32_1 = arith.constant 0 : i32
    %c0_i32_2 = arith.constant 0 : i32
    %c0_i32_3 = arith.constant 0 : i32
    return %c0_i32, %c0_i32_0, %c0_i32_1, %c0_i32_2 : i32, i32, i32, i32
  }
  func.func @transform_16(%arg0: i32) -> (i32, i32, i32) {
    %c0_i32 = arith.constant 0 : i32
    %c0_i32_0 = arith.constant 0 : i32
    %c0_i32_1 = arith.constant 0 : i32
    %c0_i32_2 = arith.constant 0 : i32
    return %c0_i32, %c0_i32_0, %c0_i32_1 : i32, i32, i32
  }
  func.func @transform_17(%arg0: i32) -> (i32, i32) {
    %c0_i32 = arith.constant 0 : i32
    %c0_i32_0 = arith.constant 0 : i32
    %c0_i32_1 = arith.constant 0 : i32
    return %c0_i32, %c0_i32_0 : i32, i32
  }
  func.func @transform_18(%arg0: i32) -> (i32, i32) {
    %c0_i32 = arith.constant 0 : i32
    %c0_i32_0 = arith.constant 0 : i32
    %c0_i32_1 = arith.constant 0 : i32
    return %c0_i32, %c0_i32_0 : i32, i32
  }
  func.func @transform_19(%arg0: i32) -> (i32, i32) {
    %c0_i32 = arith.constant 0 : i32
    %c0_i32_0 = arith.constant 0 : i32
    %c0_i32_1 = arith.constant 0 : i32
    return %c0_i32, %c0_i32_0 : i32, i32
  }
  func.func @transform_20(%arg0: i32) -> (i32, i32) {
    %c0_i32 = arith.constant 0 : i32
    %c0_i32_0 = arith.constant 0 : i32
    %c0_i32_1 = arith.constant 0 : i32
    return %c0_i32, %c0_i32_0 : i32, i32
  }
  func.func @transform_21(%arg0: i32) -> (i32, i32) {
    %c0_i32 = arith.constant 0 : i32
    %c0_i32_0 = arith.constant 0 : i32
    %c0_i32_1 = arith.constant 0 : i32
    return %c0_i32, %c0_i32_0 : i32, i32
  }
  func.func @transform_22(%arg0: i32) -> (i32, i32) {
    %c0_i32 = arith.constant 0 : i32
    %c0_i32_0 = arith.constant 0 : i32
    %c0_i32_1 = arith.constant 0 : i32
    return %c0_i32, %c0_i32_0 : i32, i32
  }
  func.func @transform_23(%arg0: i32) -> (i32, i32) {
    %c0_i32 = arith.constant 0 : i32
    %c0_i32_0 = arith.constant 0 : i32
    %c0_i32_1 = arith.constant 0 : i32
    return %c0_i32, %c0_i32_0 : i32, i32
  }
  func.func @transform_24(%arg0: i32) -> (i32, i32, i32) {
    %c0_i32 = arith.constant 0 : i32
    %c0_i32_0 = arith.constant 0 : i32
    %c0_i32_1 = arith.constant 0 : i32
    return %arg0, %c0_i32, %c0_i32_0 : i32, i32, i32
  }
}

</mosaic_0001>

<llo_original>
// kernel: tpu_custom_call.1
$region0: #{tpu_custom_call.1}
  #allocation0 [shape = 'u32[]', space=smem, size = 0x4, offset = 0x4, fixed_abs, tag = 'smem constant byte address 0x4 - core index']
  #allocation1 [shape = 'u32[144,128]{1,0:T(1,128)}', space=vmem, size = 0x12000, scoped, tag = 'internal scratch']
  %s0 = inlined_call_operand.vmem [shape: f32[2,8,32], index: 0, kind: input, shape index: {}]
  %s1 = inlined_call_operand.vmem [shape: f32[2,8,32], index: 1, kind: input, shape index: {}]
  %s2 = inlined_call_operand.vmem [shape: f32[2,1,8], index: 2, kind: input, shape index: {}]
  %s3 = inlined_call_operand.vmem [shape: f32[2,1,8], index: 3, kind: input, shape index: {}]
  %s4 = inlined_call_operand.vmem [shape: f32[1,32], index: 4, kind: input, shape index: {}]
  %s5 = inlined_call_operand.vmem [shape: f32[1,32], index: 5, kind: input, shape index: {}]
  %s6 = inlined_call_operand.vmem [shape: bf16[3,4,32,8], index: 6, kind: input, shape index: {}]
  %s7 = inlined_call_operand.vmem [shape: f32[3,4,1,8], index: 7, kind: input, shape index: {}]
  %s8 = inlined_call_operand.vmem [shape: bf16[4,8,32], index: 8, kind: input, shape index: {}]
  %s9 = inlined_call_operand.vmem [shape: f32[1,32], index: 9, kind: input, shape index: {}]
  %s10 = inlined_call_operand.vmem [shape: f32[1,32], index: 10, kind: input, shape index: {}]
  %s11 = inlined_call_operand.vmem [shape: f32[1,32], index: 11, kind: input, shape index: {}]
  %s12 = inlined_call_operand.vmem [shape: bf16[4,32,8], index: 12, kind: input, shape index: {}]
  %s13 = inlined_call_operand.vmem [shape: f32[4,1,8], index: 13, kind: input, shape index: {}]
  %s14 = inlined_call_operand.vmem [shape: bf16[2,4,32,8], index: 14, kind: input, shape index: {}]
  %s15 = inlined_call_operand.vmem [shape: f32[2,4,1,8], index: 15, kind: input, shape index: {}]
  %s16 = inlined_call_operand.vmem [shape: bf16[4,8,32], index: 16, kind: input, shape index: {}]
  %s17 = inlined_call_operand.vmem [shape: f32[1,32], index: 17, kind: input, shape index: {}]
  %s18 = inlined_call_operand.vmem [shape: f32[1,32], index: 18, kind: input, shape index: {}]
  %s19 = inlined_call_operand.vmem [shape: f32[1,32], index: 19, kind: input, shape index: {}]
  %s20 = inlined_call_operand.vmem [shape: bf16[32,64], index: 20, kind: input, shape index: {}]
  %s21 = inlined_call_operand.vmem [shape: f32[1,64], index: 21, kind: input, shape index: {}]
  %s22 = inlined_call_operand.vmem [shape: bf16[64,32], index: 22, kind: input, shape index: {}]
  %s23 = inlined_call_operand.vmem [shape: f32[1,32], index: 23, kind: input, shape index: {}]
  %s24 = inlined_call_operand.hbm [shape: f32[2,8,32], index: 24, kind: output, shape index: {}]
  %s25 = sld [smem:[#allocation0]]
  $region129: #{tpu_custom_call.1} parent=0
    _
  %s27 = ssub.s32 1, %s25
  %s28 = scalar_select 0, %s27, %s25
  $region1: #{tpu_custom_call.1} parent=0
    #allocation2 [shape = 'u8[8192]{0}', space=vmem, size = 0x2000, scoped, tag = 'output window, operand 0']
    #allocation3 [shape = 's32[2]{0}', space=sflag, size = 0x8, scoped, tag = 'scoped memory for tpu_custom_call.1']
    %29 = vsyncpa [#allocation3], 0
    %s30 = scalar_lea.sflag [#allocation3], 1
    %31 = vsyncpa %s30, 0
    loop: start=0, step=1, limit=4
    $region2: #{tpu_custom_call.1} parent=1 // loop_pre_header
      _
    $region3: #{tpu_custom_call.1} parent=1 // loop_header
      %s33 = sphi 0, %s37
      %p34 = scmp.ge.s32.totalorder %s33, 4
      %s43 = sphi 0, %s45
      %s46 = sphi 0, %s43
      %s47 = sphi 0, %s46
      %s63 = sphi 0, %s47
      %s69 = sphi 0, %s71
      %s72 = sphi 0, %s69
      %s73 = sphi 0, %s72
      %s89 = sphi 0, %s73
      %s95 = sphi 0, %s97
      %s98 = sphi 0, %s95
      %s99 = sphi 0, %s98
      %s115 = sphi 0, %s99
      %s121 = sphi 0, %s123
      %s124 = sphi 0, %s121
      %s125 = sphi 0, %s124
      %s141 = sphi 0, %s125
      %s145 = sphi 0, %s145
      %s147 = sphi 0, %s145
      %s148 = sphi 0, %s147
      %s162 = sphi 0, %s148
      %s166 = sphi 0, %s166
      %s168 = sphi 0, %s166
      %s169 = sphi 0, %s168
      %s183 = sphi 0, %s169
      %s187 = sphi 0, %s187
      %s189 = sphi 0, %s187
      %s190 = sphi 0, %s189
      %s204 = sphi 0, %s190
      %s208 = sphi 0, %s208
      %s210 = sphi 0, %s208
      %s211 = sphi 0, %s210
      %s225 = sphi 0, %s211
      %s229 = sphi 0, %s229
      %s231 = sphi 0, %s229
      %s232 = sphi 0, %s231
      %s246 = sphi 0, %s232
      %s250 = sphi 0, %s250
      %s252 = sphi 0, %s250
      %s253 = sphi 0, %s252
      %s267 = sphi 0, %s253
      %s271 = sphi 0, %s271
      %s273 = sphi 0, %s271
      %s274 = sphi 0, %s273
      %s288 = sphi 0, %s274
      %s292 = sphi 0, %s292
      %s294 = sphi 0, %s292
      %s295 = sphi 0, %s294
      %s309 = sphi 0, %s295
      %s313 = sphi 0, %s313
      %s315 = sphi 0, %s313
      %s316 = sphi 0, %s315
      %s330 = sphi 0, %s316
      %s334 = sphi 0, %s334
      %s336 = sphi 0, %s334
      %s337 = sphi 0, %s336
      %s351 = sphi 0, %s337
      %s355 = sphi 0, %s355
      %s357 = sphi 0, %s355
      %s358 = sphi 0, %s357
      %s372 = sphi 0, %s358
      %s376 = sphi 0, %s376
      %s378 = sphi 0, %s376
      %s379 = sphi 0, %s378
      %s393 = sphi 0, %s379
      %s397 = sphi 0, %s397
      %s399 = sphi 0, %s397
      %s400 = sphi 0, %s399
      %s414 = sphi 0, %s400
      %s418 = sphi 0, %s418
      %s420 = sphi 0, %s418
      %s421 = sphi 0, %s420
      %s435 = sphi 0, %s421
      %s439 = sphi 0, %s439
      %s441 = sphi 0, %s439
      %s442 = sphi 0, %s441
      %s456 = sphi 0, %s442
      %s460 = sphi 0, %s460
      %s462 = sphi 0, %s460
      %s463 = sphi 0, %s462
      %s477 = sphi 0, %s463
      %s481 = sphi 0, %s481
      %s483 = sphi 0, %s481
      %s484 = sphi 0, %s483
      %s498 = sphi 0, %s484
      %s502 = sphi 0, %s502
      %s504 = sphi 0, %s502
      %s505 = sphi 0, %s504
      %s519 = sphi 0, %s505
      %s523 = sphi 0, %s523
      %s525 = sphi 0, %s523
      %s526 = sphi 0, %s525
      %s540 = sphi 0, %s526
      %s544 = sphi 0, %s544
      %s546 = sphi 0, %s544
      %s547 = sphi 0, %s546
      %s561 = sphi 0, %s547
      %s567 = sphi 0, %s569
      %s570 = sphi 0, %s567
      %s571 = sphi 0, %s570
      %s587 = sphi 0, %s571
    $region4: #{tpu_custom_call.1} parent=1 // loop_header_branch
      %36 = sbr.rel (%p34) target = $region8
    $region5: #{tpu_custom_call.1} parent=1 // loop_body
      %s38 = ssub.s32 %s33, 1
      %s39 = ssub.s32 %s33, 2
      %s40 = sadd.s32 %s33, 1
      %s41 = ssub.s32 %s33, %s40
      %p42 = scmp.eq.s32.totalorder %s41, 0
      %s44 = sadd.s32 %s43, 1
      %s45 = scalar_select %p42, %s43, %s44
      %p48 = pneg %p42
      %p49 = scmp.eq.s32.totalorder %s33, 1
      %p50 = por %p48, %p49
      %p51 = scmp.ne.s32.totalorder %s43, %s46
      %p52 = scmp.eq.s32.totalorder %s33, 0
      %p53 = por %p51, %p52
      %p54 = scmp.ne.s32.totalorder %s43, %s46
      %p55 = scmp.eq.s32.totalorder %s38, 1
      %p56 = por %p54, %p55
      %p57 = scmp.ne.s32.totalorder %s46, %s47
      %p58 = scmp.eq.s32.totalorder %s38, 0
      %p59 = por %p57, %p58
      %p60 = scmp.ne.s32.totalorder %s46, %s47
      %p61 = scmp.eq.s32.totalorder %s39, 1
      %p62 = por %p60, %p61
      %p64 = scmp.ne.s32.totalorder %s47, %s63
      %p65 = scmp.eq.s32.totalorder %s39, 0
      %p66 = por %p64, %p65
      %s67 = ssub.s32 %s33, %s40
      %p68 = scmp.eq.s32.totalorder %s67, 0
      %s70 = sadd.s32 %s69, 1
      %s71 = scalar_select %p68, %s69, %s70
      %p74 = pneg %p68
      %p75 = scmp.eq.s32.totalorder %s33, 1
      %p76 = por %p74, %p75
      %p77 = scmp.ne.s32.totalorder %s69, %s72
      %p78 = scmp.eq.s32.totalorder %s33, 0
      %p79 = por %p77, %p78
      %p80 = scmp.ne.s32.totalorder %s69, %s72
      %p81 = scmp.eq.s32.totalorder %s38, 1
      %p82 = por %p80, %p81
      %p83 = scmp.ne.s32.totalorder %s72, %s73
      %p84 = scmp.eq.s32.totalorder %s38, 0
      %p85 = por %p83, %p84
      %p86 = scmp.ne.s32.totalorder %s72, %s73
      %p87 = scmp.eq.s32.totalorder %s39, 1
      %p88 = por %p86, %p87
      %p90 = scmp.ne.s32.totalorder %s73, %s89
      %p91 = scmp.eq.s32.totalorder %s39, 0
      %p92 = por %p90, %p91
      %s93 = ssub.s32 %s33, %s40
      %p94 = scmp.eq.s32.totalorder %s93, 0
      %s96 = sadd.s32 %s95, 1
      %s97 = scalar_select %p94, %s95, %s96
      %p100 = pneg %p94
      %p101 = scmp.eq.s32.totalorder %s33, 1
      %p102 = por %p100, %p101
      %p103 = scmp.ne.s32.totalorder %s95, %s98
      %p104 = scmp.eq.s32.totalorder %s33, 0
      %p105 = por %p103, %p104
      %p106 = scmp.ne.s32.totalorder %s95, %s98
      %p107 = scmp.eq.s32.totalorder %s38, 1
      %p108 = por %p106, %p107
      %p109 = scmp.ne.s32.totalorder %s98, %s99
      %p110 = scmp.eq.s32.totalorder %s38, 0
      %p111 = por %p109, %p110
      %p112 = scmp.ne.s32.totalorder %s98, %s99
      %p113 = scmp.eq.s32.totalorder %s39, 1
      %p114 = por %p112, %p113
      %p116 = scmp.ne.s32.totalorder %s99, %s115
      %p117 = scmp.eq.s32.totalorder %s39, 0
      %p118 = por %p116, %p117
      %s119 = ssub.s32 %s33, %s40
      %p120 = scmp.eq.s32.totalorder %s119, 0
      %s122 = sadd.s32 %s121, 1
      %s123 = scalar_select %p120, %s121, %s122
      %p126 = pneg %p120
      %p127 = scmp.eq.s32.totalorder %s33, 1
      %p128 = por %p126, %p127
      %p129 = scmp.ne.s32.totalorder %s121, %s124
      %p130 = scmp.eq.s32.totalorder %s33, 0
      %p131 = por %p129, %p130
      %p132 = scmp.ne.s32.totalorder %s121, %s124
      %p133 = scmp.eq.s32.totalorder %s38, 1
      %p134 = por %p132, %p133
      %p135 = scmp.ne.s32.totalorder %s124, %s125
      %p136 = scmp.eq.s32.totalorder %s38, 0
      %p137 = por %p135, %p136
      %p138 = scmp.ne.s32.totalorder %s124, %s125
      %p139 = scmp.eq.s32.totalorder %s39, 1
      %p140 = por %p138, %p139
      %p142 = scmp.ne.s32.totalorder %s125, %s141
      %p143 = scmp.eq.s32.totalorder %s39, 0
      %p144 = por %p142, %p143
      %s146 = sadd.s32 %s145, 1
      %p149 = scmp.eq.s32.totalorder %s33, 1
      %p150 = scmp.ne.s32.totalorder %s145, %s147
      %p151 = scmp.eq.s32.totalorder %s33, 0
      %p152 = por %p150, %p151
      %p153 = scmp.ne.s32.totalorder %s145, %s147
      %p154 = scmp.eq.s32.totalorder %s38, 1
      %p155 = por %p153, %p154
      %p156 = scmp.ne.s32.totalorder %s147, %s148
      %p157 = scmp.eq.s32.totalorder %s38, 0
      %p158 = por %p156, %p157
      %p159 = scmp.ne.s32.totalorder %s147, %s148
      %p160 = scmp.eq.s32.totalorder %s39, 1
      %p161 = por %p159, %p160
      %p163 = scmp.ne.s32.totalorder %s148, %s162
      %p164 = scmp.eq.s32.totalorder %s39, 0
      %p165 = por %p163, %p164
      %s167 = sadd.s32 %s166, 1
      %p170 = scmp.eq.s32.totalorder %s33, 1
      %p171 = scmp.ne.s32.totalorder %s166, %s168
      %p172 = scmp.eq.s32.totalorder %s33, 0
      %p173 = por %p171, %p172
      %p174 = scmp.ne.s32.totalorder %s166, %s168
      %p175 = scmp.eq.s32.totalorder %s38, 1
      %p176 = por %p174, %p175
      %p177 = scmp.ne.s32.totalorder %s168, %s169
      %p178 = scmp.eq.s32.totalorder %s38, 0
      %p179 = por %p177, %p178
      %p180 = scmp.ne.s32.totalorder %s168, %s169
      %p181 = scmp.eq.s32.totalorder %s39, 1
      %p182 = por %p180, %p181
      %p184 = scmp.ne.s32.totalorder %s169, %s183
      %p185 = scmp.eq.s32.totalorder %s39, 0
      %p186 = por %p184, %p185
      %s188 = sadd.s32 %s187, 1
      %p191 = scmp.eq.s32.totalorder %s33, 1
      %p192 = scmp.ne.s32.totalorder %s187, %s189
      %p193 = scmp.eq.s32.totalorder %s33, 0
      %p194 = por %p192, %p193
      %p195 = scmp.ne.s32.totalorder %s187, %s189
      %p196 = scmp.eq.s32.totalorder %s38, 1
      %p197 = por %p195, %p196
      %p198 = scmp.ne.s32.totalorder %s189, %s190
      %p199 = scmp.eq.s32.totalorder %s38, 0
      %p200 = por %p198, %p199
      %p201 = scmp.ne.s32.totalorder %s189, %s190
      %p202 = scmp.eq.s32.totalorder %s39, 1
      %p203 = por %p201, %p202
      %p205 = scmp.ne.s32.totalorder %s190, %s204
      %p206 = scmp.eq.s32.totalorder %s39, 0
      %p207 = por %p205, %p206
      %s209 = sadd.s32 %s208, 1
      %p212 = scmp.eq.s32.totalorder %s33, 1
      %p213 = scmp.ne.s32.totalorder %s208, %s210
      %p214 = scmp.eq.s32.totalorder %s33, 0
      %p215 = por %p213, %p214
      %p216 = scmp.ne.s32.totalorder %s208, %s210
      %p217 = scmp.eq.s32.totalorder %s38, 1
      %p218 = por %p216, %p217
      %p219 = scmp.ne.s32.totalorder %s210, %s211
      %p220 = scmp.eq.s32.totalorder %s38, 0
      %p221 = por %p219, %p220
      %p222 = scmp.ne.s32.totalorder %s210, %s211
      %p223 = scmp.eq.s32.totalorder %s39, 1
      %p224 = por %p222, %p223
      %p226 = scmp.ne.s32.totalorder %s211, %s225
      %p227 = scmp.eq.s32.totalorder %s39, 0
      %p228 = por %p226, %p227
      %s230 = sadd.s32 %s229, 1
      %p233 = scmp.eq.s32.totalorder %s33, 1
      %p234 = scmp.ne.s32.totalorder %s229, %s231
      %p235 = scmp.eq.s32.totalorder %s33, 0
      %p236 = por %p234, %p235
      %p237 = scmp.ne.s32.totalorder %s229, %s231
      %p238 = scmp.eq.s32.totalorder %s38, 1
      %p239 = por %p237, %p238
      %p240 = scmp.ne.s32.totalorder %s231, %s232
      %p241 = scmp.eq.s32.totalorder %s38, 0
      %p242 = por %p240, %p241
      %p243 = scmp.ne.s32.totalorder %s231, %s232
      %p244 = scmp.eq.s32.totalorder %s39, 1
      %p245 = por %p243, %p244
      %p247 = scmp.ne.s32.totalorder %s232, %s246
      %p248 = scmp.eq.s32.totalorder %s39, 0
      %p249 = por %p247, %p248
      %s251 = sadd.s32 %s250, 1
      %p254 = scmp.eq.s32.totalorder %s33, 1
      %p255 = scmp.ne.s32.totalorder %s250, %s252
      %p256 = scmp.eq.s32.totalorder %s33, 0
      %p257 = por %p255, %p256
      %p258 = scmp.ne.s32.totalorder %s250, %s252
      %p259 = scmp.eq.s32.totalorder %s38, 1
      %p260 = por %p258, %p259
      %p261 = scmp.ne.s32.totalorder %s252, %s253
      %p262 = scmp.eq.s32.totalorder %s38, 0
      %p263 = por %p261, %p262
      %p264 = scmp.ne.s32.totalorder %s252, %s253
      %p265 = scmp.eq.s32.totalorder %s39, 1
      %p266 = por %p264, %p265
      %p268 = scmp.ne.s32.totalorder %s253, %s267
      %p269 = scmp.eq.s32.totalorder %s39, 0
      %p270 = por %p268, %p269
      %s272 = sadd.s32 %s271, 1
      %p275 = scmp.eq.s32.totalorder %s33, 1
      %p276 = scmp.ne.s32.totalorder %s271, %s273
      %p277 = scmp.eq.s32.totalorder %s33, 0
      %p278 = por %p276, %p277
      %p279 = scmp.ne.s32.totalorder %s271, %s273
      %p280 = scmp.eq.s32.totalorder %s38, 1
      %p281 = por %p279, %p280
      %p282 = scmp.ne.s32.totalorder %s273, %s274
      %p283 = scmp.eq.s32.totalorder %s38, 0
      %p284 = por %p282, %p283
      %p285 = scmp.ne.s32.totalorder %s273, %s274
      %p286 = scmp.eq.s32.totalorder %s39, 1
      %p287 = por %p285, %p286
      %p289 = scmp.ne.s32.totalorder %s274, %s288
      %p290 = scmp.eq.s32.totalorder %s39, 0
      %p291 = por %p289, %p290
      %s293 = sadd.s32 %s292, 1
      %p296 = scmp.eq.s32.totalorder %s33, 1
      %p297 = scmp.ne.s32.totalorder %s292, %s294
      %p298 = scmp.eq.s32.totalorder %s33, 0
      %p299 = por %p297, %p298
      %p300 = scmp.ne.s32.totalorder %s292, %s294
      %p301 = scmp.eq.s32.totalorder %s38, 1
      %p302 = por %p300, %p301
      %p303 = scmp.ne.s32.totalorder %s294, %s295
      %p304 = scmp.eq.s32.totalorder %s38, 0
      %p305 = por %p303, %p304
      %p306 = scmp.ne.s32.totalorder %s294, %s295
      %p307 = scmp.eq.s32.totalorder %s39, 1
      %p308 = por %p306, %p307
      %p310 = scmp.ne.s32.totalorder %s295, %s309
      %p311 = scmp.eq.s32.totalorder %s39, 0
      %p312 = por %p310, %p311
      %s314 = sadd.s32 %s313, 1
      %p317 = scmp.eq.s32.totalorder %s33, 1
      %p318 = scmp.ne.s32.totalorder %s313, %s315
      %p319 = scmp.eq.s32.totalorder %s33, 0
      %p320 = por %p318, %p319
      %p321 = scmp.ne.s32.totalorder %s313, %s315
      %p322 = scmp.eq.s32.totalorder %s38, 1
      %p323 = por %p321, %p322
      %p324 = scmp.ne.s32.totalorder %s315, %s316
      %p325 = scmp.eq.s32.totalorder %s38, 0
      %p326 = por %p324, %p325
      %p327 = scmp.ne.s32.totalorder %s315, %s316
      %p328 = scmp.eq.s32.totalorder %s39, 1
      %p329 = por %p327, %p328
      %p331 = scmp.ne.s32.totalorder %s316, %s330
      %p332 = scmp.eq.s32.totalorder %s39, 0
      %p333 = por %p331, %p332
      %s335 = sadd.s32 %s334, 1
      %p338 = scmp.eq.s32.totalorder %s33, 1
      %p339 = scmp.ne.s32.totalorder %s334, %s336
      %p340 = scmp.eq.s32.totalorder %s33, 0
      %p341 = por %p339, %p340
      %p342 = scmp.ne.s32.totalorder %s334, %s336
      %p343 = scmp.eq.s32.totalorder %s38, 1
      %p344 = por %p342, %p343
      %p345 = scmp.ne.s32.totalorder %s336, %s337
      %p346 = scmp.eq.s32.totalorder %s38, 0
      %p347 = por %p345, %p346
      %p348 = scmp.ne.s32.totalorder %s336, %s337
      %p349 = scmp.eq.s32.totalorder %s39, 1
      %p350 = por %p348, %p349
      %p352 = scmp.ne.s32.totalorder %s337, %s351
      %p353 = scmp.eq.s32.totalorder %s39, 0
      %p354 = por %p352, %p353
      %s356 = sadd.s32 %s355, 1
      %p359 = scmp.eq.s32.totalorder %s33, 1
      %p360 = scmp.ne.s32.totalorder %s355, %s357
      %p361 = scmp.eq.s32.totalorder %s33, 0
      %p362 = por %p360, %p361
      %p363 = scmp.ne.s32.totalorder %s355, %s357
      %p364 = scmp.eq.s32.totalorder %s38, 1
      %p365 = por %p363, %p364
      %p366 = scmp.ne.s32.totalorder %s357, %s358
      %p367 = scmp.eq.s32.totalorder %s38, 0
      %p368 = por %p366, %p367
      %p369 = scmp.ne.s32.totalorder %s357, %s358
      %p370 = scmp.eq.s32.totalorder %s39, 1
      %p371 = por %p369, %p370
      %p373 = scmp.ne.s32.totalorder %s358, %s372
      %p374 = scmp.eq.s32.totalorder %s39, 0
      %p375 = por %p373, %p374
      %s377 = sadd.s32 %s376, 1
      %p380 = scmp.eq.s32.totalorder %s33, 1
      %p381 = scmp.ne.s32.totalorder %s376, %s378
      %p382 = scmp.eq.s32.totalorder %s33, 0
      %p383 = por %p381, %p382
      %p384 = scmp.ne.s32.totalorder %s376, %s378
      %p385 = scmp.eq.s32.totalorder %s38, 1
      %p386 = por %p384, %p385
      %p387 = scmp.ne.s32.totalorder %s378, %s379
      %p388 = scmp.eq.s32.totalorder %s38, 0
      %p389 = por %p387, %p388
      %p390 = scmp.ne.s32.totalorder %s378, %s379
      %p391 = scmp.eq.s32.totalorder %s39, 1
      %p392 = por %p390, %p391
      %p394 = scmp.ne.s32.totalorder %s379, %s393
      %p395 = scmp.eq.s32.totalorder %s39, 0
      %p396 = por %p394, %p395
      %s398 = sadd.s32 %s397, 1
      %p401 = scmp.eq.s32.totalorder %s33, 1
      %p402 = scmp.ne.s32.totalorder %s397, %s399
      %p403 = scmp.eq.s32.totalorder %s33, 0
      %p404 = por %p402, %p403
      %p405 = scmp.ne.s32.totalorder %s397, %s399
      %p406 = scmp.eq.s32.totalorder %s38, 1
      %p407 = por %p405, %p406
      %p408 = scmp.ne.s32.totalorder %s399, %s400
      %p409 = scmp.eq.s32.totalorder %s38, 0
      %p410 = por %p408, %p409
      %p411 = scmp.ne.s32.totalorder %s399, %s400
      %p412 = scmp.eq.s32.totalorder %s39, 1
      %p413 = por %p411, %p412
      %p415 = scmp.ne.s32.totalorder %s400, %s414
      %p416 = scmp.eq.s32.totalorder %s39, 0
      %p417 = por %p415, %p416
      %s419 = sadd.s32 %s418, 1
      %p422 = scmp.eq.s32.totalorder %s33, 1
      %p423 = scmp.ne.s32.totalorder %s418, %s420
      %p424 = scmp.eq.s32.totalorder %s33, 0
      %p425 = por %p423, %p424
      %p426 = scmp.ne.s32.totalorder %s418, %s420
      %p427 = scmp.eq.s32.totalorder %s38, 1
      %p428 = por %p426, %p427
      %p429 = scmp.ne.s32.totalorder %s420, %s421
      %p430 = scmp.eq.s32.totalorder %s38, 0
      %p431 = por %p429, %p430
      %p432 = scmp.ne.s32.totalorder %s420, %s421
      %p433 = scmp.eq.s32.totalorder %s39, 1
      %p434 = por %p432, %p433
      %p436 = scmp.ne.s32.totalorder %s421, %s435
      %p437 = scmp.eq.s32.totalorder %s39, 0
      %p438 = por %p436, %p437
      %s440 = sadd.s32 %s439, 1
      %p443 = scmp.eq.s32.totalorder %s33, 1
      %p444 = scmp.ne.s32.totalorder %s439, %s441
      %p445 = scmp.eq.s32.totalorder %s33, 0
      %p446 = por %p444, %p445
      %p447 = scmp.ne.s32.totalorder %s439, %s441
      %p448 = scmp.eq.s32.totalorder %s38, 1
      %p449 = por %p447, %p448
      %p450 = scmp.ne.s32.totalorder %s441, %s442
      %p451 = scmp.eq.s32.totalorder %s38, 0
      %p452 = por %p450, %p451
      %p453 = scmp.ne.s32.totalorder %s441, %s442
      %p454 = scmp.eq.s32.totalorder %s39, 1
      %p455 = por %p453, %p454
      %p457 = scmp.ne.s32.totalorder %s442, %s456
      %p458 = scmp.eq.s32.totalorder %s39, 0
      %p459 = por %p457, %p458
      %s461 = sadd.s32 %s460, 1
      %p464 = scmp.eq.s32.totalorder %s33, 1
      %p465 = scmp.ne.s32.totalorder %s460, %s462
      %p466 = scmp.eq.s32.totalorder %s33, 0
      %p467 = por %p465, %p466
      %p468 = scmp.ne.s32.totalorder %s460, %s462
      %p469 = scmp.eq.s32.totalorder %s38, 1
      %p470 = por %p468, %p469
      %p471 = scmp.ne.s32.totalorder %s462, %s463
      %p472 = scmp.eq.s32.totalorder %s38, 0
      %p473 = por %p471, %p472
      %p474 = scmp.ne.s32.totalorder %s462, %s463
      %p475 = scmp.eq.s32.totalorder %s39, 1
      %p476 = por %p474, %p475
      %p478 = scmp.ne.s32.totalorder %s463, %s477
      %p479 = scmp.eq.s32.totalorder %s39, 0
      %p480 = por %p478, %p479
      %s482 = sadd.s32 %s481, 1
      %p485 = scmp.eq.s32.totalorder %s33, 1
      %p486 = scmp.ne.s32.totalorder %s481, %s483
      %p487 = scmp.eq.s32.totalorder %s33, 0
      %p488 = por %p486, %p487
      %p489 = scmp.ne.s32.totalorder %s481, %s483
      %p490 = scmp.eq.s32.totalorder %s38, 1
      %p491 = por %p489, %p490
      %p492 = scmp.ne.s32.totalorder %s483, %s484
      %p493 = scmp.eq.s32.totalorder %s38, 0
      %p494 = por %p492, %p493
      %p495 = scmp.ne.s32.totalorder %s483, %s484
      %p496 = scmp.eq.s32.totalorder %s39, 1
      %p497 = por %p495, %p496
      %p499 = scmp.ne.s32.totalorder %s484, %s498
      %p500 = scmp.eq.s32.totalorder %s39, 0
      %p501 = por %p499, %p500
      %s503 = sadd.s32 %s502, 1
      %p506 = scmp.eq.s32.totalorder %s33, 1
      %p507 = scmp.ne.s32.totalorder %s502, %s504
      %p508 = scmp.eq.s32.totalorder %s33, 0
      %p509 = por %p507, %p508
      %p510 = scmp.ne.s32.totalorder %s502, %s504
      %p511 = scmp.eq.s32.totalorder %s38, 1
      %p512 = por %p510, %p511
      %p513 = scmp.ne.s32.totalorder %s504, %s505
      %p514 = scmp.eq.s32.totalorder %s38, 0
      %p515 = por %p513, %p514
      %p516 = scmp.ne.s32.totalorder %s504, %s505
      %p517 = scmp.eq.s32.totalorder %s39, 1
      %p518 = por %p516, %p517
      %p520 = scmp.ne.s32.totalorder %s505, %s519
      %p521 = scmp.eq.s32.totalorder %s39, 0
      %p522 = por %p520, %p521
      %s524 = sadd.s32 %s523, 1
      %p527 = scmp.eq.s32.totalorder %s33, 1
      %p528 = scmp.ne.s32.totalorder %s523, %s525
      %p529 = scmp.eq.s32.totalorder %s33, 0
      %p530 = por %p528, %p529
      %p531 = scmp.ne.s32.totalorder %s523, %s525
      %p532 = scmp.eq.s32.totalorder %s38, 1
      %p533 = por %p531, %p532
      %p534 = scmp.ne.s32.totalorder %s525, %s526
      %p535 = scmp.eq.s32.totalorder %s38, 0
      %p536 = por %p534, %p535
      %p537 = scmp.ne.s32.totalorder %s525, %s526
      %p538 = scmp.eq.s32.totalorder %s39, 1
      %p539 = por %p537, %p538
      %p541 = scmp.ne.s32.totalorder %s526, %s540
      %p542 = scmp.eq.s32.totalorder %s39, 0
      %p543 = por %p541, %p542
      %s545 = sadd.s32 %s544, 1
      %p548 = scmp.eq.s32.totalorder %s33, 1
      %p549 = scmp.ne.s32.totalorder %s544, %s546
      %p550 = scmp.eq.s32.totalorder %s33, 0
      %p551 = por %p549, %p550
      %p552 = scmp.ne.s32.totalorder %s544, %s546
      %p553 = scmp.eq.s32.totalorder %s38, 1
      %p554 = por %p552, %p553
      %p555 = scmp.ne.s32.totalorder %s546, %s547
      %p556 = scmp.eq.s32.totalorder %s38, 0
      %p557 = por %p555, %p556
      %p558 = scmp.ne.s32.totalorder %s546, %s547
      %p559 = scmp.eq.s32.totalorder %s39, 1
      %p560 = por %p558, %p559
      %p562 = scmp.ne.s32.totalorder %s547, %s561
      %p563 = scmp.eq.s32.totalorder %s39, 0
      %p564 = por %p562, %p563
      %s565 = ssub.s32 %s33, %s40
      %p566 = scmp.eq.s32.totalorder %s565, 0
      %s568 = sadd.s32 %s567, 1
      %s569 = scalar_select %p566, %s567, %s568
      %p572 = pneg %p566
      %p573 = scmp.eq.s32.totalorder %s33, 1
      %p574 = por %p572, %p573
      %p575 = scmp.ne.s32.totalorder %s567, %s570
      %p576 = scmp.eq.s32.totalorder %s33, 0
      %p577 = por %p575, %p576
      %p578 = scmp.ne.s32.totalorder %s567, %s570
      %p579 = scmp.eq.s32.totalorder %s38, 1
      %p580 = por %p578, %p579
      %p581 = scmp.ne.s32.totalorder %s570, %s571
      %p582 = scmp.eq.s32.totalorder %s38, 0
      %p583 = por %p581, %p582
      %p584 = scmp.ne.s32.totalorder %s570, %s571
      %p585 = scmp.eq.s32.totalorder %s39, 1
      %p586 = por %p584, %p585
      %p588 = scmp.ne.s32.totalorder %s571, %s587
      %p589 = scmp.eq.s32.totalorder %s39, 0
      %p590 = por %p588, %p589
      %p591 = scmp.le.s32.totalorder 1, %s33
      %p592 = scmp.lt.s32.totalorder %s33, 3
      %p593 = pnand %p591, %p592
      %p594 = pneg %p593
      // Predicated region
      $region9: #{tpu_custom_call.1} parent=5 // pred_check
        _
      $region10: #{tpu_custom_call.1} parent=5 // pred_check_branch
        %596 = sbr.rel (%p593) target = $region12
      $region11: #{tpu_custom_call.1} parent=5 // pred_region
        %s597 = ssub.s32 %s33, 1
        // Predicated region
        $region13: #{tpu_custom_call.1} parent=11 // pred_check
          %p598 = pneg %p158
        $region14: #{tpu_custom_call.1} parent=11 // pred_check_branch
          %600 = sbr.rel (%p598) target = $region16
        $region15: #{tpu_custom_call.1} parent=11 // pred_region
          _
        $region16: #{tpu_custom_call.1} parent=11 // pred_fallthru
          _
        // Predicated region
        $region17: #{tpu_custom_call.1} parent=11 // pred_check
          %p601 = pneg %p179
        $region18: #{tpu_custom_call.1} parent=11 // pred_check_branch
          %603 = sbr.rel (%p601) target = $region20
        $region19: #{tpu_custom_call.1} parent=11 // pred_region
          _
        $region20: #{tpu_custom_call.1} parent=11 // pred_fallthru
          _
        // Predicated region
        $region21: #{tpu_custom_call.1} parent=11 // pred_check
          %p604 = pneg %p200
        $region22: #{tpu_custom_call.1} parent=11 // pred_check_branch
          %606 = sbr.rel (%p604) target = $region24
        $region23: #{tpu_custom_call.1} parent=11 // pred_region
          _
        $region24: #{tpu_custom_call.1} parent=11 // pred_fallthru
          _
        // Predicated region
        $region25: #{tpu_custom_call.1} parent=11 // pred_check
          %p607 = pneg %p221
        $region26: #{tpu_custom_call.1} parent=11 // pred_check_branch
          %609 = sbr.rel (%p607) target = $region28
        $region27: #{tpu_custom_call.1} parent=11 // pred_region
          _
        $region28: #{tpu_custom_call.1} parent=11 // pred_fallthru
          _
        // Predicated region
        $region29: #{tpu_custom_call.1} parent=11 // pred_check
          %p610 = pneg %p242
        $region30: #{tpu_custom_call.1} parent=11 // pred_check_branch
          %612 = sbr.rel (%p610) target = $region32
        $region31: #{tpu_custom_call.1} parent=11 // pred_region
          _
        $region32: #{tpu_custom_call.1} parent=11 // pred_fallthru
          _
        // Predicated region
        $region33: #{tpu_custom_call.1} parent=11 // pred_check
          %p613 = pneg %p263
        $region34: #{tpu_custom_call.1} parent=11 // pred_check_branch
          %615 = sbr.rel (%p613) target = $region36
        $region35: #{tpu_custom_call.1} parent=11 // pred_region
          _
        $region36: #{tpu_custom_call.1} parent=11 // pred_fallthru
          _
        // Predicated region
        $region37: #{tpu_custom_call.1} parent=11 // pred_check
          %p616 = pneg %p284
        $region38: #{tpu_custom_call.1} parent=11 // pred_check_branch
          %618 = sbr.rel (%p616) target = $region40
        $region39: #{tpu_custom_call.1} parent=11 // pred_region
          _
        $region40: #{tpu_custom_call.1} parent=11 // pred_fallthru
          _
        // Predicated region
        $region41: #{tpu_custom_call.1} parent=11 // pred_check
          %p619 = pneg %p305
        $region42: #{tpu_custom_call.1} parent=11 // pred_check_branch
          %621 = sbr.rel (%p619) target = $region44
        $region43: #{tpu_custom_call.1} parent=11 // pred_region
          _
        $region44: #{tpu_custom_call.1} parent=11 // pred_fallthru
          _
        // Predicated region
        $region45: #{tpu_custom_call.1} parent=11 // pred_check
          %p622 = pneg %p326
        $region46: #{tpu_custom_call.1} parent=11 // pred_check_branch
          %624 = sbr.rel (%p622) target = $region48
        $region47: #{tpu_custom_call.1} parent=11 // pred_region
          _
        $region48: #{tpu_custom_call.1} parent=11 // pred_fallthru
          _
        // Predicated region
        $region49: #{tpu_custom_call.1} parent=11 // pred_check
          %p625 = pneg %p347
        $region50: #{tpu_custom_call.1} parent=11 // pred_check_branch
          %627 = sbr.rel (%p625) target = $region52
        $region51: #{tpu_custom_call.1} parent=11 // pred_region
          _
        $region52: #{tpu_custom_call.1} parent=11 // pred_fallthru
          _
        // Predicated region
        $region53: #{tpu_custom_call.1} parent=11 // pred_check
          %p628 = pneg %p368
        $region54: #{tpu_custom_call.1} parent=11 // pred_check_branch
          %630 = sbr.rel (%p628) target = $region56
        $region55: #{tpu_custom_call.1} parent=11 // pred_region
          _
        $region56: #{tpu_custom_call.1} parent=11 // pred_fallthru
          _
        // Predicated region
        $region57: #{tpu_custom_call.1} parent=11 // pred_check
          %p631 = pneg %p389
        $region58: #{tpu_custom_call.1} parent=11 // pred_check_branch
          %633 = sbr.rel (%p631) target = $region60
        $region59: #{tpu_custom_call.1} parent=11 // pred_region
          _
        $region60: #{tpu_custom_call.1} parent=11 // pred_fallthru
          _
        // Predicated region
        $region61: #{tpu_custom_call.1} parent=11 // pred_check
          %p634 = pneg %p410
        $region62: #{tpu_custom_call.1} parent=11 // pred_check_branch
          %636 = sbr.rel (%p634) target = $region64
        $region63: #{tpu_custom_call.1} parent=11 // pred_region
          _
        $region64: #{tpu_custom_call.1} parent=11 // pred_fallthru
          _
        // Predicated region
        $region65: #{tpu_custom_call.1} parent=11 // pred_check
          %p637 = pneg %p431
        $region66: #{tpu_custom_call.1} parent=11 // pred_check_branch
          %639 = sbr.rel (%p637) target = $region68
        $region67: #{tpu_custom_call.1} parent=11 // pred_region
          _
        $region68: #{tpu_custom_call.1} parent=11 // pred_fallthru
          _
        // Predicated region
        $region69: #{tpu_custom_call.1} parent=11 // pred_check
          %p640 = pneg %p452
        $region70: #{tpu_custom_call.1} parent=11 // pred_check_branch
          %642 = sbr.rel (%p640) target = $region72
        $region71: #{tpu_custom_call.1} parent=11 // pred_region
          _
        $region72: #{tpu_custom_call.1} parent=11 // pred_fallthru
          _
        // Predicated region
        $region73: #{tpu_custom_call.1} parent=11 // pred_check
          %p643 = pneg %p473
        $region74: #{tpu_custom_call.1} parent=11 // pred_check_branch
          %645 = sbr.rel (%p643) target = $region76
        $region75: #{tpu_custom_call.1} parent=11 // pred_region
          _
        $region76: #{tpu_custom_call.1} parent=11 // pred_fallthru
          _
        // Predicated region
        $region77: #{tpu_custom_call.1} parent=11 // pred_check
          %p646 = pneg %p494
        $region78: #{tpu_custom_call.1} parent=11 // pred_check_branch
          %648 = sbr.rel (%p646) target = $region80
        $region79: #{tpu_custom_call.1} parent=11 // pred_region
          _
        $region80: #{tpu_custom_call.1} parent=11 // pred_fallthru
          _
        // Predicated region
        $region81: #{tpu_custom_call.1} parent=11 // pred_check
          %p649 = pneg %p515
        $region82: #{tpu_custom_call.1} parent=11 // pred_check_branch
          %651 = sbr.rel (%p649) target = $region84
        $region83: #{tpu_custom_call.1} parent=11 // pred_region
          _
        $region84: #{tpu_custom_call.1} parent=11 // pred_fallthru
          _
        // Predicated region
        $region85: #{tpu_custom_call.1} parent=11 // pred_check
          %p652 = pneg %p536
        $region86: #{tpu_custom_call.1} parent=11 // pred_check_branch
          %654 = sbr.rel (%p652) target = $region88
        $region87: #{tpu_custom_call.1} parent=11 // pred_region
          _
        $region88: #{tpu_custom_call.1} parent=11 // pred_fallthru
          _
        // Predicated region
        $region89: #{tpu_custom_call.1} parent=11 // pred_check
          %p655 = pneg %p557
        $region90: #{tpu_custom_call.1} parent=11 // pred_check_branch
          %657 = sbr.rel (%p655) target = $region92
        $region91: #{tpu_custom_call.1} parent=11 // pred_region
          _
        $region92: #{tpu_custom_call.1} parent=11 // pred_fallthru
          _
      $region12: #{tpu_custom_call.1} parent=5 // pred_fallthru
        _
      %p658 = scmp.lt.s32.totalorder %s33, 2
      // Predicated region
      $region93: #{tpu_custom_call.1} parent=5 // pred_check
        %p659 = pneg %p658
      $region94: #{tpu_custom_call.1} parent=5 // pred_check_branch
        %661 = sbr.rel (%p659) target = $region96
      $region95: #{tpu_custom_call.1} parent=5 // pred_region
        // Predicated region
        $region97: #{tpu_custom_call.1} parent=95 // pred_check
          %p662 = pneg %p53
        $region98: #{tpu_custom_call.1} parent=95 // pred_check_branch
          %664 = sbr.rel (%p662) target = $region100
        $region99: #{tpu_custom_call.1} parent=95 // pred_region
          %p665 = scmp.lt.s32.totalorder %s33, 1
          %s666 = scalar_select %p665, %s33, 1
          %s667 = smul.addr %s666, 8
          %s668 = scalar_lea.vmem %s0, %s667
        $region100: #{tpu_custom_call.1} parent=95 // pred_fallthru
          _
        // Predicated region
        $region101: #{tpu_custom_call.1} parent=95 // pred_check
          %p669 = pneg %p79
        $region102: #{tpu_custom_call.1} parent=95 // pred_check_branch
          %671 = sbr.rel (%p669) target = $region104
        $region103: #{tpu_custom_call.1} parent=95 // pred_region
          %p672 = scmp.lt.s32.totalorder %s33, 1
          %s673 = scalar_select %p672, %s33, 1
          %s674 = smul.addr %s673, 8
          %s675 = scalar_lea.vmem %s1, %s674
        $region104: #{tpu_custom_call.1} parent=95 // pred_fallthru
          _
        // Predicated region
        $region105: #{tpu_custom_call.1} parent=95 // pred_check
          %p676 = pneg %p105
        $region106: #{tpu_custom_call.1} parent=95 // pred_check_branch
          %678 = sbr.rel (%p676) target = $region108
        $region107: #{tpu_custom_call.1} parent=95 // pred_region
          %p679 = scmp.lt.s32.totalorder %s33, 1
          %s680 = scalar_select %p679, %s33, 1
          %s681 = scalar_lea.vmem %s2, %s680
        $region108: #{tpu_custom_call.1} parent=95 // pred_fallthru
          _
        // Predicated region
        $region109: #{tpu_custom_call.1} parent=95 // pred_check
          %p682 = pneg %p131
        $region110: #{tpu_custom_call.1} parent=95 // pred_check_branch
          %684 = sbr.rel (%p682) target = $region112
        $region111: #{tpu_custom_call.1} parent=95 // pred_region
          %p685 = scmp.lt.s32.totalorder %s33, 1
          %s686 = scalar_select %p685, %s33, 1
          %s687 = scalar_lea.vmem %s3, %s686
        $region112: #{tpu_custom_call.1} parent=95 // pred_fallthru
          _
      $region96: #{tpu_custom_call.1} parent=5 // pred_fallthru
        _
      %p688 = scmp.le.s32.totalorder 1, %s33
      %p689 = scmp.lt.s32.totalorder %s33, 3
      %p690 = pnand %p688, %p689
      %p691 = pneg %p690
      // Predicated region
      $region113: #{tpu_custom_call.1} parent=5 // pred_check
        _
      $region114: #{tpu_custom_call.1} parent=5 // pred_check_branch
        %693 = sbr.rel (%p690) target = $region116
      $region115: #{tpu_custom_call.1} parent=5 // pred_region
        %s694 = ssub.s32 %s33, 1
        %p695 = scmp.lt.s32.totalorder %s38, 1
        %s696 = scalar_select %p695, %s38, 1
        %s697 = smul.addr %s696, 8
        %s698 = scalar_lea.vmem %s0, %s697
        %p699 = pneg %p59
        %p700 = pneg %p56
        %p701 = scmp.lt.s32.totalorder %s38, 1
        %s702 = scalar_select %p701, %s38, 1
        %s703 = smul.addr %s702, 8
        %s704 = scalar_lea.vmem %s1, %s703
        %p705 = pneg %p85
        %p706 = pneg %p82
        %p707 = scmp.lt.s32.totalorder %s38, 1
        %s708 = scalar_select %p707, %s38, 1
        %s709 = scalar_lea.vmem %s2, %s708
        %p710 = pneg %p111
        %p711 = pneg %p108
        %p712 = scmp.lt.s32.totalorder %s38, 1
        %s713 = scalar_select %p712, %s38, 1
        %s714 = scalar_lea.vmem %s3, %s713
        %p715 = pneg %p137
        %p716 = pneg %p134
        %p717 = pneg %p158
        %p718 = pneg %p155
        %p719 = pneg %p179
        %p720 = pneg %p176
        %p721 = pneg %p200
        %p722 = pneg %p197
        %p723 = pneg %p221
        %p724 = pneg %p218
        %p725 = pneg %p242
        %p726 = pneg %p239
        %p727 = pneg %p263
        %p728 = pneg %p260
        %p729 = pneg %p284
        %p730 = pneg %p281
        %p731 = pneg %p305
        %p732 = pneg %p302
        %p733 = pneg %p326
        %p734 = pneg %p323
        %p735 = pneg %p347
        %p736 = pneg %p344
        %p737 = pneg %p368
        %p738 = pneg %p365
        %p739 = pneg %p389
        %p740 = pneg %p386
        %p741 = pneg %p410
        %p742 = pneg %p407
        %p743 = pneg %p431
        %p744 = pneg %p428
        %p745 = pneg %p452
        %p746 = pneg %p449
        %p747 = pneg %p473
        %p748 = pneg %p470
        %p749 = pneg %p494
        %p750 = pneg %p491
        %p751 = pneg %p515
        %p752 = pneg %p512
        %p753 = pneg %p536
        %p754 = pneg %p533
        %p755 = pneg %p557
        %p756 = pneg %p554
        %p757 = pneg %p583
        %p758 = pneg %p580
        %s759 = sand.u32 %s570, 1
        %s760 = scalar_lea.sflag [#allocation3], %s759
        %s761 = sand.u32 %s570, 1
        %s762 = smul.addr %s761, 8
        %s763 = scalar_lea.vmem [#allocation2], %s762
        %p764 = scmp.lt.s32.totalorder %s38, 1
        %s765 = scalar_select %p764, %s38, 1
        %s766 = smul.addr %s765, 8
        %s767 = scalar_lea.vmem %s0, %s766
        %p768 = scmp.lt.s32.totalorder %s38, 1
        %s769 = scalar_select %p768, %s38, 1
        %s770 = smul.addr %s769, 8
        %s771 = scalar_lea.vmem %s1, %s770
        %p772 = scmp.lt.s32.totalorder %s38, 1
        %s773 = scalar_select %p772, %s38, 1
        %s774 = scalar_lea.vmem %s2, %s773
        %p775 = scmp.lt.s32.totalorder %s38, 1
        %s776 = scalar_select %p775, %s38, 1
        %s777 = scalar_lea.vmem %s3, %s776
        %v779 = vld [vmem:[%s767] sm:$0xff]
        %v780 = vld [vmem:[%s771] sm:$0xff]
        %v781 = vlaneseq
        %v782 = vshrl.u32 %v781, 7
        %v783 = vlaneseq
        %v784 = vand.u32 %v783, 127
        %vm785 = vcmp.ge.s32.totalorder %v782, %v784
        %v786 = vld [vmem:[%s774] sm:$0x1]
        %vm787 = vcmp.gt.f32.partialorder %v786, 0.0
        %v788 = vsel %vm787, 1, 0
        %v789 = vlaneseq
        %v790 = vshrl.u32 %v789, 7
        %v791 = vsub.s32 0, %v790
        %v792 = vrot.slane %v788, %v791
        %vm793 = vcmp.eq.s32.totalorder %v792, 1
        %vm794 = vmand %vm785, %vm793
        %v795 = vsel %vm794, 0.0, -1e+09
        %v796 = vld [vmem:[%s777] sm:$0x1]
        %vm797 = vcmp.gt.f32.partialorder %v796, 0.0
        %v798 = vsel %vm797, 0.0, -1e+09
        %v799 = vld [vmem:[%s4] sm:$0x1]
        %v800 = vld [vmem:[%s5] sm:$0x1]
        %vm801 = vcmask 261120
        %v802 = vsel %vm801, %v779, 0.0
        %803 = vadd.xlane.f32.xlu0 %v802
        %v804 = vpop.xlane.xlu0 %803
        %v805 = vrcp.pop 32.0
        %v806 = vmul.f32 %v804, %v805
        %v807 = vsub.f32 %v779, %v806
        %v808 = vmul.f32 %v807, %v807
        %v809 = vsel %vm801, %v808, 0.0
        %810 = vadd.xlane.f32.xlu0 %v809
        %v811 = vpop.xlane.xlu0 %810
        %v812 = vmul.f32 %v811, %v805
        %v813 = vadd.f32 %v812, 1e-05
        %v814 = vrsqrt.pop %v813
        %v815 = vmul.f32 %v807, %v814
        %v817 = vlaneseq
        %v818 = vshrl.u32 %v817, 7
        %v819 = vsub.s32 0, %v818
        %v820 = vrot.slane %v799, %v819
        %v822 = vmul.f32 %v815, %v820
        %v824 = vlaneseq
        %v825 = vshrl.u32 %v824, 7
        %v826 = vsub.s32 0, %v825
        %v827 = vrot.slane %v800, %v826
        %v829 = vadd.f32 %v822, %v827
        %v830 = vpack.c.bf16 %v829, %v829
        %v831 = vld [vmem:[%s6] sm:$0xf]
        %v832 = vld [vmem:[%s6 + $0x4] sm:$0xf]
        %v833 = vld [vmem:[%s6 + $0x8] sm:$0xf]
        %v834 = vld [vmem:[%s6 + $0xc] sm:$0xf]
        %v835 = vld [vmem:[%s7] sm:$0x1]
        %v837 = vlaneseq
        %v838 = vshrl.u32 %v837, 7
        %v839 = vsub.s32 0, %v838
        %v840 = vrot.slane %v835, %v839
        %v846 = vunpack.c.l.b16 %v831
        %v847 = vunpack.c.l.b16 %v832
        %v848 = vunpack.c.l.b16 %v833
        %v849 = vunpack.c.l.b16 %v834
        %v850 = vpack.c.b16 %v847, %v846
        %v851 = vpack.c.b16 %v849, %v848
        %v855 = vsel %vm801, %v830, 0
        %857 = vmatprep.subr.bf16.mxu0 0
        %858 = vmatpush1.bf16.msra.mxu0 %v850
        %859 = vmatprep.subr.bf16.mxu0 0
        %860 = vmatpush1.bf16.msra.mxu0 %v851
        %861 = vmatprep.subr.bf16.mxu0 0
        %862 = vmatpush1.bf16.msra.mxu0 0
        %863 = vmatprep.subr.bf16.mxu0 0
        %864 = vmatpush1.bf16.msra.mxu0 0
        %865 = vmatprep.subr.bf16.mxu0 0
        %866 = vmatpush1.bf16.msra.mxu0 0
        %867 = vmatprep.subr.bf16.mxu0 0
        %868 = vmatpush1.bf16.msra.mxu0 0
        %869 = vmatprep.subr.bf16.mxu0 0
        %870 = vmatpush1.bf16.msra.mxu0 0
        %871 = vmatprep.subr.bf16.mxu0 0
        %872 = vmatpush1.bf16.msra.mxu0 0
        %873 = vmatprep.subr.bf16.mxu0 0
        %874 = vmatpush1.bf16.msra.mxu0 0
        %875 = vmatprep.subr.bf16.mxu0 0
        %876 = vmatpush1.bf16.msra.mxu0 0
        %877 = vmatprep.subr.bf16.mxu0 0
        %878 = vmatpush1.bf16.msra.mxu0 0
        %879 = vmatprep.subr.bf16.mxu0 0
        %880 = vmatpush1.bf16.msra.mxu0 0
        %881 = vmatprep.subr.bf16.mxu0 0
        %882 = vmatpush1.bf16.msra.mxu0 0
        %883 = vmatprep.subr.bf16.mxu0 0
        %884 = vmatpush1.bf16.msra.mxu0 0
        %885 = vmatprep.subr.bf16.mxu0 0
        %886 = vmatpush1.bf16.msra.mxu0 0
        %887 = vmatprep.subr.bf16.mxu0 0
        %888 = vmatpush1.bf16.msra.mxu0 0
        %889 = vmatprep.mubr.bf16.mxu0 0
        %890 = vmatmul.mubr.bf16.gmra.mrb[0].mxu0 %v855
        %v891 = vpop.f32.mrb[0].mxu0
        %v892 = vadd.f32 %v840, %v891
        %v893 = vpop.f32.mrb[0].mxu0
        %v894 = vpop.f32.mrb[0].mxu0
        %v895 = vpop.f32.mrb[0].mxu0
        %896 = vdwg.mxu0
        %v897 = vpack.c.bf16 %v892, %v892
        %s898 = scalar_lea.vmem %s6, 64
        %v899 = vld [vmem:[%s898] sm:$0xf]
        %v900 = vld [vmem:[%s898 + $0x4] sm:$0xf]
        %v901 = vld [vmem:[%s898 + $0x8] sm:$0xf]
        %v902 = vld [vmem:[%s898 + $0xc] sm:$0xf]
        %s903 = scalar_lea.vmem %s7, 4
        %v904 = vld [vmem:[%s903] sm:$0x1]
        %v906 = vlaneseq
        %v907 = vshrl.u32 %v906, 7
        %v908 = vsub.s32 0, %v907
        %v909 = vrot.slane %v904, %v908
        %v915 = vunpack.c.l.b16 %v899
        %v916 = vunpack.c.l.b16 %v900
        %v917 = vunpack.c.l.b16 %v901
        %v918 = vunpack.c.l.b16 %v902
        %v919 = vpack.c.b16 %v916, %v915
        %v920 = vpack.c.b16 %v918, %v917
        %923 = vmatprep.subr.bf16.mxu0 0
        %924 = vmatpush1.bf16.msra.mxu0 %v919
        %925 = vmatprep.subr.bf16.mxu0 0
        %926 = vmatpush1.bf16.msra.mxu0 %v920
        %927 = vmatprep.subr.bf16.mxu0 0
        %928 = vmatpush1.bf16.msra.mxu0 0
        %929 = vmatprep.subr.bf16.mxu0 0
        %930 = vmatpush1.bf16.msra.mxu0 0
        %931 = vmatprep.subr.bf16.mxu0 0
        %932 = vmatpush1.bf16.msra.mxu0 0
        %933 = vmatprep.subr.bf16.mxu0 0
        %934 = vmatpush1.bf16.msra.mxu0 0
        %935 = vmatprep.subr.bf16.mxu0 0
        %936 = vmatpush1.bf16.msra.mxu0 0
        %937 = vmatprep.subr.bf16.mxu0 0
        %938 = vmatpush1.bf16.msra.mxu0 0
        %939 = vmatprep.subr.bf16.mxu0 0
        %940 = vmatpush1.bf16.msra.mxu0 0
        %941 = vmatprep.subr.bf16.mxu0 0
        %942 = vmatpush1.bf16.msra.mxu0 0
        %943 = vmatprep.subr.bf16.mxu0 0
        %944 = vmatpush1.bf16.msra.mxu0 0
        %945 = vmatprep.subr.bf16.mxu0 0
        %946 = vmatpush1.bf16.msra.mxu0 0
        %947 = vmatprep.subr.bf16.mxu0 0
        %948 = vmatpush1.bf16.msra.mxu0 0
        %949 = vmatprep.subr.bf16.mxu0 0
        %950 = vmatpush1.bf16.msra.mxu0 0
        %951 = vmatprep.subr.bf16.mxu0 0
        %952 = vmatpush1.bf16.msra.mxu0 0
        %953 = vmatprep.subr.bf16.mxu0 0
        %954 = vmatpush1.bf16.msra.mxu0 0
        %955 = vmatprep.mubr.bf16.mxu0 0
        %956 = vmatmul.mubr.bf16.gmra.mrb[0].mxu0 %v855
        %v957 = vpop.f32.mrb[0].mxu0
        %v958 = vadd.f32 %v909, %v957
        %v959 = vpop.f32.mrb[0].mxu0
        %v960 = vpop.f32.mrb[0].mxu0
        %v961 = vpop.f32.mrb[0].mxu0
        %962 = vdwg.mxu0
        %v963 = vpack.c.bf16 %v958, %v958
        %s964 = scalar_lea.vmem %s6, 128
        %v965 = vld [vmem:[%s964] sm:$0xf]
        %v966 = vld [vmem:[%s964 + $0x4] sm:$0xf]
        %v967 = vld [vmem:[%s964 + $0x8] sm:$0xf]
        %v968 = vld [vmem:[%s964 + $0xc] sm:$0xf]
        %s969 = scalar_lea.vmem %s7, 8
        %v970 = vld [vmem:[%s969] sm:$0x1]
        %v972 = vlaneseq
        %v973 = vshrl.u32 %v972, 7
        %v974 = vsub.s32 0, %v973
        %v975 = vrot.slane %v970, %v974
        %v981 = vunpack.c.l.b16 %v965
        %v982 = vunpack.c.l.b16 %v966
        %v983 = vunpack.c.l.b16 %v967
        %v984 = vunpack.c.l.b16 %v968
        %v985 = vpack.c.b16 %v982, %v981
        %v986 = vpack.c.b16 %v984, %v983
        %989 = vmatprep.subr.bf16.mxu0 0
        %990 = vmatpush1.bf16.msra.mxu0 %v985
        %991 = vmatprep.subr.bf16.mxu0 0
        %992 = vmatpush1.bf16.msra.mxu0 %v986
        %993 = vmatprep.subr.bf16.mxu0 0
        %994 = vmatpush1.bf16.msra.mxu0 0
        %995 = vmatprep.subr.bf16.mxu0 0
        %996 = vmatpush1.bf16.msra.mxu0 0
        %997 = vmatprep.subr.bf16.mxu0 0
        %998 = vmatpush1.bf16.msra.mxu0 0
        %999 = vmatprep.subr.bf16.mxu0 0
        %1000 = vmatpush1.bf16.msra.mxu0 0
        %1001 = vmatprep.subr.bf16.mxu0 0
        %1002 = vmatpush1.bf16.msra.mxu0 0
        %1003 = vmatprep.subr.bf16.mxu0 0
        %1004 = vmatpush1.bf16.msra.mxu0 0
        %1005 = vmatprep.subr.bf16.mxu0 0
        %1006 = vmatpush1.bf16.msra.mxu0 0
        %1007 = vmatprep.subr.bf16.mxu0 0
        %1008 = vmatpush1.bf16.msra.mxu0 0
        %1009 = vmatprep.subr.bf16.mxu0 0
        %1010 = vmatpush1.bf16.msra.mxu0 0
        %1011 = vmatprep.subr.bf16.mxu0 0
        %1012 = vmatpush1.bf16.msra.mxu0 0
        %1013 = vmatprep.subr.bf16.mxu0 0
        %1014 = vmatpush1.bf16.msra.mxu0 0
        %1015 = vmatprep.subr.bf16.mxu0 0
        %1016 = vmatpush1.bf16.msra.mxu0 0
        %1017 = vmatprep.subr.bf16.mxu0 0
        %1018 = vmatpush1.bf16.msra.mxu0 0
        %1019 = vmatprep.subr.bf16.mxu0 0
        %1020 = vmatpush1.bf16.msra.mxu0 0
        %1021 = vmatprep.mubr.bf16.mxu0 0
        %1022 = vmatmul.mubr.bf16.gmra.mrb[0].mxu0 %v855
        %v1023 = vpop.f32.mrb[0].mxu0
        %v1024 = vadd.f32 %v975, %v1023
        %v1025 = vpop.f32.mrb[0].mxu0
        %v1026 = vpop.f32.mrb[0].mxu0
        %v1027 = vpop.f32.mrb[0].mxu0
        %1028 = vdwg.mxu0
        %v1029 = vpack.c.bf16 %v1024, %v1024
        %vm1030 = vcmask 64512
        %v1032 = vsel %vm1030, %v897, 0
        %v1035 = vsel %vm1030, %v963, 0
        %1037 = vmatprep.subr.bf16.mxu0 0
        %1038 = vmatpush1.bf16.xpose.msra.mxu0 %v1035
        %1039 = vmatprep.subr.bf16.mxu0 0
        %1040 = vmatpush1.bf16.xpose.msra.mxu0 0
        %1041 = vmatprep.subr.bf16.mxu0 0
        %1042 = vmatpush1.bf16.xpose.msra.mxu0 0
        %1043 = vmatprep.subr.bf16.mxu0 0
        %1044 = vmatpush1.bf16.xpose.msra.mxu0 0
        %1045 = vmatprep.subr.bf16.mxu0 0
        %1046 = vmatpush1.bf16.xpose.msra.mxu0 0
        %1047 = vmatprep.subr.bf16.mxu0 0
        %1048 = vmatpush1.bf16.xpose.msra.mxu0 0
        %1049 = vmatprep.subr.bf16.mxu0 0
        %1050 = vmatpush1.bf16.xpose.msra.mxu0 0
        %1051 = vmatprep.subr.bf16.mxu0 0
        %1052 = vmatpush1.bf16.xpose.msra.mxu0 0
        %1053 = vmatprep.subr.bf16.mxu0 0
        %1054 = vmatpush1.bf16.xpose.msra.mxu0 0
        %1055 = vmatprep.subr.bf16.mxu0 0
        %1056 = vmatpush1.bf16.xpose.msra.mxu0 0
        %1057 = vmatprep.subr.bf16.mxu0 0
        %1058 = vmatpush1.bf16.xpose.msra.mxu0 0
        %1059 = vmatprep.subr.bf16.mxu0 0
        %1060 = vmatpush1.bf16.xpose.msra.mxu0 0
        %1061 = vmatprep.subr.bf16.mxu0 0
        %1062 = vmatpush1.bf16.xpose.msra.mxu0 0
        %1063 = vmatprep.subr.bf16.mxu0 0
        %1064 = vmatpush1.bf16.xpose.msra.mxu0 0
        %1065 = vmatprep.subr.bf16.mxu0 0
        %1066 = vmatpush1.bf16.xpose.msra.mxu0 0
        %1067 = vmatprep.subr.bf16.mxu0 0
        %1068 = vmatpush1.bf16.xpose.msra.mxu0 0
        %1069 = vmatprep.mubr.bf16.mxu0 0
        %1070 = vmatmul.mubr.bf16.gmra.mrb[0].mxu0 %v1032
        %v1071 = vpop.f32.mrb[0].mxu0
        %v1072 = vadd.f32 %v795, %v1071
        %v1073 = vpop.f32.mrb[0].mxu0
        %v1074 = vpop.f32.mrb[0].mxu0
        %v1075 = vpop.f32.mrb[0].mxu0
        %1076 = vdwg.mxu0
        %v1077 = vsel %vm1030, %v1072, -inf
        %1078 = vmax.xlane.f32.xlu0 %v1077
        %v1079 = vpop.xlane.xlu0 %1078
        %v1080 = vsub.f32 -inf, %v1079
        %v1081 = vmul.f32 %v1080, 1.442695
        %v1082 = vpow.pop %v1081
        %v1083 = vsub.f32 %v1072, %v1079
        %v1084 = vmul.f32 %v1083, 1.442695
        %v1085 = vpow.pop %v1084
        %v1086 = vmul.f32 %v1082, 0.0
        %v1087 = vsel %vm1030, %v1085, 0.0
        %1088 = vadd.xlane.f32.xlu0 %v1087
        %v1089 = vpop.xlane.xlu0 %1088
        %v1090 = vadd.f32 %v1086, %v1089
        %v1091 = vpack.c.bf16 %v1085, %v1085
        %v1093 = vsel %vm1030, %v1091, 0
        %vm1095 = vcmask 1043456
        %v1097 = vsel %vm1095, %v1029, 0
        %1099 = vmatprep.subr.bf16.mxu0 0
        %1100 = vmatpush1.bf16.msra.mxu0 %v1097
        %1101 = vmatprep.subr.bf16.mxu0 0
        %1102 = vmatpush1.bf16.msra.mxu0 0
        %1103 = vmatprep.subr.bf16.mxu0 0
        %1104 = vmatpush1.bf16.msra.mxu0 0
        %1105 = vmatprep.subr.bf16.mxu0 0
        %1106 = vmatpush1.bf16.msra.mxu0 0
        %1107 = vmatprep.subr.bf16.mxu0 0
        %1108 = vmatpush1.bf16.msra.mxu0 0
        %1109 = vmatprep.subr.bf16.mxu0 0
        %1110 = vmatpush1.bf16.msra.mxu0 0
        %1111 = vmatprep.subr.bf16.mxu0 0
        %1112 = vmatpush1.bf16.msra.mxu0 0
        %1113 = vmatprep.subr.bf16.mxu0 0
        %1114 = vmatpush1.bf16.msra.mxu0 0
        %1115 = vmatprep.subr.bf16.mxu0 0
        %1116 = vmatpush1.bf16.msra.mxu0 0
        %1117 = vmatprep.subr.bf16.mxu0 0
        %1118 = vmatpush1.bf16.msra.mxu0 0
        %1119 = vmatprep.subr.bf16.mxu0 0
        %1120 = vmatpush1.bf16.msra.mxu0 0
        %1121 = vmatprep.subr.bf16.mxu0 0
        %1122 = vmatpush1.bf16.msra.mxu0 0
        %1123 = vmatprep.subr.bf16.mxu0 0
        %1124 = vmatpush1.bf16.msra.mxu0 0
        %1125 = vmatprep.subr.bf16.mxu0 0
        %1126 = vmatpush1.bf16.msra.mxu0 0
        %1127 = vmatprep.subr.bf16.mxu0 0
        %1128 = vmatpush1.bf16.msra.mxu0 0
        %1129 = vmatprep.subr.bf16.mxu0 0
        %1130 = vmatpush1.bf16.msra.mxu0 0
        %1131 = vmatprep.mubr.bf16.mxu0 0
        %1132 = vmatmul.mubr.bf16.gmra.mrb[0].mxu0 %v1093
        %v1133 = vpop.f32.mrb[0].mxu0
        %v1134 = vadd.f32 0.0, %v1133
        %v1135 = vpop.f32.mrb[0].mxu0
        %v1136 = vpop.f32.mrb[0].mxu0
        %v1137 = vpop.f32.mrb[0].mxu0
        %1138 = vdwg.mxu0
        %v1139 = vadd.f32 %v1086, %v1134
        %v1140 = vrcp.pop %v1090
        %v1141 = vmul.f32 %v1139, %v1140
        %v1142 = vpack.c.bf16 %v1141, %v1141
        %v1143 = vld [vmem:[%s8] sm:$0xf]
        %s1144 = scalar_lea.vmem %s6, 16
        %v1145 = vld [vmem:[%s1144] sm:$0xf]
        %v1146 = vld [vmem:[%s1144 + $0x4] sm:$0xf]
        %v1147 = vld [vmem:[%s1144 + $0x8] sm:$0xf]
        %v1148 = vld [vmem:[%s1144 + $0xc] sm:$0xf]
        %s1149 = scalar_lea.vmem %s7, 1
        %v1150 = vld [vmem:[%s1149] sm:$0x1]
        %v1152 = vlaneseq
        %v1153 = vshrl.u32 %v1152, 7
        %v1154 = vsub.s32 0, %v1153
        %v1155 = vrot.slane %v1150, %v1154
        %v1161 = vunpack.c.l.b16 %v1145
        %v1162 = vunpack.c.l.b16 %v1146
        %v1163 = vunpack.c.l.b16 %v1147
        %v1164 = vunpack.c.l.b16 %v1148
        %v1165 = vpack.c.b16 %v1162, %v1161
        %v1166 = vpack.c.b16 %v1164, %v1163
        %1169 = vmatprep.subr.bf16.mxu0 0
        %1170 = vmatpush1.bf16.msra.mxu0 %v1165
        %1171 = vmatprep.subr.bf16.mxu0 0
        %1172 = vmatpush1.bf16.msra.mxu0 %v1166
        %1173 = vmatprep.subr.bf16.mxu0 0
        %1174 = vmatpush1.bf16.msra.mxu0 0
        %1175 = vmatprep.subr.bf16.mxu0 0
        %1176 = vmatpush1.bf16.msra.mxu0 0
        %1177 = vmatprep.subr.bf16.mxu0 0
        %1178 = vmatpush1.bf16.msra.mxu0 0
        %1179 = vmatprep.subr.bf16.mxu0 0
        %1180 = vmatpush1.bf16.msra.mxu0 0
        %1181 = vmatprep.subr.bf16.mxu0 0
        %1182 = vmatpush1.bf16.msra.mxu0 0
        %1183 = vmatprep.subr.bf16.mxu0 0
        %1184 = vmatpush1.bf16.msra.mxu0 0
        %1185 = vmatprep.subr.bf16.mxu0 0
        %1186 = vmatpush1.bf16.msra.mxu0 0
        %1187 = vmatprep.subr.bf16.mxu0 0
        %1188 = vmatpush1.bf16.msra.mxu0 0
        %1189 = vmatprep.subr.bf16.mxu0 0
        %1190 = vmatpush1.bf16.msra.mxu0 0
        %1191 = vmatprep.subr.bf16.mxu0 0
        %1192 = vmatpush1.bf16.msra.mxu0 0
        %1193 = vmatprep.subr.bf16.mxu0 0
        %1194 = vmatpush1.bf16.msra.mxu0 0
        %1195 = vmatprep.subr.bf16.mxu0 0
        %1196 = vmatpush1.bf16.msra.mxu0 0
        %1197 = vmatprep.subr.bf16.mxu0 0
        %1198 = vmatpush1.bf16.msra.mxu0 0
        %1199 = vmatprep.subr.bf16.mxu0 0
        %1200 = vmatpush1.bf16.msra.mxu0 0
        %1201 = vmatprep.mubr.bf16.mxu0 0
        %1202 = vmatmul.mubr.bf16.gmra.mrb[0].mxu0 %v855
        %v1203 = vpop.f32.mrb[0].mxu0
        %v1204 = vadd.f32 %v1155, %v1203
        %v1205 = vpop.f32.mrb[0].mxu0
        %v1206 = vpop.f32.mrb[0].mxu0
        %v1207 = vpop.f32.mrb[0].mxu0
        %1208 = vdwg.mxu0
        %v1209 = vpack.c.bf16 %v1204, %v1204
        %s1210 = scalar_lea.vmem %s6, 80
        %v1211 = vld [vmem:[%s1210] sm:$0xf]
        %v1212 = vld [vmem:[%s1210 + $0x4] sm:$0xf]
        %v1213 = vld [vmem:[%s1210 + $0x8] sm:$0xf]
        %v1214 = vld [vmem:[%s1210 + $0xc] sm:$0xf]
        %s1215 = scalar_lea.vmem %s7, 5
        %v1216 = vld [vmem:[%s1215] sm:$0x1]
        %v1218 = vlaneseq
        %v1219 = vshrl.u32 %v1218, 7
        %v1220 = vsub.s32 0, %v1219
        %v1221 = vrot.slane %v1216, %v1220
        %v1227 = vunpack.c.l.b16 %v1211
        %v1228 = vunpack.c.l.b16 %v1212
        %v1229 = vunpack.c.l.b16 %v1213
        %v1230 = vunpack.c.l.b16 %v1214
        %v1231 = vpack.c.b16 %v1228, %v1227
        %v1232 = vpack.c.b16 %v1230, %v1229
        %1235 = vmatprep.subr.bf16.mxu0 0
        %1236 = vmatpush1.bf16.msra.mxu0 %v1231
        %1237 = vmatprep.subr.bf16.mxu0 0
        %1238 = vmatpush1.bf16.msra.mxu0 %v1232
        %1239 = vmatprep.subr.bf16.mxu0 0
        %1240 = vmatpush1.bf16.msra.mxu0 0
        %1241 = vmatprep.subr.bf16.mxu0 0
        %1242 = vmatpush1.bf16.msra.mxu0 0
        %1243 = vmatprep.subr.bf16.mxu0 0
        %1244 = vmatpush1.bf16.msra.mxu0 0
        %1245 = vmatprep.subr.bf16.mxu0 0
        %1246 = vmatpush1.bf16.msra.mxu0 0
        %1247 = vmatprep.subr.bf16.mxu0 0
        %1248 = vmatpush1.bf16.msra.mxu0 0
        %1249 = vmatprep.subr.bf16.mxu0 0
        %1250 = vmatpush1.bf16.msra.mxu0 0
        %1251 = vmatprep.subr.bf16.mxu0 0
        %1252 = vmatpush1.bf16.msra.mxu0 0
        %1253 = vmatprep.subr.bf16.mxu0 0
        %1254 = vmatpush1.bf16.msra.mxu0 0
        %1255 = vmatprep.subr.bf16.mxu0 0
        %1256 = vmatpush1.bf16.msra.mxu0 0
        %1257 = vmatprep.subr.bf16.mxu0 0
        %1258 = vmatpush1.bf16.msra.mxu0 0
        %1259 = vmatprep.subr.bf16.mxu0 0
        %1260 = vmatpush1.bf16.msra.mxu0 0
        %1261 = vmatprep.subr.bf16.mxu0 0
        %1262 = vmatpush1.bf16.msra.mxu0 0
        %1263 = vmatprep.subr.bf16.mxu0 0
        %1264 = vmatpush1.bf16.msra.mxu0 0
        %1265 = vmatprep.subr.bf16.mxu0 0
        %1266 = vmatpush1.bf16.msra.mxu0 0
        %1267 = vmatprep.mubr.bf16.mxu0 0
        %1268 = vmatmul.mubr.bf16.gmra.mrb[0].mxu0 %v855
        %v1269 = vpop.f32.mrb[0].mxu0
        %v1270 = vadd.f32 %v1221, %v1269
        %v1271 = vpop.f32.mrb[0].mxu0
        %v1272 = vpop.f32.mrb[0].mxu0
        %v1273 = vpop.f32.mrb[0].mxu0
        %1274 = vdwg.mxu0
        %v1275 = vpack.c.bf16 %v1270, %v1270
        %s1276 = scalar_lea.vmem %s6, 144
        %v1277 = vld [vmem:[%s1276] sm:$0xf]
        %v1278 = vld [vmem:[%s1276 + $0x4] sm:$0xf]
        %v1279 = vld [vmem:[%s1276 + $0x8] sm:$0xf]
        %v1280 = vld [vmem:[%s1276 + $0xc] sm:$0xf]
        %s1281 = scalar_lea.vmem %s7, 9
        %v1282 = vld [vmem:[%s1281] sm:$0x1]
        %v1284 = vlaneseq
        %v1285 = vshrl.u32 %v1284, 7
        %v1286 = vsub.s32 0, %v1285
        %v1287 = vrot.slane %v1282, %v1286
        %v1293 = vunpack.c.l.b16 %v1277
        %v1294 = vunpack.c.l.b16 %v1278
        %v1295 = vunpack.c.l.b16 %v1279
        %v1296 = vunpack.c.l.b16 %v1280
        %v1297 = vpack.c.b16 %v1294, %v1293
        %v1298 = vpack.c.b16 %v1296, %v1295
        %1301 = vmatprep.subr.bf16.mxu0 0
        %1302 = vmatpush1.bf16.msra.mxu0 %v1297
        %1303 = vmatprep.subr.bf16.mxu0 0
        %1304 = vmatpush1.bf16.msra.mxu0 %v1298
        %1305 = vmatprep.subr.bf16.mxu0 0
        %1306 = vmatpush1.bf16.msra.mxu0 0
        %1307 = vmatprep.subr.bf16.mxu0 0
        %1308 = vmatpush1.bf16.msra.mxu0 0
        %1309 = vmatprep.subr.bf16.mxu0 0
        %1310 = vmatpush1.bf16.msra.mxu0 0
        %1311 = vmatprep.subr.bf16.mxu0 0
        %1312 = vmatpush1.bf16.msra.mxu0 0
        %1313 = vmatprep.subr.bf16.mxu0 0
        %1314 = vmatpush1.bf16.msra.mxu0 0
        %1315 = vmatprep.subr.bf16.mxu0 0
        %1316 = vmatpush1.bf16.msra.mxu0 0
        %1317 = vmatprep.subr.bf16.mxu0 0
        %1318 = vmatpush1.bf16.msra.mxu0 0
        %1319 = vmatprep.subr.bf16.mxu0 0
        %1320 = vmatpush1.bf16.msra.mxu0 0
        %1321 = vmatprep.subr.bf16.mxu0 0
        %1322 = vmatpush1.bf16.msra.mxu0 0
        %1323 = vmatprep.subr.bf16.mxu0 0
        %1324 = vmatpush1.bf16.msra.mxu0 0
        %1325 = vmatprep.subr.bf16.mxu0 0
        %1326 = vmatpush1.bf16.msra.mxu0 0
        %1327 = vmatprep.subr.bf16.mxu0 0
        %1328 = vmatpush1.bf16.msra.mxu0 0
        %1329 = vmatprep.subr.bf16.mxu0 0
        %1330 = vmatpush1.bf16.msra.mxu0 0
        %1331 = vmatprep.subr.bf16.mxu0 0
        %1332 = vmatpush1.bf16.msra.mxu0 0
        %1333 = vmatprep.mubr.bf16.mxu0 0
        %1334 = vmatmul.mubr.bf16.gmra.mrb[0].mxu0 %v855
        %v1335 = vpop.f32.mrb[0].mxu0
        %v1336 = vadd.f32 %v1287, %v1335
        %v1337 = vpop.f32.mrb[0].mxu0
        %v1338 = vpop.f32.mrb[0].mxu0
        %v1339 = vpop.f32.mrb[0].mxu0
        %1340 = vdwg.mxu0
        %v1341 = vpack.c.bf16 %v1336, %v1336
        %v1343 = vsel %vm1030, %v1209, 0
        %v1346 = vsel %vm1030, %v1275, 0
        %1348 = vmatprep.subr.bf16.mxu0 0
        %1349 = vmatpush1.bf16.xpose.msra.mxu0 %v1346
        %1350 = vmatprep.subr.bf16.mxu0 0
        %1351 = vmatpush1.bf16.xpose.msra.mxu0 0
        %1352 = vmatprep.subr.bf16.mxu0 0
        %1353 = vmatpush1.bf16.xpose.msra.mxu0 0
        %1354 = vmatprep.subr.bf16.mxu0 0
        %1355 = vmatpush1.bf16.xpose.msra.mxu0 0
        %1356 = vmatprep.subr.bf16.mxu0 0
        %1357 = vmatpush1.bf16.xpose.msra.mxu0 0
        %1358 = vmatprep.subr.bf16.mxu0 0
        %1359 = vmatpush1.bf16.xpose.msra.mxu0 0
        %1360 = vmatprep.subr.bf16.mxu0 0
        %1361 = vmatpush1.bf16.xpose.msra.mxu0 0
        %1362 = vmatprep.subr.bf16.mxu0 0
        %1363 = vmatpush1.bf16.xpose.msra.mxu0 0
        %1364 = vmatprep.subr.bf16.mxu0 0
        %1365 = vmatpush1.bf16.xpose.msra.mxu0 0
        %1366 = vmatprep.subr.bf16.mxu0 0
        %1367 = vmatpush1.bf16.xpose.msra.mxu0 0
        %1368 = vmatprep.subr.bf16.mxu0 0
        %1369 = vmatpush1.bf16.xpose.msra.mxu0 0
        %1370 = vmatprep.subr.bf16.mxu0 0
        %1371 = vmatpush1.bf16.xpose.msra.mxu0 0
        %1372 = vmatprep.subr.bf16.mxu0 0
        %1373 = vmatpush1.bf16.xpose.msra.mxu0 0
        %1374 = vmatprep.subr.bf16.mxu0 0
        %1375 = vmatpush1.bf16.xpose.msra.mxu0 0
        %1376 = vmatprep.subr.bf16.mxu0 0
        %1377 = vmatpush1.bf16.xpose.msra.mxu0 0
        %1378 = vmatprep.subr.bf16.mxu0 0
        %1379 = vmatpush1.bf16.xpose.msra.mxu0 0
        %1380 = vmatprep.mubr.bf16.mxu0 0
        %1381 = vmatmul.mubr.bf16.gmra.mrb[0].mxu0 %v1343
        %v1382 = vpop.f32.mrb[0].mxu0
        %v1383 = vadd.f32 %v795, %v1382
        %v1384 = vpop.f32.mrb[0].mxu0
        %v1385 = vpop.f32.mrb[0].mxu0
        %v1386 = vpop.f32.mrb[0].mxu0
        %1387 = vdwg.mxu0
        %v1388 = vsel %vm1030, %v1383, -inf
        %1389 = vmax.xlane.f32.xlu0 %v1388
        %v1390 = vpop.xlane.xlu0 %1389
        %v1391 = vsub.f32 -inf, %v1390
        %v1392 = vmul.f32 %v1391, 1.442695
        %v1393 = vpow.pop %v1392
        %v1394 = vsub.f32 %v1383, %v1390
        %v1395 = vmul.f32 %v1394, 1.442695
        %v1396 = vpow.pop %v1395
        %v1397 = vmul.f32 %v1393, 0.0
        %v1398 = vsel %vm1030, %v1396, 0.0
        %1399 = vadd.xlane.f32.xlu0 %v1398
        %v1400 = vpop.xlane.xlu0 %1399
        %v1401 = vadd.f32 %v1397, %v1400
        %v1402 = vpack.c.bf16 %v1396, %v1396
        %v1404 = vsel %vm1030, %v1402, 0
        %v1407 = vsel %vm1095, %v1341, 0
        %1409 = vmatprep.subr.bf16.mxu0 0
        %1410 = vmatpush1.bf16.msra.mxu0 %v1407
        %1411 = vmatprep.subr.bf16.mxu0 0
        %1412 = vmatpush1.bf16.msra.mxu0 0
        %1413 = vmatprep.subr.bf16.mxu0 0
        %1414 = vmatpush1.bf16.msra.mxu0 0
        %1415 = vmatprep.subr.bf16.mxu0 0
        %1416 = vmatpush1.bf16.msra.mxu0 0
        %1417 = vmatprep.subr.bf16.mxu0 0
        %1418 = vmatpush1.bf16.msra.mxu0 0
        %1419 = vmatprep.subr.bf16.mxu0 0
        %1420 = vmatpush1.bf16.msra.mxu0 0
        %1421 = vmatprep.subr.bf16.mxu0 0
        %1422 = vmatpush1.bf16.msra.mxu0 0
        %1423 = vmatprep.subr.bf16.mxu0 0
        %1424 = vmatpush1.bf16.msra.mxu0 0
        %1425 = vmatprep.subr.bf16.mxu0 0
        %1426 = vmatpush1.bf16.msra.mxu0 0
        %1427 = vmatprep.subr.bf16.mxu0 0
        %1428 = vmatpush1.bf16.msra.mxu0 0
        %1429 = vmatprep.subr.bf16.mxu0 0
        %1430 = vmatpush1.bf16.msra.mxu0 0
        %1431 = vmatprep.subr.bf16.mxu0 0
        %1432 = vmatpush1.bf16.msra.mxu0 0
        %1433 = vmatprep.subr.bf16.mxu0 0
        %1434 = vmatpush1.bf16.msra.mxu0 0
        %1435 = vmatprep.subr.bf16.mxu0 0
        %1436 = vmatpush1.bf16.msra.mxu0 0
        %1437 = vmatprep.subr.bf16.mxu0 0
        %1438 = vmatpush1.bf16.msra.mxu0 0
        %1439 = vmatprep.subr.bf16.mxu0 0
        %1440 = vmatpush1.bf16.msra.mxu0 0
        %1441 = vmatprep.mubr.bf16.mxu0 0
        %1442 = vmatmul.mubr.bf16.gmra.mrb[0].mxu0 %v1404
        %v1443 = vpop.f32.mrb[0].mxu0
        %v1444 = vadd.f32 0.0, %v1443
        %v1445 = vpop.f32.mrb[0].mxu0
        %v1446 = vpop.f32.mrb[0].mxu0
        %v1447 = vpop.f32.mrb[0].mxu0
        %1448 = vdwg.mxu0
        %v1449 = vadd.f32 %v1397, %v1444
        %v1450 = vrcp.pop %v1401
        %v1451 = vmul.f32 %v1449, %v1450
        %v1452 = vpack.c.bf16 %v1451, %v1451
        %s1453 = scalar_lea.vmem %s8, 4
        %v1454 = vld [vmem:[%s1453] sm:$0xf]
        %v1456 = vsel %vm1030, %v1452, 0
        %v1459 = vsel %vm1095, %v1454, 0
        %1461 = vmatprep.subr.bf16.mxu0 0
        %1462 = vmatpush1.bf16.msra.mxu0 %v1459
        %1463 = vmatprep.subr.bf16.mxu0 0
        %1464 = vmatpush1.bf16.msra.mxu0 0
        %1465 = vmatprep.subr.bf16.mxu0 0
        %1466 = vmatpush1.bf16.msra.mxu0 0
        %1467 = vmatprep.subr.bf16.mxu0 0
        %1468 = vmatpush1.bf16.msra.mxu0 0
        %1469 = vmatprep.subr.bf16.mxu0 0
        %1470 = vmatpush1.bf16.msra.mxu0 0
        %1471 = vmatprep.subr.bf16.mxu0 0
        %1472 = vmatpush1.bf16.msra.mxu0 0
        %1473 = vmatprep.subr.bf16.mxu0 0
        %1474 = vmatpush1.bf16.msra.mxu0 0
        %1475 = vmatprep.subr.bf16.mxu0 0
        %1476 = vmatpush1.bf16.msra.mxu0 0
        %1477 = vmatprep.subr.bf16.mxu0 0
        %1478 = vmatpush1.bf16.msra.mxu0 0
        %1479 = vmatprep.subr.bf16.mxu0 0
        %1480 = vmatpush1.bf16.msra.mxu0 0
        %1481 = vmatprep.subr.bf16.mxu0 0
        %1482 = vmatpush1.bf16.msra.mxu0 0
        %1483 = vmatprep.subr.bf16.mxu0 0
        %1484 = vmatpush1.bf16.msra.mxu0 0
        %1485 = vmatprep.subr.bf16.mxu0 0
        %1486 = vmatpush1.bf16.msra.mxu0 0
        %1487 = vmatprep.subr.bf16.mxu0 0
        %1488 = vmatpush1.bf16.msra.mxu0 0
        %1489 = vmatprep.subr.bf16.mxu0 0
        %1490 = vmatpush1.bf16.msra.mxu0 0
        %1491 = vmatprep.subr.bf16.mxu0 0
        %1492 = vmatpush1.bf16.msra.mxu0 0
        %1493 = vmatprep.mubr.bf16.mxu0 0
        %1494 = vmatmul.mubr.bf16.gmra.mrb[0].mxu0 %v1456
        %v1495 = vpop.f32.mrb[0].mxu0
        %v1496 = vadd.f32 0.0, %v1495
        %v1497 = vpop.f32.mrb[0].mxu0
        %v1498 = vpop.f32.mrb[0].mxu0
        %v1499 = vpop.f32.mrb[0].mxu0
        %1500 = vdwg.mxu0
        %v1502 = vsel %vm1030, %v1142, 0
        %v1505 = vsel %vm1095, %v1143, 0
        %1507 = vmatprep.subr.bf16.mxu0 0
        %1508 = vmatpush1.bf16.msra.mxu0 %v1505
        %1509 = vmatprep.subr.bf16.mxu0 0
        %1510 = vmatpush1.bf16.msra.mxu0 0
        %1511 = vmatprep.subr.bf16.mxu0 0
        %1512 = vmatpush1.bf16.msra.mxu0 0
        %1513 = vmatprep.subr.bf16.mxu0 0
        %1514 = vmatpush1.bf16.msra.mxu0 0
        %1515 = vmatprep.subr.bf16.mxu0 0
        %1516 = vmatpush1.bf16.msra.mxu0 0
        %1517 = vmatprep.subr.bf16.mxu0 0
        %1518 = vmatpush1.bf16.msra.mxu0 0
        %1519 = vmatprep.subr.bf16.mxu0 0
        %1520 = vmatpush1.bf16.msra.mxu0 0
        %1521 = vmatprep.subr.bf16.mxu0 0
        %1522 = vmatpush1.bf16.msra.mxu0 0
        %1523 = vmatprep.subr.bf16.mxu0 0
        %1524 = vmatpush1.bf16.msra.mxu0 0
        %1525 = vmatprep.subr.bf16.mxu0 0
        %1526 = vmatpush1.bf16.msra.mxu0 0
        %1527 = vmatprep.subr.bf16.mxu0 0
        %1528 = vmatpush1.bf16.msra.mxu0 0
        %1529 = vmatprep.subr.bf16.mxu0 0
        %1530 = vmatpush1.bf16.msra.mxu0 0
        %1531 = vmatprep.subr.bf16.mxu0 0
        %1532 = vmatpush1.bf16.msra.mxu0 0
        %1533 = vmatprep.subr.bf16.mxu0 0
        %1534 = vmatpush1.bf16.msra.mxu0 0
        %1535 = vmatprep.subr.bf16.mxu0 0
        %1536 = vmatpush1.bf16.msra.mxu0 0
        %1537 = vmatprep.subr.bf16.mxu0 0
        %1538 = vmatpush1.bf16.msra.mxu0 0
        %1539 = vmatprep.mubr.bf16.mxu0 0
        %1540 = vmatmul.mubr.bf16.gmra.mrb[0].mxu0 %v1502
        %v1541 = vpop.f32.mrb[0].mxu0
        %v1542 = vadd.f32 %v1496, %v1541
        %v1543 = vpop.f32.mrb[0].mxu0
        %v1544 = vpop.f32.mrb[0].mxu0
        %v1545 = vpop.f32.mrb[0].mxu0
        %1546 = vdwg.mxu0
        %s1547 = scalar_lea.vmem %s6, 32
        %v1548 = vld [vmem:[%s1547] sm:$0xf]
        %v1549 = vld [vmem:[%s1547 + $0x4] sm:$0xf]
        %v1550 = vld [vmem:[%s1547 + $0x8] sm:$0xf]
        %v1551 = vld [vmem:[%s1547 + $0xc] sm:$0xf]
        %s1552 = scalar_lea.vmem %s7, 2
        %v1553 = vld [vmem:[%s1552] sm:$0x1]
        %v1555 = vlaneseq
        %v1556 = vshrl.u32 %v1555, 7
        %v1557 = vsub.s32 0, %v1556
        %v1558 = vrot.slane %v1553, %v1557
        %v1564 = vunpack.c.l.b16 %v1548
        %v1565 = vunpack.c.l.b16 %v1549
        %v1566 = vunpack.c.l.b16 %v1550
        %v1567 = vunpack.c.l.b16 %v1551
        %v1568 = vpack.c.b16 %v1565, %v1564
        %v1569 = vpack.c.b16 %v1567, %v1566
        %1572 = vmatprep.subr.bf16.mxu0 0
        %1573 = vmatpush1.bf16.msra.mxu0 %v1568
        %1574 = vmatprep.subr.bf16.mxu0 0
        %1575 = vmatpush1.bf16.msra.mxu0 %v1569
        %1576 = vmatprep.subr.bf16.mxu0 0
        %1577 = vmatpush1.bf16.msra.mxu0 0
        %1578 = vmatprep.subr.bf16.mxu0 0
        %1579 = vmatpush1.bf16.msra.mxu0 0
        %1580 = vmatprep.subr.bf16.mxu0 0
        %1581 = vmatpush1.bf16.msra.mxu0 0
        %1582 = vmatprep.subr.bf16.mxu0 0
        %1583 = vmatpush1.bf16.msra.mxu0 0
        %1584 = vmatprep.subr.bf16.mxu0 0
        %1585 = vmatpush1.bf16.msra.mxu0 0
        %1586 = vmatprep.subr.bf16.mxu0 0
        %1587 = vmatpush1.bf16.msra.mxu0 0
        %1588 = vmatprep.subr.bf16.mxu0 0
        %1589 = vmatpush1.bf16.msra.mxu0 0
        %1590 = vmatprep.subr.bf16.mxu0 0
        %1591 = vmatpush1.bf16.msra.mxu0 0
        %1592 = vmatprep.subr.bf16.mxu0 0
        %1593 = vmatpush1.bf16.msra.mxu0 0
        %1594 = vmatprep.subr.bf16.mxu0 0
        %1595 = vmatpush1.bf16.msra.mxu0 0
        %1596 = vmatprep.subr.bf16.mxu0 0
        %1597 = vmatpush1.bf16.msra.mxu0 0
        %1598 = vmatprep.subr.bf16.mxu0 0
        %1599 = vmatpush1.bf16.msra.mxu0 0
        %1600 = vmatprep.subr.bf16.mxu0 0
        %1601 = vmatpush1.bf16.msra.mxu0 0
        %1602 = vmatprep.subr.bf16.mxu0 0
        %1603 = vmatpush1.bf16.msra.mxu0 0
        %1604 = vmatprep.mubr.bf16.mxu0 0
        %1605 = vmatmul.mubr.bf16.gmra.mrb[0].mxu0 %v855
        %v1606 = vpop.f32.mrb[0].mxu0
        %v1607 = vadd.f32 %v1558, %v1606
        %v1608 = vpop.f32.mrb[0].mxu0
        %v1609 = vpop.f32.mrb[0].mxu0
        %v1610 = vpop.f32.mrb[0].mxu0
        %1611 = vdwg.mxu0
        %v1612 = vpack.c.bf16 %v1607, %v1607
        %s1613 = scalar_lea.vmem %s6, 96
        %v1614 = vld [vmem:[%s1613] sm:$0xf]
        %v1615 = vld [vmem:[%s1613 + $0x4] sm:$0xf]
        %v1616 = vld [vmem:[%s1613 + $0x8] sm:$0xf]
        %v1617 = vld [vmem:[%s1613 + $0xc] sm:$0xf]
        %s1618 = scalar_lea.vmem %s7, 6
        %v1619 = vld [vmem:[%s1618] sm:$0x1]
        %v1621 = vlaneseq
        %v1622 = vshrl.u32 %v1621, 7
        %v1623 = vsub.s32 0, %v1622
        %v1624 = vrot.slane %v1619, %v1623
        %v1630 = vunpack.c.l.b16 %v1614
        %v1631 = vunpack.c.l.b16 %v1615
        %v1632 = vunpack.c.l.b16 %v1616
        %v1633 = vunpack.c.l.b16 %v1617
        %v1634 = vpack.c.b16 %v1631, %v1630
        %v1635 = vpack.c.b16 %v1633, %v1632
        %1638 = vmatprep.subr.bf16.mxu0 0
        %1639 = vmatpush1.bf16.msra.mxu0 %v1634
        %1640 = vmatprep.subr.bf16.mxu0 0
        %1641 = vmatpush1.bf16.msra.mxu0 %v1635
        %1642 = vmatprep.subr.bf16.mxu0 0
        %1643 = vmatpush1.bf16.msra.mxu0 0
        %1644 = vmatprep.subr.bf16.mxu0 0
        %1645 = vmatpush1.bf16.msra.mxu0 0
        %1646 = vmatprep.subr.bf16.mxu0 0
        %1647 = vmatpush1.bf16.msra.mxu0 0
        %1648 = vmatprep.subr.bf16.mxu0 0
        %1649 = vmatpush1.bf16.msra.mxu0 0
        %1650 = vmatprep.subr.bf16.mxu0 0
        %1651 = vmatpush1.bf16.msra.mxu0 0
        %1652 = vmatprep.subr.bf16.mxu0 0
        %1653 = vmatpush1.bf16.msra.mxu0 0
        %1654 = vmatprep.subr.bf16.mxu0 0
        %1655 = vmatpush1.bf16.msra.mxu0 0
        %1656 = vmatprep.subr.bf16.mxu0 0
        %1657 = vmatpush1.bf16.msra.mxu0 0
        %1658 = vmatprep.subr.bf16.mxu0 0
        %1659 = vmatpush1.bf16.msra.mxu0 0
        %1660 = vmatprep.subr.bf16.mxu0 0
        %1661 = vmatpush1.bf16.msra.mxu0 0
        %1662 = vmatprep.subr.bf16.mxu0 0
        %1663 = vmatpush1.bf16.msra.mxu0 0
        %1664 = vmatprep.subr.bf16.mxu0 0
        %1665 = vmatpush1.bf16.msra.mxu0 0
        %1666 = vmatprep.subr.bf16.mxu0 0
        %1667 = vmatpush1.bf16.msra.mxu0 0
        %1668 = vmatprep.subr.bf16.mxu0 0
        %1669 = vmatpush1.bf16.msra.mxu0 0
        %1670 = vmatprep.mubr.bf16.mxu0 0
        %1671 = vmatmul.mubr.bf16.gmra.mrb[0].mxu0 %v855
        %v1672 = vpop.f32.mrb[0].mxu0
        %v1673 = vadd.f32 %v1624, %v1672
        %v1674 = vpop.f32.mrb[0].mxu0
        %v1675 = vpop.f32.mrb[0].mxu0
        %v1676 = vpop.f32.mrb[0].mxu0
        %1677 = vdwg.mxu0
        %v1678 = vpack.c.bf16 %v1673, %v1673
        %s1679 = scalar_lea.vmem %s6, 160
        %v1680 = vld [vmem:[%s1679] sm:$0xf]
        %v1681 = vld [vmem:[%s1679 + $0x4] sm:$0xf]
        %v1682 = vld [vmem:[%s1679 + $0x8] sm:$0xf]
        %v1683 = vld [vmem:[%s1679 + $0xc] sm:$0xf]
        %s1684 = scalar_lea.vmem %s7, 10
        %v1685 = vld [vmem:[%s1684] sm:$0x1]
        %v1687 = vlaneseq
        %v1688 = vshrl.u32 %v1687, 7
        %v1689 = vsub.s32 0, %v1688
        %v1690 = vrot.slane %v1685, %v1689
        %v1696 = vunpack.c.l.b16 %v1680
        %v1697 = vunpack.c.l.b16 %v1681
        %v1698 = vunpack.c.l.b16 %v1682
        %v1699 = vunpack.c.l.b16 %v1683
        %v1700 = vpack.c.b16 %v1697, %v1696
        %v1701 = vpack.c.b16 %v1699, %v1698
        %1704 = vmatprep.subr.bf16.mxu0 0
        %1705 = vmatpush1.bf16.msra.mxu0 %v1700
        %1706 = vmatprep.subr.bf16.mxu0 0
        %1707 = vmatpush1.bf16.msra.mxu0 %v1701
        %1708 = vmatprep.subr.bf16.mxu0 0
        %1709 = vmatpush1.bf16.msra.mxu0 0
        %1710 = vmatprep.subr.bf16.mxu0 0
        %1711 = vmatpush1.bf16.msra.mxu0 0
        %1712 = vmatprep.subr.bf16.mxu0 0
        %1713 = vmatpush1.bf16.msra.mxu0 0
        %1714 = vmatprep.subr.bf16.mxu0 0
        %1715 = vmatpush1.bf16.msra.mxu0 0
        %1716 = vmatprep.subr.bf16.mxu0 0
        %1717 = vmatpush1.bf16.msra.mxu0 0
        %1718 = vmatprep.subr.bf16.mxu0 0
        %1719 = vmatpush1.bf16.msra.mxu0 0
        %1720 = vmatprep.subr.bf16.mxu0 0
        %1721 = vmatpush1.bf16.msra.mxu0 0
        %1722 = vmatprep.subr.bf16.mxu0 0
        %1723 = vmatpush1.bf16.msra.mxu0 0
        %1724 = vmatprep.subr.bf16.mxu0 0
        %1725 = vmatpush1.bf16.msra.mxu0 0
        %1726 = vmatprep.subr.bf16.mxu0 0
        %1727 = vmatpush1.bf16.msra.mxu0 0
        %1728 = vmatprep.subr.bf16.mxu0 0
        %1729 = vmatpush1.bf16.msra.mxu0 0
        %1730 = vmatprep.subr.bf16.mxu0 0
        %1731 = vmatpush1.bf16.msra.mxu0 0
        %1732 = vmatprep.subr.bf16.mxu0 0
        %1733 = vmatpush1.bf16.msra.mxu0 0
        %1734 = vmatprep.subr.bf16.mxu0 0
        %1735 = vmatpush1.bf16.msra.mxu0 0
        %1736 = vmatprep.mubr.bf16.mxu0 0
        %1737 = vmatmul.mubr.bf16.gmra.mrb[0].mxu0 %v855
        %v1738 = vpop.f32.mrb[0].mxu0
        %v1739 = vadd.f32 %v1690, %v1738
        %v1740 = vpop.f32.mrb[0].mxu0
        %v1741 = vpop.f32.mrb[0].mxu0
        %v1742 = vpop.f32.mrb[0].mxu0
        %1743 = vdwg.mxu0
        %v1744 = vpack.c.bf16 %v1739, %v1739
        %v1746 = vsel %vm1030, %v1612, 0
        %v1749 = vsel %vm1030, %v1678, 0
        %1751 = vmatprep.subr.bf16.mxu0 0
        %1752 = vmatpush1.bf16.xpose.msra.mxu0 %v1749
        %1753 = vmatprep.subr.bf16.mxu0 0
        %1754 = vmatpush1.bf16.xpose.msra.mxu0 0
        %1755 = vmatprep.subr.bf16.mxu0 0
        %1756 = vmatpush1.bf16.xpose.msra.mxu0 0
        %1757 = vmatprep.subr.bf16.mxu0 0
        %1758 = vmatpush1.bf16.xpose.msra.mxu0 0
        %1759 = vmatprep.subr.bf16.mxu0 0
        %1760 = vmatpush1.bf16.xpose.msra.mxu0 0
        %1761 = vmatprep.subr.bf16.mxu0 0
        %1762 = vmatpush1.bf16.xpose.msra.mxu0 0
        %1763 = vmatprep.subr.bf16.mxu0 0
        %1764 = vmatpush1.bf16.xpose.msra.mxu0 0
        %1765 = vmatprep.subr.bf16.mxu0 0
        %1766 = vmatpush1.bf16.xpose.msra.mxu0 0
        %1767 = vmatprep.subr.bf16.mxu0 0
        %1768 = vmatpush1.bf16.xpose.msra.mxu0 0
        %1769 = vmatprep.subr.bf16.mxu0 0
        %1770 = vmatpush1.bf16.xpose.msra.mxu0 0
        %1771 = vmatprep.subr.bf16.mxu0 0
        %1772 = vmatpush1.bf16.xpose.msra.mxu0 0
        %1773 = vmatprep.subr.bf16.mxu0 0
        %1774 = vmatpush1.bf16.xpose.msra.mxu0 0
        %1775 = vmatprep.subr.bf16.mxu0 0
        %1776 = vmatpush1.bf16.xpose.msra.mxu0 0
        %1777 = vmatprep.subr.bf16.mxu0 0
        %1778 = vmatpush1.bf16.xpose.msra.mxu0 0
        %1779 = vmatprep.subr.bf16.mxu0 0
        %1780 = vmatpush1.bf16.xpose.msra.mxu0 0
        %1781 = vmatprep.subr.bf16.mxu0 0
        %1782 = vmatpush1.bf16.xpose.msra.mxu0 0
        %1783 = vmatprep.mubr.bf16.mxu0 0
        %1784 = vmatmul.mubr.bf16.gmra.mrb[0].mxu0 %v1746
        %v1785 = vpop.f32.mrb[0].mxu0
        %v1786 = vadd.f32 %v795, %v1785
        %v1787 = vpop.f32.mrb[0].mxu0
        %v1788 = vpop.f32.mrb[0].mxu0
        %v1789 = vpop.f32.mrb[0].mxu0
        %1790 = vdwg.mxu0
        %v1791 = vsel %vm1030, %v1786, -inf
        %1792 = vmax.xlane.f32.xlu0 %v1791
        %v1793 = vpop.xlane.xlu0 %1792
        %v1794 = vsub.f32 -inf, %v1793
        %v1795 = vmul.f32 %v1794, 1.442695
        %v1796 = vpow.pop %v1795
        %v1797 = vsub.f32 %v1786, %v1793
        %v1798 = vmul.f32 %v1797, 1.442695
        %v1799 = vpow.pop %v1798
        %v1800 = vmul.f32 %v1796, 0.0
        %v1801 = vsel %vm1030, %v1799, 0.0
        %1802 = vadd.xlane.f32.xlu0 %v1801
        %v1803 = vpop.xlane.xlu0 %1802
        %v1804 = vadd.f32 %v1800, %v1803
        %v1805 = vpack.c.bf16 %v1799, %v1799
        %v1807 = vsel %vm1030, %v1805, 0
        %v1810 = vsel %vm1095, %v1744, 0
        %1812 = vmatprep.subr.bf16.mxu0 0
        %1813 = vmatpush1.bf16.msra.mxu0 %v1810
        %1814 = vmatprep.subr.bf16.mxu0 0
        %1815 = vmatpush1.bf16.msra.mxu0 0
        %1816 = vmatprep.subr.bf16.mxu0 0
        %1817 = vmatpush1.bf16.msra.mxu0 0
        %1818 = vmatprep.subr.bf16.mxu0 0
        %1819 = vmatpush1.bf16.msra.mxu0 0
        %1820 = vmatprep.subr.bf16.mxu0 0
        %1821 = vmatpush1.bf16.msra.mxu0 0
        %1822 = vmatprep.subr.bf16.mxu0 0
        %1823 = vmatpush1.bf16.msra.mxu0 0
        %1824 = vmatprep.subr.bf16.mxu0 0
        %1825 = vmatpush1.bf16.msra.mxu0 0
        %1826 = vmatprep.subr.bf16.mxu0 0
        %1827 = vmatpush1.bf16.msra.mxu0 0
        %1828 = vmatprep.subr.bf16.mxu0 0
        %1829 = vmatpush1.bf16.msra.mxu0 0
        %1830 = vmatprep.subr.bf16.mxu0 0
        %1831 = vmatpush1.bf16.msra.mxu0 0
        %1832 = vmatprep.subr.bf16.mxu0 0
        %1833 = vmatpush1.bf16.msra.mxu0 0
        %1834 = vmatprep.subr.bf16.mxu0 0
        %1835 = vmatpush1.bf16.msra.mxu0 0
        %1836 = vmatprep.subr.bf16.mxu0 0
        %1837 = vmatpush1.bf16.msra.mxu0 0
        %1838 = vmatprep.subr.bf16.mxu0 0
        %1839 = vmatpush1.bf16.msra.mxu0 0
        %1840 = vmatprep.subr.bf16.mxu0 0
        %1841 = vmatpush1.bf16.msra.mxu0 0
        %1842 = vmatprep.subr.bf16.mxu0 0
        %1843 = vmatpush1.bf16.msra.mxu0 0
        %1844 = vmatprep.mubr.bf16.mxu0 0
        %1845 = vmatmul.mubr.bf16.gmra.mrb[0].mxu0 %v1807
        %v1846 = vpop.f32.mrb[0].mxu0
        %v1847 = vadd.f32 0.0, %v1846
        %v1848 = vpop.f32.mrb[0].mxu0
        %v1849 = vpop.f32.mrb[0].mxu0
        %v1850 = vpop.f32.mrb[0].mxu0
        %1851 = vdwg.mxu0
        %v1852 = vadd.f32 %v1800, %v1847
        %v1853 = vrcp.pop %v1804
        %v1854 = vmul.f32 %v1852, %v1853
        %v1855 = vpack.c.bf16 %v1854, %v1854
        %s1856 = scalar_lea.vmem %s8, 8
        %v1857 = vld [vmem:[%s1856] sm:$0xf]
        %v1859 = vsel %vm1030, %v1855, 0
        %v1862 = vsel %vm1095, %v1857, 0
        %1864 = vmatprep.subr.bf16.mxu0 0
        %1865 = vmatpush1.bf16.msra.mxu0 %v1862
        %1866 = vmatprep.subr.bf16.mxu0 0
        %1867 = vmatpush1.bf16.msra.mxu0 0
        %1868 = vmatprep.subr.bf16.mxu0 0
        %1869 = vmatpush1.bf16.msra.mxu0 0
        %1870 = vmatprep.subr.bf16.mxu0 0
        %1871 = vmatpush1.bf16.msra.mxu0 0
        %1872 = vmatprep.subr.bf16.mxu0 0
        %1873 = vmatpush1.bf16.msra.mxu0 0
        %1874 = vmatprep.subr.bf16.mxu0 0
        %1875 = vmatpush1.bf16.msra.mxu0 0
        %1876 = vmatprep.subr.bf16.mxu0 0
        %1877 = vmatpush1.bf16.msra.mxu0 0
        %1878 = vmatprep.subr.bf16.mxu0 0
        %1879 = vmatpush1.bf16.msra.mxu0 0
        %1880 = vmatprep.subr.bf16.mxu0 0
        %1881 = vmatpush1.bf16.msra.mxu0 0
        %1882 = vmatprep.subr.bf16.mxu0 0
        %1883 = vmatpush1.bf16.msra.mxu0 0
        %1884 = vmatprep.subr.bf16.mxu0 0
        %1885 = vmatpush1.bf16.msra.mxu0 0
        %1886 = vmatprep.subr.bf16.mxu0 0
        %1887 = vmatpush1.bf16.msra.mxu0 0
        %1888 = vmatprep.subr.bf16.mxu0 0
        %1889 = vmatpush1.bf16.msra.mxu0 0
        %1890 = vmatprep.subr.bf16.mxu0 0
        %1891 = vmatpush1.bf16.msra.mxu0 0
        %1892 = vmatprep.subr.bf16.mxu0 0
        %1893 = vmatpush1.bf16.msra.mxu0 0
        %1894 = vmatprep.subr.bf16.mxu0 0
        %1895 = vmatpush1.bf16.msra.mxu0 0
        %1896 = vmatprep.mubr.bf16.mxu0 0
        %1897 = vmatmul.mubr.bf16.gmra.mrb[0].mxu0 %v1859
        %v1898 = vpop.f32.mrb[0].mxu0
        %v1899 = vadd.f32 0.0, %v1898
        %v1900 = vpop.f32.mrb[0].mxu0
        %v1901 = vpop.f32.mrb[0].mxu0
        %v1902 = vpop.f32.mrb[0].mxu0
        %1903 = vdwg.mxu0
        %v1904 = vadd.f32 %v1542, %v1899
        %s1905 = scalar_lea.vmem %s6, 48
        %v1906 = vld [vmem:[%s1905] sm:$0xf]
        %v1907 = vld [vmem:[%s1905 + $0x4] sm:$0xf]
        %v1908 = vld [vmem:[%s1905 + $0x8] sm:$0xf]
        %v1909 = vld [vmem:[%s1905 + $0xc] sm:$0xf]
        %s1910 = scalar_lea.vmem %s7, 3
        %v1911 = vld [vmem:[%s1910] sm:$0x1]
        %v1913 = vlaneseq
        %v1914 = vshrl.u32 %v1913, 7
        %v1915 = vsub.s32 0, %v1914
        %v1916 = vrot.slane %v1911, %v1915
        %v1922 = vunpack.c.l.b16 %v1906
        %v1923 = vunpack.c.l.b16 %v1907
        %v1924 = vunpack.c.l.b16 %v1908
        %v1925 = vunpack.c.l.b16 %v1909
        %v1926 = vpack.c.b16 %v1923, %v1922
        %v1927 = vpack.c.b16 %v1925, %v1924
        %1930 = vmatprep.subr.bf16.mxu0 0
        %1931 = vmatpush1.bf16.msra.mxu0 %v1926
        %1932 = vmatprep.subr.bf16.mxu0 0
        %1933 = vmatpush1.bf16.msra.mxu0 %v1927
        %1934 = vmatprep.subr.bf16.mxu0 0
        %1935 = vmatpush1.bf16.msra.mxu0 0
        %1936 = vmatprep.subr.bf16.mxu0 0
        %1937 = vmatpush1.bf16.msra.mxu0 0
        %1938 = vmatprep.subr.bf16.mxu0 0
        %1939 = vmatpush1.bf16.msra.mxu0 0
        %1940 = vmatprep.subr.bf16.mxu0 0
        %1941 = vmatpush1.bf16.msra.mxu0 0
        %1942 = vmatprep.subr.bf16.mxu0 0
        %1943 = vmatpush1.bf16.msra.mxu0 0
        %1944 = vmatprep.subr.bf16.mxu0 0
        %1945 = vmatpush1.bf16.msra.mxu0 0
        %1946 = vmatprep.subr.bf16.mxu0 0
        %1947 = vmatpush1.bf16.msra.mxu0 0
        %1948 = vmatprep.subr.bf16.mxu0 0
        %1949 = vmatpush1.bf16.msra.mxu0 0
        %1950 = vmatprep.subr.bf16.mxu0 0
        %1951 = vmatpush1.bf16.msra.mxu0 0
        %1952 = vmatprep.subr.bf16.mxu0 0
        %1953 = vmatpush1.bf16.msra.mxu0 0
        %1954 = vmatprep.subr.bf16.mxu0 0
        %1955 = vmatpush1.bf16.msra.mxu0 0
        %1956 = vmatprep.subr.bf16.mxu0 0
        %1957 = vmatpush1.bf16.msra.mxu0 0
        %1958 = vmatprep.subr.bf16.mxu0 0
        %1959 = vmatpush1.bf16.msra.mxu0 0
        %1960 = vmatprep.subr.bf16.mxu0 0
        %1961 = vmatpush1.bf16.msra.mxu0 0
        %1962 = vmatprep.mubr.bf16.mxu0 0
        %1963 = vmatmul.mubr.bf16.gmra.mrb[0].mxu0 %v855
        %v1964 = vpop.f32.mrb[0].mxu0
        %v1965 = vadd.f32 %v1916, %v1964
        %v1966 = vpop.f32.mrb[0].mxu0
        %v1967 = vpop.f32.mrb[0].mxu0
        %v1968 = vpop.f32.mrb[0].mxu0
        %1969 = vdwg.mxu0
        %v1970 = vpack.c.bf16 %v1965, %v1965
        %s1971 = scalar_lea.vmem %s6, 112
        %v1972 = vld [vmem:[%s1971] sm:$0xf]
        %v1973 = vld [vmem:[%s1971 + $0x4] sm:$0xf]
        %v1974 = vld [vmem:[%s1971 + $0x8] sm:$0xf]
        %v1975 = vld [vmem:[%s1971 + $0xc] sm:$0xf]
        %s1976 = scalar_lea.vmem %s7, 7
        %v1977 = vld [vmem:[%s1976] sm:$0x1]
        %v1979 = vlaneseq
        %v1980 = vshrl.u32 %v1979, 7
        %v1981 = vsub.s32 0, %v1980
        %v1982 = vrot.slane %v1977, %v1981
        %v1988 = vunpack.c.l.b16 %v1972
        %v1989 = vunpack.c.l.b16 %v1973
        %v1990 = vunpack.c.l.b16 %v1974
        %v1991 = vunpack.c.l.b16 %v1975
        %v1992 = vpack.c.b16 %v1989, %v1988
        %v1993 = vpack.c.b16 %v1991, %v1990
        %1996 = vmatprep.subr.bf16.mxu0 0
        %1997 = vmatpush1.bf16.msra.mxu0 %v1992
        %1998 = vmatprep.subr.bf16.mxu0 0
        %1999 = vmatpush1.bf16.msra.mxu0 %v1993
        %2000 = vmatprep.subr.bf16.mxu0 0
        %2001 = vmatpush1.bf16.msra.mxu0 0
        %2002 = vmatprep.subr.bf16.mxu0 0
        %2003 = vmatpush1.bf16.msra.mxu0 0
        %2004 = vmatprep.subr.bf16.mxu0 0
        %2005 = vmatpush1.bf16.msra.mxu0 0
        %2006 = vmatprep.subr.bf16.mxu0 0
        %2007 = vmatpush1.bf16.msra.mxu0 0
        %2008 = vmatprep.subr.bf16.mxu0 0
        %2009 = vmatpush1.bf16.msra.mxu0 0
        %2010 = vmatprep.subr.bf16.mxu0 0
        %2011 = vmatpush1.bf16.msra.mxu0 0
        %2012 = vmatprep.subr.bf16.mxu0 0
        %2013 = vmatpush1.bf16.msra.mxu0 0
        %2014 = vmatprep.subr.bf16.mxu0 0
        %2015 = vmatpush1.bf16.msra.mxu0 0
        %2016 = vmatprep.subr.bf16.mxu0 0
        %2017 = vmatpush1.bf16.msra.mxu0 0
        %2018 = vmatprep.subr.bf16.mxu0 0
        %2019 = vmatpush1.bf16.msra.mxu0 0
        %2020 = vmatprep.subr.bf16.mxu0 0
        %2021 = vmatpush1.bf16.msra.mxu0 0
        %2022 = vmatprep.subr.bf16.mxu0 0
        %2023 = vmatpush1.bf16.msra.mxu0 0
        %2024 = vmatprep.subr.bf16.mxu0 0
        %2025 = vmatpush1.bf16.msra.mxu0 0
        %2026 = vmatprep.subr.bf16.mxu0 0
        %2027 = vmatpush1.bf16.msra.mxu0 0
        %2028 = vmatprep.mubr.bf16.mxu0 0
        %2029 = vmatmul.mubr.bf16.gmra.mrb[0].mxu0 %v855
        %v2030 = vpop.f32.mrb[0].mxu0
        %v2031 = vadd.f32 %v1982, %v2030
        %v2032 = vpop.f32.mrb[0].mxu0
        %v2033 = vpop.f32.mrb[0].mxu0
        %v2034 = vpop.f32.mrb[0].mxu0
        %2035 = vdwg.mxu0
        %v2036 = vpack.c.bf16 %v2031, %v2031
        %s2037 = scalar_lea.vmem %s6, 176
        %v2038 = vld [vmem:[%s2037] sm:$0xf]
        %v2039 = vld [vmem:[%s2037 + $0x4] sm:$0xf]
        %v2040 = vld [vmem:[%s2037 + $0x8] sm:$0xf]
        %v2041 = vld [vmem:[%s2037 + $0xc] sm:$0xf]
        %s2042 = scalar_lea.vmem %s7, 11
        %v2043 = vld [vmem:[%s2042] sm:$0x1]
        %v2045 = vlaneseq
        %v2046 = vshrl.u32 %v2045, 7
        %v2047 = vsub.s32 0, %v2046
        %v2048 = vrot.slane %v2043, %v2047
        %v2054 = vunpack.c.l.b16 %v2038
        %v2055 = vunpack.c.l.b16 %v2039
        %v2056 = vunpack.c.l.b16 %v2040
        %v2057 = vunpack.c.l.b16 %v2041
        %v2058 = vpack.c.b16 %v2055, %v2054
        %v2059 = vpack.c.b16 %v2057, %v2056
        %2062 = vmatprep.subr.bf16.mxu0 0
        %2063 = vmatpush1.bf16.msra.mxu0 %v2058
        %2064 = vmatprep.subr.bf16.mxu0 0
        %2065 = vmatpush1.bf16.msra.mxu0 %v2059
        %2066 = vmatprep.subr.bf16.mxu0 0
        %2067 = vmatpush1.bf16.msra.mxu0 0
        %2068 = vmatprep.subr.bf16.mxu0 0
        %2069 = vmatpush1.bf16.msra.mxu0 0
        %2070 = vmatprep.subr.bf16.mxu0 0
        %2071 = vmatpush1.bf16.msra.mxu0 0
        %2072 = vmatprep.subr.bf16.mxu0 0
        %2073 = vmatpush1.bf16.msra.mxu0 0
        %2074 = vmatprep.subr.bf16.mxu0 0
        %2075 = vmatpush1.bf16.msra.mxu0 0
        %2076 = vmatprep.subr.bf16.mxu0 0
        %2077 = vmatpush1.bf16.msra.mxu0 0
        %2078 = vmatprep.subr.bf16.mxu0 0
        %2079 = vmatpush1.bf16.msra.mxu0 0
        %2080 = vmatprep.subr.bf16.mxu0 0
        %2081 = vmatpush1.bf16.msra.mxu0 0
        %2082 = vmatprep.subr.bf16.mxu0 0
        %2083 = vmatpush1.bf16.msra.mxu0 0
        %2084 = vmatprep.subr.bf16.mxu0 0
        %2085 = vmatpush1.bf16.msra.mxu0 0
        %2086 = vmatprep.subr.bf16.mxu0 0
        %2087 = vmatpush1.bf16.msra.mxu0 0
        %2088 = vmatprep.subr.bf16.mxu0 0
        %2089 = vmatpush1.bf16.msra.mxu0 0
        %2090 = vmatprep.subr.bf16.mxu0 0
        %2091 = vmatpush1.bf16.msra.mxu0 0
        %2092 = vmatprep.subr.bf16.mxu0 0
        %2093 = vmatpush1.bf16.msra.mxu0 0
        %2094 = vmatprep.mubr.bf16.mxu0 0
        %2095 = vmatmul.mubr.bf16.gmra.mrb[0].mxu0 %v855
        %v2096 = vpop.f32.mrb[0].mxu0
        %v2097 = vadd.f32 %v2048, %v2096
        %v2098 = vpop.f32.mrb[0].mxu0
        %v2099 = vpop.f32.mrb[0].mxu0
        %v2100 = vpop.f32.mrb[0].mxu0
        %2101 = vdwg.mxu0
        %v2102 = vpack.c.bf16 %v2097, %v2097
        %v2104 = vsel %vm1030, %v1970, 0
        %v2107 = vsel %vm1030, %v2036, 0
        %2109 = vmatprep.subr.bf16.mxu0 0
        %2110 = vmatpush1.bf16.xpose.msra.mxu0 %v2107
        %2111 = vmatprep.subr.bf16.mxu0 0
        %2112 = vmatpush1.bf16.xpose.msra.mxu0 0
        %2113 = vmatprep.subr.bf16.mxu0 0
        %2114 = vmatpush1.bf16.xpose.msra.mxu0 0
        %2115 = vmatprep.subr.bf16.mxu0 0
        %2116 = vmatpush1.bf16.xpose.msra.mxu0 0
        %2117 = vmatprep.subr.bf16.mxu0 0
        %2118 = vmatpush1.bf16.xpose.msra.mxu0 0
        %2119 = vmatprep.subr.bf16.mxu0 0
        %2120 = vmatpush1.bf16.xpose.msra.mxu0 0
        %2121 = vmatprep.subr.bf16.mxu0 0
        %2122 = vmatpush1.bf16.xpose.msra.mxu0 0
        %2123 = vmatprep.subr.bf16.mxu0 0
        %2124 = vmatpush1.bf16.xpose.msra.mxu0 0
        %2125 = vmatprep.subr.bf16.mxu0 0
        %2126 = vmatpush1.bf16.xpose.msra.mxu0 0
        %2127 = vmatprep.subr.bf16.mxu0 0
        %2128 = vmatpush1.bf16.xpose.msra.mxu0 0
        %2129 = vmatprep.subr.bf16.mxu0 0
        %2130 = vmatpush1.bf16.xpose.msra.mxu0 0
        %2131 = vmatprep.subr.bf16.mxu0 0
        %2132 = vmatpush1.bf16.xpose.msra.mxu0 0
        %2133 = vmatprep.subr.bf16.mxu0 0
        %2134 = vmatpush1.bf16.xpose.msra.mxu0 0
        %2135 = vmatprep.subr.bf16.mxu0 0
        %2136 = vmatpush1.bf16.xpose.msra.mxu0 0
        %2137 = vmatprep.subr.bf16.mxu0 0
        %2138 = vmatpush1.bf16.xpose.msra.mxu0 0
        %2139 = vmatprep.subr.bf16.mxu0 0
        %2140 = vmatpush1.bf16.xpose.msra.mxu0 0
        %2141 = vmatprep.mubr.bf16.mxu0 0
        %2142 = vmatmul.mubr.bf16.gmra.mrb[0].mxu0 %v2104
        %v2143 = vpop.f32.mrb[0].mxu0
        %v2144 = vadd.f32 %v795, %v2143
        %v2145 = vpop.f32.mrb[0].mxu0
        %v2146 = vpop.f32.mrb[0].mxu0
        %v2147 = vpop.f32.mrb[0].mxu0
        %2148 = vdwg.mxu0
        %v2149 = vsel %vm1030, %v2144, -inf
        %2150 = vmax.xlane.f32.xlu0 %v2149
        %v2151 = vpop.xlane.xlu0 %2150
        %v2152 = vsub.f32 -inf, %v2151
        %v2153 = vmul.f32 %v2152, 1.442695
        %v2154 = vpow.pop %v2153
        %v2155 = vsub.f32 %v2144, %v2151
        %v2156 = vmul.f32 %v2155, 1.442695
        %v2157 = vpow.pop %v2156
        %v2158 = vmul.f32 %v2154, 0.0
        %v2159 = vsel %vm1030, %v2157, 0.0
        %2160 = vadd.xlane.f32.xlu0 %v2159
        %v2161 = vpop.xlane.xlu0 %2160
        %v2162 = vadd.f32 %v2158, %v2161
        %v2163 = vpack.c.bf16 %v2157, %v2157
        %v2165 = vsel %vm1030, %v2163, 0
        %v2168 = vsel %vm1095, %v2102, 0
        %2170 = vmatprep.subr.bf16.mxu0 0
        %2171 = vmatpush1.bf16.msra.mxu0 %v2168
        %2172 = vmatprep.subr.bf16.mxu0 0
        %2173 = vmatpush1.bf16.msra.mxu0 0
        %2174 = vmatprep.subr.bf16.mxu0 0
        %2175 = vmatpush1.bf16.msra.mxu0 0
        %2176 = vmatprep.subr.bf16.mxu0 0
        %2177 = vmatpush1.bf16.msra.mxu0 0
        %2178 = vmatprep.subr.bf16.mxu0 0
        %2179 = vmatpush1.bf16.msra.mxu0 0
        %2180 = vmatprep.subr.bf16.mxu0 0
        %2181 = vmatpush1.bf16.msra.mxu0 0
        %2182 = vmatprep.subr.bf16.mxu0 0
        %2183 = vmatpush1.bf16.msra.mxu0 0
        %2184 = vmatprep.subr.bf16.mxu0 0
        %2185 = vmatpush1.bf16.msra.mxu0 0
        %2186 = vmatprep.subr.bf16.mxu0 0
        %2187 = vmatpush1.bf16.msra.mxu0 0
        %2188 = vmatprep.subr.bf16.mxu0 0
        %2189 = vmatpush1.bf16.msra.mxu0 0
        %2190 = vmatprep.subr.bf16.mxu0 0
        %2191 = vmatpush1.bf16.msra.mxu0 0
        %2192 = vmatprep.subr.bf16.mxu0 0
        %2193 = vmatpush1.bf16.msra.mxu0 0
        %2194 = vmatprep.subr.bf16.mxu0 0
        %2195 = vmatpush1.bf16.msra.mxu0 0
        %2196 = vmatprep.subr.bf16.mxu0 0
        %2197 = vmatpush1.bf16.msra.mxu0 0
        %2198 = vmatprep.subr.bf16.mxu0 0
        %2199 = vmatpush1.bf16.msra.mxu0 0
        %2200 = vmatprep.subr.bf16.mxu0 0
        %2201 = vmatpush1.bf16.msra.mxu0 0
        %2202 = vmatprep.mubr.bf16.mxu0 0
        %2203 = vmatmul.mubr.bf16.gmra.mrb[0].mxu0 %v2165
        %v2204 = vpop.f32.mrb[0].mxu0
        %v2205 = vadd.f32 0.0, %v2204
        %v2206 = vpop.f32.mrb[0].mxu0
        %v2207 = vpop.f32.mrb[0].mxu0
        %v2208 = vpop.f32.mrb[0].mxu0
        %2209 = vdwg.mxu0
        %v2210 = vadd.f32 %v2158, %v2205
        %v2211 = vrcp.pop %v2162
        %v2212 = vmul.f32 %v2210, %v2211
        %v2213 = vpack.c.bf16 %v2212, %v2212
        %s2214 = scalar_lea.vmem %s8, 12
        %v2215 = vld [vmem:[%s2214] sm:$0xf]
        %v2217 = vsel %vm1030, %v2213, 0
        %v2220 = vsel %vm1095, %v2215, 0
        %2222 = vmatprep.subr.bf16.mxu0 0
        %2223 = vmatpush1.bf16.msra.mxu0 %v2220
        %2224 = vmatprep.subr.bf16.mxu0 0
        %2225 = vmatpush1.bf16.msra.mxu0 0
        %2226 = vmatprep.subr.bf16.mxu0 0
        %2227 = vmatpush1.bf16.msra.mxu0 0
        %2228 = vmatprep.subr.bf16.mxu0 0
        %2229 = vmatpush1.bf16.msra.mxu0 0
        %2230 = vmatprep.subr.bf16.mxu0 0
        %2231 = vmatpush1.bf16.msra.mxu0 0
        %2232 = vmatprep.subr.bf16.mxu0 0
        %2233 = vmatpush1.bf16.msra.mxu0 0
        %2234 = vmatprep.subr.bf16.mxu0 0
        %2235 = vmatpush1.bf16.msra.mxu0 0
        %2236 = vmatprep.subr.bf16.mxu0 0
        %2237 = vmatpush1.bf16.msra.mxu0 0
        %2238 = vmatprep.subr.bf16.mxu0 0
        %2239 = vmatpush1.bf16.msra.mxu0 0
        %2240 = vmatprep.subr.bf16.mxu0 0
        %2241 = vmatpush1.bf16.msra.mxu0 0
        %2242 = vmatprep.subr.bf16.mxu0 0
        %2243 = vmatpush1.bf16.msra.mxu0 0
        %2244 = vmatprep.subr.bf16.mxu0 0
        %2245 = vmatpush1.bf16.msra.mxu0 0
        %2246 = vmatprep.subr.bf16.mxu0 0
        %2247 = vmatpush1.bf16.msra.mxu0 0
        %2248 = vmatprep.subr.bf16.mxu0 0
        %2249 = vmatpush1.bf16.msra.mxu0 0
        %2250 = vmatprep.subr.bf16.mxu0 0
        %2251 = vmatpush1.bf16.msra.mxu0 0
        %2252 = vmatprep.subr.bf16.mxu0 0
        %2253 = vmatpush1.bf16.msra.mxu0 0
        %2254 = vmatprep.mubr.bf16.mxu0 0
        %2255 = vmatmul.mubr.bf16.gmra.mrb[0].mxu0 %v2217
        %v2256 = vpop.f32.mrb[0].mxu0
        %v2257 = vadd.f32 0.0, %v2256
        %v2258 = vpop.f32.mrb[0].mxu0
        %v2259 = vpop.f32.mrb[0].mxu0
        %v2260 = vpop.f32.mrb[0].mxu0
        %2261 = vdwg.mxu0
        %v2262 = vadd.f32 %v1904, %v2257
        %v2263 = vadd.f32 %v779, %v2262
        %v2264 = vld [vmem:[%s9] sm:$0x1]
        %v2266 = vlaneseq
        %v2267 = vshrl.u32 %v2266, 7
        %v2268 = vsub.s32 0, %v2267
        %v2269 = vrot.slane %v2264, %v2268
        %v2271 = vadd.f32 %v2263, %v2269
        %v2272 = vld [vmem:[%s10] sm:$0x1]
        %v2273 = vld [vmem:[%s11] sm:$0x1]
        %v2274 = vsel %vm801, %v2271, 0.0
        %2275 = vadd.xlane.f32.xlu0 %v2274
        %v2276 = vpop.xlane.xlu0 %2275
        %v2277 = vmul.f32 %v2276, %v805
        %v2278 = vsub.f32 %v2271, %v2277
        %v2279 = vmul.f32 %v2278, %v2278
        %v2280 = vsel %vm801, %v2279, 0.0
        %2281 = vadd.xlane.f32.xlu0 %v2280
        %v2282 = vpop.xlane.xlu0 %2281
        %v2283 = vmul.f32 %v2282, %v805
        %v2284 = vadd.f32 %v2283, 1e-05
        %v2285 = vrsqrt.pop %v2284
        %v2286 = vmul.f32 %v2278, %v2285
        %v2288 = vlaneseq
        %v2289 = vshrl.u32 %v2288, 7
        %v2290 = vsub.s32 0, %v2289
        %v2291 = vrot.slane %v2272, %v2290
        %v2293 = vmul.f32 %v2286, %v2291
        %v2295 = vlaneseq
        %v2296 = vshrl.u32 %v2295, 7
        %v2297 = vsub.s32 0, %v2296
        %v2298 = vrot.slane %v2273, %v2297
        %v2300 = vadd.f32 %v2293, %v2298
        %v2301 = vpack.c.bf16 %v2300, %v2300
        %v2302 = vpack.c.bf16 %v780, %v780
        %v2303 = vld [vmem:[%s12] sm:$0xf]
        %v2304 = vld [vmem:[%s12 + $0x4] sm:$0xf]
        %v2305 = vld [vmem:[%s12 + $0x8] sm:$0xf]
        %v2306 = vld [vmem:[%s12 + $0xc] sm:$0xf]
        %v2307 = vld [vmem:[%s13] sm:$0x1]
        %v2309 = vlaneseq
        %v2310 = vshrl.u32 %v2309, 7
        %v2311 = vsub.s32 0, %v2310
        %v2312 = vrot.slane %v2307, %v2311
        %v2318 = vunpack.c.l.b16 %v2303
        %v2319 = vunpack.c.l.b16 %v2304
        %v2320 = vunpack.c.l.b16 %v2305
        %v2321 = vunpack.c.l.b16 %v2306
        %v2322 = vpack.c.b16 %v2319, %v2318
        %v2323 = vpack.c.b16 %v2321, %v2320
        %v2327 = vsel %vm801, %v2301, 0
        %2329 = vmatprep.subr.bf16.mxu0 0
        %2330 = vmatpush1.bf16.msra.mxu0 %v2322
        %2331 = vmatprep.subr.bf16.mxu0 0
        %2332 = vmatpush1.bf16.msra.mxu0 %v2323
        %2333 = vmatprep.subr.bf16.mxu0 0
        %2334 = vmatpush1.bf16.msra.mxu0 0
        %2335 = vmatprep.subr.bf16.mxu0 0
        %2336 = vmatpush1.bf16.msra.mxu0 0
        %2337 = vmatprep.subr.bf16.mxu0 0
        %2338 = vmatpush1.bf16.msra.mxu0 0
        %2339 = vmatprep.subr.bf16.mxu0 0
        %2340 = vmatpush1.bf16.msra.mxu0 0
        %2341 = vmatprep.subr.bf16.mxu0 0
        %2342 = vmatpush1.bf16.msra.mxu0 0
        %2343 = vmatprep.subr.bf16.mxu0 0
        %2344 = vmatpush1.bf16.msra.mxu0 0
        %2345 = vmatprep.subr.bf16.mxu0 0
        %2346 = vmatpush1.bf16.msra.mxu0 0
        %2347 = vmatprep.subr.bf16.mxu0 0
        %2348 = vmatpush1.bf16.msra.mxu0 0
        %2349 = vmatprep.subr.bf16.mxu0 0
        %2350 = vmatpush1.bf16.msra.mxu0 0
        %2351 = vmatprep.subr.bf16.mxu0 0
        %2352 = vmatpush1.bf16.msra.mxu0 0
        %2353 = vmatprep.subr.bf16.mxu0 0
        %2354 = vmatpush1.bf16.msra.mxu0 0
        %2355 = vmatprep.subr.bf16.mxu0 0
        %2356 = vmatpush1.bf16.msra.mxu0 0
        %2357 = vmatprep.subr.bf16.mxu0 0
        %2358 = vmatpush1.bf16.msra.mxu0 0
        %2359 = vmatprep.subr.bf16.mxu0 0
        %2360 = vmatpush1.bf16.msra.mxu0 0
        %2361 = vmatprep.mubr.bf16.mxu0 0
        %2362 = vmatmul.mubr.bf16.gmra.mrb[0].mxu0 %v2327
        %v2363 = vpop.f32.mrb[0].mxu0
        %v2364 = vadd.f32 %v2312, %v2363
        %v2365 = vpop.f32.mrb[0].mxu0
        %v2366 = vpop.f32.mrb[0].mxu0
        %v2367 = vpop.f32.mrb[0].mxu0
        %2368 = vdwg.mxu0
        %v2369 = vpack.c.bf16 %v2364, %v2364
        %v2370 = vld [vmem:[%s14] sm:$0xf]
        %v2371 = vld [vmem:[%s14 + $0x4] sm:$0xf]
        %v2372 = vld [vmem:[%s14 + $0x8] sm:$0xf]
        %v2373 = vld [vmem:[%s14 + $0xc] sm:$0xf]
        %v2374 = vld [vmem:[%s15] sm:$0x1]
        %v2376 = vlaneseq
        %v2377 = vshrl.u32 %v2376, 7
        %v2378 = vsub.s32 0, %v2377
        %v2379 = vrot.slane %v2374, %v2378
        %v2385 = vunpack.c.l.b16 %v2370
        %v2386 = vunpack.c.l.b16 %v2371
        %v2387 = vunpack.c.l.b16 %v2372
        %v2388 = vunpack.c.l.b16 %v2373
        %v2389 = vpack.c.b16 %v2386, %v2385
        %v2390 = vpack.c.b16 %v2388, %v2387
        %v2394 = vsel %vm801, %v2302, 0
        %2396 = vmatprep.subr.bf16.mxu0 0
        %2397 = vmatpush1.bf16.msra.mxu0 %v2389
        %2398 = vmatprep.subr.bf16.mxu0 0
        %2399 = vmatpush1.bf16.msra.mxu0 %v2390
        %2400 = vmatprep.subr.bf16.mxu0 0
        %2401 = vmatpush1.bf16.msra.mxu0 0
        %2402 = vmatprep.subr.bf16.mxu0 0
        %2403 = vmatpush1.bf16.msra.mxu0 0
        %2404 = vmatprep.subr.bf16.mxu0 0
        %2405 = vmatpush1.bf16.msra.mxu0 0
        %2406 = vmatprep.subr.bf16.mxu0 0
        %2407 = vmatpush1.bf16.msra.mxu0 0
        %2408 = vmatprep.subr.bf16.mxu0 0
        %2409 = vmatpush1.bf16.msra.mxu0 0
        %2410 = vmatprep.subr.bf16.mxu0 0
        %2411 = vmatpush1.bf16.msra.mxu0 0
        %2412 = vmatprep.subr.bf16.mxu0 0
        %2413 = vmatpush1.bf16.msra.mxu0 0
        %2414 = vmatprep.subr.bf16.mxu0 0
        %2415 = vmatpush1.bf16.msra.mxu0 0
        %2416 = vmatprep.subr.bf16.mxu0 0
        %2417 = vmatpush1.bf16.msra.mxu0 0
        %2418 = vmatprep.subr.bf16.mxu0 0
        %2419 = vmatpush1.bf16.msra.mxu0 0
        %2420 = vmatprep.subr.bf16.mxu0 0
        %2421 = vmatpush1.bf16.msra.mxu0 0
        %2422 = vmatprep.subr.bf16.mxu0 0
        %2423 = vmatpush1.bf16.msra.mxu0 0
        %2424 = vmatprep.subr.bf16.mxu0 0
        %2425 = vmatpush1.bf16.msra.mxu0 0
        %2426 = vmatprep.subr.bf16.mxu0 0
        %2427 = vmatpush1.bf16.msra.mxu0 0
        %2428 = vmatprep.mubr.bf16.mxu0 0
        %2429 = vmatmul.mubr.bf16.gmra.mrb[0].mxu0 %v2394
        %v2430 = vpop.f32.mrb[0].mxu0
        %v2431 = vadd.f32 %v2379, %v2430
        %v2432 = vpop.f32.mrb[0].mxu0
        %v2433 = vpop.f32.mrb[0].mxu0
        %v2434 = vpop.f32.mrb[0].mxu0
        %2435 = vdwg.mxu0
        %v2436 = vpack.c.bf16 %v2431, %v2431
        %s2437 = scalar_lea.vmem %s14, 64
        %v2438 = vld [vmem:[%s2437] sm:$0xf]
        %v2439 = vld [vmem:[%s2437 + $0x4] sm:$0xf]
        %v2440 = vld [vmem:[%s2437 + $0x8] sm:$0xf]
        %v2441 = vld [vmem:[%s2437 + $0xc] sm:$0xf]
        %s2442 = scalar_lea.vmem %s15, 4
        %v2443 = vld [vmem:[%s2442] sm:$0x1]
        %v2445 = vlaneseq
        %v2446 = vshrl.u32 %v2445, 7
        %v2447 = vsub.s32 0, %v2446
        %v2448 = vrot.slane %v2443, %v2447
        %v2454 = vunpack.c.l.b16 %v2438
        %v2455 = vunpack.c.l.b16 %v2439
        %v2456 = vunpack.c.l.b16 %v2440
        %v2457 = vunpack.c.l.b16 %v2441
        %v2458 = vpack.c.b16 %v2455, %v2454
        %v2459 = vpack.c.b16 %v2457, %v2456
        %2462 = vmatprep.subr.bf16.mxu0 0
        %2463 = vmatpush1.bf16.msra.mxu0 %v2458
        %2464 = vmatprep.subr.bf16.mxu0 0
        %2465 = vmatpush1.bf16.msra.mxu0 %v2459
        %2466 = vmatprep.subr.bf16.mxu0 0
        %2467 = vmatpush1.bf16.msra.mxu0 0
        %2468 = vmatprep.subr.bf16.mxu0 0
        %2469 = vmatpush1.bf16.msra.mxu0 0
        %2470 = vmatprep.subr.bf16.mxu0 0
        %2471 = vmatpush1.bf16.msra.mxu0 0
        %2472 = vmatprep.subr.bf16.mxu0 0
        %2473 = vmatpush1.bf16.msra.mxu0 0
        %2474 = vmatprep.subr.bf16.mxu0 0
        %2475 = vmatpush1.bf16.msra.mxu0 0
        %2476 = vmatprep.subr.bf16.mxu0 0
        %2477 = vmatpush1.bf16.msra.mxu0 0
        %2478 = vmatprep.subr.bf16.mxu0 0
        %2479 = vmatpush1.bf16.msra.mxu0 0
        %2480 = vmatprep.subr.bf16.mxu0 0
        %2481 = vmatpush1.bf16.msra.mxu0 0
        %2482 = vmatprep.subr.bf16.mxu0 0
        %2483 = vmatpush1.bf16.msra.mxu0 0
        %2484 = vmatprep.subr.bf16.mxu0 0
        %2485 = vmatpush1.bf16.msra.mxu0 0
        %2486 = vmatprep.subr.bf16.mxu0 0
        %2487 = vmatpush1.bf16.msra.mxu0 0
        %2488 = vmatprep.subr.bf16.mxu0 0
        %2489 = vmatpush1.bf16.msra.mxu0 0
        %2490 = vmatprep.subr.bf16.mxu0 0
        %2491 = vmatpush1.bf16.msra.mxu0 0
        %2492 = vmatprep.subr.bf16.mxu0 0
        %2493 = vmatpush1.bf16.msra.mxu0 0
        %2494 = vmatprep.mubr.bf16.mxu0 0
        %2495 = vmatmul.mubr.bf16.gmra.mrb[0].mxu0 %v2394
        %v2496 = vpop.f32.mrb[0].mxu0
        %v2497 = vadd.f32 %v2448, %v2496
        %v2498 = vpop.f32.mrb[0].mxu0
        %v2499 = vpop.f32.mrb[0].mxu0
        %v2500 = vpop.f32.mrb[0].mxu0
        %2501 = vdwg.mxu0
        %v2502 = vpack.c.bf16 %v2497, %v2497
        %v2504 = vlaneseq
        %v2505 = vshrl.u32 %v2504, 7
        %v2506 = vsub.s32 0, %v2505
        %v2507 = vrot.slane %v798, %v2506
        %v2510 = vsel %vm1030, %v2369, 0
        %v2513 = vsel %vm1030, %v2436, 0
        %2515 = vmatprep.subr.bf16.mxu0 0
        %2516 = vmatpush1.bf16.xpose.msra.mxu0 %v2513
        %2517 = vmatprep.subr.bf16.mxu0 0
        %2518 = vmatpush1.bf16.xpose.msra.mxu0 0
        %2519 = vmatprep.subr.bf16.mxu0 0
        %2520 = vmatpush1.bf16.xpose.msra.mxu0 0
        %2521 = vmatprep.subr.bf16.mxu0 0
        %2522 = vmatpush1.bf16.xpose.msra.mxu0 0
        %2523 = vmatprep.subr.bf16.mxu0 0
        %2524 = vmatpush1.bf16.xpose.msra.mxu0 0
        %2525 = vmatprep.subr.bf16.mxu0 0
        %2526 = vmatpush1.bf16.xpose.msra.mxu0 0
        %2527 = vmatprep.subr.bf16.mxu0 0
        %2528 = vmatpush1.bf16.xpose.msra.mxu0 0
        %2529 = vmatprep.subr.bf16.mxu0 0
        %2530 = vmatpush1.bf16.xpose.msra.mxu0 0
        %2531 = vmatprep.subr.bf16.mxu0 0
        %2532 = vmatpush1.bf16.xpose.msra.mxu0 0
        %2533 = vmatprep.subr.bf16.mxu0 0
        %2534 = vmatpush1.bf16.xpose.msra.mxu0 0
        %2535 = vmatprep.subr.bf16.mxu0 0
        %2536 = vmatpush1.bf16.xpose.msra.mxu0 0
        %2537 = vmatprep.subr.bf16.mxu0 0
        %2538 = vmatpush1.bf16.xpose.msra.mxu0 0
        %2539 = vmatprep.subr.bf16.mxu0 0
        %2540 = vmatpush1.bf16.xpose.msra.mxu0 0
        %2541 = vmatprep.subr.bf16.mxu0 0
        %2542 = vmatpush1.bf16.xpose.msra.mxu0 0
        %2543 = vmatprep.subr.bf16.mxu0 0
        %2544 = vmatpush1.bf16.xpose.msra.mxu0 0
        %2545 = vmatprep.subr.bf16.mxu0 0
        %2546 = vmatpush1.bf16.xpose.msra.mxu0 0
        %2547 = vmatprep.mubr.bf16.mxu0 0
        %2548 = vmatmul.mubr.bf16.gmra.mrb[0].mxu0 %v2510
        %v2549 = vpop.f32.mrb[0].mxu0
        %v2550 = vadd.f32 %v2507, %v2549
        %v2551 = vpop.f32.mrb[0].mxu0
        %v2552 = vpop.f32.mrb[0].mxu0
        %v2553 = vpop.f32.mrb[0].mxu0
        %2554 = vdwg.mxu0
        %v2555 = vsel %vm1030, %v2550, -inf
        %2556 = vmax.xlane.f32.xlu0 %v2555
        %v2557 = vpop.xlane.xlu0 %2556
        %v2558 = vsub.f32 -inf, %v2557
        %v2559 = vmul.f32 %v2558, 1.442695
        %v2560 = vpow.pop %v2559
        %v2561 = vsub.f32 %v2550, %v2557
        %v2562 = vmul.f32 %v2561, 1.442695
        %v2563 = vpow.pop %v2562
        %v2564 = vmul.f32 %v2560, 0.0
        %v2565 = vsel %vm1030, %v2563, 0.0
        %2566 = vadd.xlane.f32.xlu0 %v2565
        %v2567 = vpop.xlane.xlu0 %2566
        %v2568 = vadd.f32 %v2564, %v2567
        %v2569 = vpack.c.bf16 %v2563, %v2563
        %v2571 = vsel %vm1030, %v2569, 0
        %v2574 = vsel %vm1095, %v2502, 0
        %2576 = vmatprep.subr.bf16.mxu0 0
        %2577 = vmatpush1.bf16.msra.mxu0 %v2574
        %2578 = vmatprep.subr.bf16.mxu0 0
        %2579 = vmatpush1.bf16.msra.mxu0 0
        %2580 = vmatprep.subr.bf16.mxu0 0
        %2581 = vmatpush1.bf16.msra.mxu0 0
        %2582 = vmatprep.subr.bf16.mxu0 0
        %2583 = vmatpush1.bf16.msra.mxu0 0
        %2584 = vmatprep.subr.bf16.mxu0 0
        %2585 = vmatpush1.bf16.msra.mxu0 0
        %2586 = vmatprep.subr.bf16.mxu0 0
        %2587 = vmatpush1.bf16.msra.mxu0 0
        %2588 = vmatprep.subr.bf16.mxu0 0
        %2589 = vmatpush1.bf16.msra.mxu0 0
        %2590 = vmatprep.subr.bf16.mxu0 0
        %2591 = vmatpush1.bf16.msra.mxu0 0
        %2592 = vmatprep.subr.bf16.mxu0 0
        %2593 = vmatpush1.bf16.msra.mxu0 0
        %2594 = vmatprep.subr.bf16.mxu0 0
        %2595 = vmatpush1.bf16.msra.mxu0 0
        %2596 = vmatprep.subr.bf16.mxu0 0
        %2597 = vmatpush1.bf16.msra.mxu0 0
        %2598 = vmatprep.subr.bf16.mxu0 0
        %2599 = vmatpush1.bf16.msra.mxu0 0
        %2600 = vmatprep.subr.bf16.mxu0 0
        %2601 = vmatpush1.bf16.msra.mxu0 0
        %2602 = vmatprep.subr.bf16.mxu0 0
        %2603 = vmatpush1.bf16.msra.mxu0 0
        %2604 = vmatprep.subr.bf16.mxu0 0
        %2605 = vmatpush1.bf16.msra.mxu0 0
        %2606 = vmatprep.subr.bf16.mxu0 0
        %2607 = vmatpush1.bf16.msra.mxu0 0
        %2608 = vmatprep.mubr.bf16.mxu0 0
        %2609 = vmatmul.mubr.bf16.gmra.mrb[0].mxu0 %v2571
        %v2610 = vpop.f32.mrb[0].mxu0
        %v2611 = vadd.f32 0.0, %v2610
        %v2612 = vpop.f32.mrb[0].mxu0
        %v2613 = vpop.f32.mrb[0].mxu0
        %v2614 = vpop.f32.mrb[0].mxu0
        %2615 = vdwg.mxu0
        %v2616 = vadd.f32 %v2564, %v2611
        %v2617 = vrcp.pop %v2568
        %v2618 = vmul.f32 %v2616, %v2617
        %v2619 = vpack.c.bf16 %v2618, %v2618
        %v2620 = vld [vmem:[%s16] sm:$0xf]
        %s2621 = scalar_lea.vmem %s12, 16
        %v2622 = vld [vmem:[%s2621] sm:$0xf]
        %v2623 = vld [vmem:[%s2621 + $0x4] sm:$0xf]
        %v2624 = vld [vmem:[%s2621 + $0x8] sm:$0xf]
        %v2625 = vld [vmem:[%s2621 + $0xc] sm:$0xf]
        %s2626 = scalar_lea.vmem %s13, 1
        %v2627 = vld [vmem:[%s2626] sm:$0x1]
        %v2629 = vlaneseq
        %v2630 = vshrl.u32 %v2629, 7
        %v2631 = vsub.s32 0, %v2630
        %v2632 = vrot.slane %v2627, %v2631
        %v2638 = vunpack.c.l.b16 %v2622
        %v2639 = vunpack.c.l.b16 %v2623
        %v2640 = vunpack.c.l.b16 %v2624
        %v2641 = vunpack.c.l.b16 %v2625
        %v2642 = vpack.c.b16 %v2639, %v2638
        %v2643 = vpack.c.b16 %v2641, %v2640
        %2646 = vmatprep.subr.bf16.mxu0 0
        %2647 = vmatpush1.bf16.msra.mxu0 %v2642
        %2648 = vmatprep.subr.bf16.mxu0 0
        %2649 = vmatpush1.bf16.msra.mxu0 %v2643
        %2650 = vmatprep.subr.bf16.mxu0 0
        %2651 = vmatpush1.bf16.msra.mxu0 0
        %2652 = vmatprep.subr.bf16.mxu0 0
        %2653 = vmatpush1.bf16.msra.mxu0 0
        %2654 = vmatprep.subr.bf16.mxu0 0
        %2655 = vmatpush1.bf16.msra.mxu0 0
        %2656 = vmatprep.subr.bf16.mxu0 0
        %2657 = vmatpush1.bf16.msra.mxu0 0
        %2658 = vmatprep.subr.bf16.mxu0 0
        %2659 = vmatpush1.bf16.msra.mxu0 0
        %2660 = vmatprep.subr.bf16.mxu0 0
        %2661 = vmatpush1.bf16.msra.mxu0 0
        %2662 = vmatprep.subr.bf16.mxu0 0
        %2663 = vmatpush1.bf16.msra.mxu0 0
        %2664 = vmatprep.subr.bf16.mxu0 0
        %2665 = vmatpush1.bf16.msra.mxu0 0
        %2666 = vmatprep.subr.bf16.mxu0 0
        %2667 = vmatpush1.bf16.msra.mxu0 0
        %2668 = vmatprep.subr.bf16.mxu0 0
        %2669 = vmatpush1.bf16.msra.mxu0 0
        %2670 = vmatprep.subr.bf16.mxu0 0
        %2671 = vmatpush1.bf16.msra.mxu0 0
        %2672 = vmatprep.subr.bf16.mxu0 0
        %2673 = vmatpush1.bf16.msra.mxu0 0
        %2674 = vmatprep.subr.bf16.mxu0 0
        %2675 = vmatpush1.bf16.msra.mxu0 0
        %2676 = vmatprep.subr.bf16.mxu0 0
        %2677 = vmatpush1.bf16.msra.mxu0 0
        %2678 = vmatprep.mubr.bf16.mxu0 0
        %2679 = vmatmul.mubr.bf16.gmra.mrb[0].mxu0 %v2327
        %v2680 = vpop.f32.mrb[0].mxu0
        %v2681 = vadd.f32 %v2632, %v2680
        %v2682 = vpop.f32.mrb[0].mxu0
        %v2683 = vpop.f32.mrb[0].mxu0
        %v2684 = vpop.f32.mrb[0].mxu0
        %2685 = vdwg.mxu0
        %v2686 = vpack.c.bf16 %v2681, %v2681
        %s2687 = scalar_lea.vmem %s14, 16
        %v2688 = vld [vmem:[%s2687] sm:$0xf]
        %v2689 = vld [vmem:[%s2687 + $0x4] sm:$0xf]
        %v2690 = vld [vmem:[%s2687 + $0x8] sm:$0xf]
        %v2691 = vld [vmem:[%s2687 + $0xc] sm:$0xf]
        %s2692 = scalar_lea.vmem %s15, 1
        %v2693 = vld [vmem:[%s2692] sm:$0x1]
        %v2695 = vlaneseq
        %v2696 = vshrl.u32 %v2695, 7
        %v2697 = vsub.s32 0, %v2696
        %v2698 = vrot.slane %v2693, %v2697
        %v2704 = vunpack.c.l.b16 %v2688
        %v2705 = vunpack.c.l.b16 %v2689
        %v2706 = vunpack.c.l.b16 %v2690
        %v2707 = vunpack.c.l.b16 %v2691
        %v2708 = vpack.c.b16 %v2705, %v2704
        %v2709 = vpack.c.b16 %v2707, %v2706
        %2712 = vmatprep.subr.bf16.mxu0 0
        %2713 = vmatpush1.bf16.msra.mxu0 %v2708
        %2714 = vmatprep.subr.bf16.mxu0 0
        %2715 = vmatpush1.bf16.msra.mxu0 %v2709
        %2716 = vmatprep.subr.bf16.mxu0 0
        %2717 = vmatpush1.bf16.msra.mxu0 0
        %2718 = vmatprep.subr.bf16.mxu0 0
        %2719 = vmatpush1.bf16.msra.mxu0 0
        %2720 = vmatprep.subr.bf16.mxu0 0
        %2721 = vmatpush1.bf16.msra.mxu0 0
        %2722 = vmatprep.subr.bf16.mxu0 0
        %2723 = vmatpush1.bf16.msra.mxu0 0
        %2724 = vmatprep.subr.bf16.mxu0 0
        %2725 = vmatpush1.bf16.msra.mxu0 0
        %2726 = vmatprep.subr.bf16.mxu0 0
        %2727 = vmatpush1.bf16.msra.mxu0 0
        %2728 = vmatprep.subr.bf16.mxu0 0
        %2729 = vmatpush1.bf16.msra.mxu0 0
        %2730 = vmatprep.subr.bf16.mxu0 0
        %2731 = vmatpush1.bf16.msra.mxu0 0
        %2732 = vmatprep.subr.bf16.mxu0 0
        %2733 = vmatpush1.bf16.msra.mxu0 0
        %2734 = vmatprep.subr.bf16.mxu0 0
        %2735 = vmatpush1.bf16.msra.mxu0 0
        %2736 = vmatprep.subr.bf16.mxu0 0
        %2737 = vmatpush1.bf16.msra.mxu0 0
        %2738 = vmatprep.subr.bf16.mxu0 0
        %2739 = vmatpush1.bf16.msra.mxu0 0
        %2740 = vmatprep.subr.bf16.mxu0 0
        %2741 = vmatpush1.bf16.msra.mxu0 0
        %2742 = vmatprep.subr.bf16.mxu0 0
        %2743 = vmatpush1.bf16.msra.mxu0 0
        %2744 = vmatprep.mubr.bf16.mxu0 0
        %2745 = vmatmul.mubr.bf16.gmra.mrb[0].mxu0 %v2394
        %v2746 = vpop.f32.mrb[0].mxu0
        %v2747 = vadd.f32 %v2698, %v2746
        %v2748 = vpop.f32.mrb[0].mxu0
        %v2749 = vpop.f32.mrb[0].mxu0
        %v2750 = vpop.f32.mrb[0].mxu0
        %2751 = vdwg.mxu0
        %v2752 = vpack.c.bf16 %v2747, %v2747
        %s2753 = scalar_lea.vmem %s14, 80
        %v2754 = vld [vmem:[%s2753] sm:$0xf]
        %v2755 = vld [vmem:[%s2753 + $0x4] sm:$0xf]
        %v2756 = vld [vmem:[%s2753 + $0x8] sm:$0xf]
        %v2757 = vld [vmem:[%s2753 + $0xc] sm:$0xf]
        %s2758 = scalar_lea.vmem %s15, 5
        %v2759 = vld [vmem:[%s2758] sm:$0x1]
        %v2761 = vlaneseq
        %v2762 = vshrl.u32 %v2761, 7
        %v2763 = vsub.s32 0, %v2762
        %v2764 = vrot.slane %v2759, %v2763
        %v2770 = vunpack.c.l.b16 %v2754
        %v2771 = vunpack.c.l.b16 %v2755
        %v2772 = vunpack.c.l.b16 %v2756
        %v2773 = vunpack.c.l.b16 %v2757
        %v2774 = vpack.c.b16 %v2771, %v2770
        %v2775 = vpack.c.b16 %v2773, %v2772
        %2778 = vmatprep.subr.bf16.mxu0 0
        %2779 = vmatpush1.bf16.msra.mxu0 %v2774
        %2780 = vmatprep.subr.bf16.mxu0 0
        %2781 = vmatpush1.bf16.msra.mxu0 %v2775
        %2782 = vmatprep.subr.bf16.mxu0 0
        %2783 = vmatpush1.bf16.msra.mxu0 0
        %2784 = vmatprep.subr.bf16.mxu0 0
        %2785 = vmatpush1.bf16.msra.mxu0 0
        %2786 = vmatprep.subr.bf16.mxu0 0
        %2787 = vmatpush1.bf16.msra.mxu0 0
        %2788 = vmatprep.subr.bf16.mxu0 0
        %2789 = vmatpush1.bf16.msra.mxu0 0
        %2790 = vmatprep.subr.bf16.mxu0 0
        %2791 = vmatpush1.bf16.msra.mxu0 0
        %2792 = vmatprep.subr.bf16.mxu0 0
        %2793 = vmatpush1.bf16.msra.mxu0 0
        %2794 = vmatprep.subr.bf16.mxu0 0
        %2795 = vmatpush1.bf16.msra.mxu0 0
        %2796 = vmatprep.subr.bf16.mxu0 0
        %2797 = vmatpush1.bf16.msra.mxu0 0
        %2798 = vmatprep.subr.bf16.mxu0 0
        %2799 = vmatpush1.bf16.msra.mxu0 0
        %2800 = vmatprep.subr.bf16.mxu0 0
        %2801 = vmatpush1.bf16.msra.mxu0 0
        %2802 = vmatprep.subr.bf16.mxu0 0
        %2803 = vmatpush1.bf16.msra.mxu0 0
        %2804 = vmatprep.subr.bf16.mxu0 0
        %2805 = vmatpush1.bf16.msra.mxu0 0
        %2806 = vmatprep.subr.bf16.mxu0 0
        %2807 = vmatpush1.bf16.msra.mxu0 0
        %2808 = vmatprep.subr.bf16.mxu0 0
        %2809 = vmatpush1.bf16.msra.mxu0 0
        %2810 = vmatprep.mubr.bf16.mxu0 0
        %2811 = vmatmul.mubr.bf16.gmra.mrb[0].mxu0 %v2394
        %v2812 = vpop.f32.mrb[0].mxu0
        %v2813 = vadd.f32 %v2764, %v2812
        %v2814 = vpop.f32.mrb[0].mxu0
        %v2815 = vpop.f32.mrb[0].mxu0
        %v2816 = vpop.f32.mrb[0].mxu0
        %2817 = vdwg.mxu0
        %v2818 = vpack.c.bf16 %v2813, %v2813
        %v2820 = vsel %vm1030, %v2686, 0
        %v2823 = vsel %vm1030, %v2752, 0
        %2825 = vmatprep.subr.bf16.mxu0 0
        %2826 = vmatpush1.bf16.xpose.msra.mxu0 %v2823
        %2827 = vmatprep.subr.bf16.mxu0 0
        %2828 = vmatpush1.bf16.xpose.msra.mxu0 0
        %2829 = vmatprep.subr.bf16.mxu0 0
        %2830 = vmatpush1.bf16.xpose.msra.mxu0 0
        %2831 = vmatprep.subr.bf16.mxu0 0
        %2832 = vmatpush1.bf16.xpose.msra.mxu0 0
        %2833 = vmatprep.subr.bf16.mxu0 0
        %2834 = vmatpush1.bf16.xpose.msra.mxu0 0
        %2835 = vmatprep.subr.bf16.mxu0 0
        %2836 = vmatpush1.bf16.xpose.msra.mxu0 0
        %2837 = vmatprep.subr.bf16.mxu0 0
        %2838 = vmatpush1.bf16.xpose.msra.mxu0 0
        %2839 = vmatprep.subr.bf16.mxu0 0
        %2840 = vmatpush1.bf16.xpose.msra.mxu0 0
        %2841 = vmatprep.subr.bf16.mxu0 0
        %2842 = vmatpush1.bf16.xpose.msra.mxu0 0
        %2843 = vmatprep.subr.bf16.mxu0 0
        %2844 = vmatpush1.bf16.xpose.msra.mxu0 0
        %2845 = vmatprep.subr.bf16.mxu0 0
        %2846 = vmatpush1.bf16.xpose.msra.mxu0 0
        %2847 = vmatprep.subr.bf16.mxu0 0
        %2848 = vmatpush1.bf16.xpose.msra.mxu0 0
        %2849 = vmatprep.subr.bf16.mxu0 0
        %2850 = vmatpush1.bf16.xpose.msra.mxu0 0
        %2851 = vmatprep.subr.bf16.mxu0 0
        %2852 = vmatpush1.bf16.xpose.msra.mxu0 0
        %2853 = vmatprep.subr.bf16.mxu0 0
        %2854 = vmatpush1.bf16.xpose.msra.mxu0 0
        %2855 = vmatprep.subr.bf16.mxu0 0
        %2856 = vmatpush1.bf16.xpose.msra.mxu0 0
        %2857 = vmatprep.mubr.bf16.mxu0 0
        %2858 = vmatmul.mubr.bf16.gmra.mrb[0].mxu0 %v2820
        %v2859 = vpop.f32.mrb[0].mxu0
        %v2860 = vadd.f32 %v2507, %v2859
        %v2861 = vpop.f32.mrb[0].mxu0
        %v2862 = vpop.f32.mrb[0].mxu0
        %v2863 = vpop.f32.mrb[0].mxu0
        %2864 = vdwg.mxu0
        %v2865 = vsel %vm1030, %v2860, -inf
        %2866 = vmax.xlane.f32.xlu0 %v2865
        %v2867 = vpop.xlane.xlu0 %2866
        %v2868 = vsub.f32 -inf, %v2867
        %v2869 = vmul.f32 %v2868, 1.442695
        %v2870 = vpow.pop %v2869
        %v2871 = vsub.f32 %v2860, %v2867
        %v2872 = vmul.f32 %v2871, 1.442695
        %v2873 = vpow.pop %v2872
        %v2874 = vmul.f32 %v2870, 0.0
        %v2875 = vsel %vm1030, %v2873, 0.0
        %2876 = vadd.xlane.f32.xlu0 %v2875
        %v2877 = vpop.xlane.xlu0 %2876
        %v2878 = vadd.f32 %v2874, %v2877
        %v2879 = vpack.c.bf16 %v2873, %v2873
        %v2881 = vsel %vm1030, %v2879, 0
        %v2884 = vsel %vm1095, %v2818, 0
        %2886 = vmatprep.subr.bf16.mxu0 0
        %2887 = vmatpush1.bf16.msra.mxu0 %v2884
        %2888 = vmatprep.subr.bf16.mxu0 0
        %2889 = vmatpush1.bf16.msra.mxu0 0
        %2890 = vmatprep.subr.bf16.mxu0 0
        %2891 = vmatpush1.bf16.msra.mxu0 0
        %2892 = vmatprep.subr.bf16.mxu0 0
        %2893 = vmatpush1.bf16.msra.mxu0 0
        %2894 = vmatprep.subr.bf16.mxu0 0
        %2895 = vmatpush1.bf16.msra.mxu0 0
        %2896 = vmatprep.subr.bf16.mxu0 0
        %2897 = vmatpush1.bf16.msra.mxu0 0
        %2898 = vmatprep.subr.bf16.mxu0 0
        %2899 = vmatpush1.bf16.msra.mxu0 0
        %2900 = vmatprep.subr.bf16.mxu0 0
        %2901 = vmatpush1.bf16.msra.mxu0 0
        %2902 = vmatprep.subr.bf16.mxu0 0
        %2903 = vmatpush1.bf16.msra.mxu0 0
        %2904 = vmatprep.subr.bf16.mxu0 0
        %2905 = vmatpush1.bf16.msra.mxu0 0
        %2906 = vmatprep.subr.bf16.mxu0 0
        %2907 = vmatpush1.bf16.msra.mxu0 0
        %2908 = vmatprep.subr.bf16.mxu0 0
        %2909 = vmatpush1.bf16.msra.mxu0 0
        %2910 = vmatprep.subr.bf16.mxu0 0
        %2911 = vmatpush1.bf16.msra.mxu0 0
        %2912 = vmatprep.subr.bf16.mxu0 0
        %2913 = vmatpush1.bf16.msra.mxu0 0
        %2914 = vmatprep.subr.bf16.mxu0 0
        %2915 = vmatpush1.bf16.msra.mxu0 0
        %2916 = vmatprep.subr.bf16.mxu0 0
        %2917 = vmatpush1.bf16.msra.mxu0 0
        %2918 = vmatprep.mubr.bf16.mxu0 0
        %2919 = vmatmul.mubr.bf16.gmra.mrb[0].mxu0 %v2881
        %v2920 = vpop.f32.mrb[0].mxu0
        %v2921 = vadd.f32 0.0, %v2920
        %v2922 = vpop.f32.mrb[0].mxu0
        %v2923 = vpop.f32.mrb[0].mxu0
        %v2924 = vpop.f32.mrb[0].mxu0
        %2925 = vdwg.mxu0
        %v2926 = vadd.f32 %v2874, %v2921
        %v2927 = vrcp.pop %v2878
        %v2928 = vmul.f32 %v2926, %v2927
        %v2929 = vpack.c.bf16 %v2928, %v2928
        %s2930 = scalar_lea.vmem %s16, 4
        %v2931 = vld [vmem:[%s2930] sm:$0xf]
        %v2933 = vsel %vm1030, %v2929, 0
        %v2936 = vsel %vm1095, %v2931, 0
        %2938 = vmatprep.subr.bf16.mxu0 0
        %2939 = vmatpush1.bf16.msra.mxu0 %v2936
        %2940 = vmatprep.subr.bf16.mxu0 0
        %2941 = vmatpush1.bf16.msra.mxu0 0
        %2942 = vmatprep.subr.bf16.mxu0 0
        %2943 = vmatpush1.bf16.msra.mxu0 0
        %2944 = vmatprep.subr.bf16.mxu0 0
        %2945 = vmatpush1.bf16.msra.mxu0 0
        %2946 = vmatprep.subr.bf16.mxu0 0
        %2947 = vmatpush1.bf16.msra.mxu0 0
        %2948 = vmatprep.subr.bf16.mxu0 0
        %2949 = vmatpush1.bf16.msra.mxu0 0
        %2950 = vmatprep.subr.bf16.mxu0 0
        %2951 = vmatpush1.bf16.msra.mxu0 0
        %2952 = vmatprep.subr.bf16.mxu0 0
        %2953 = vmatpush1.bf16.msra.mxu0 0
        %2954 = vmatprep.subr.bf16.mxu0 0
        %2955 = vmatpush1.bf16.msra.mxu0 0
        %2956 = vmatprep.subr.bf16.mxu0 0
        %2957 = vmatpush1.bf16.msra.mxu0 0
        %2958 = vmatprep.subr.bf16.mxu0 0
        %2959 = vmatpush1.bf16.msra.mxu0 0
        %2960 = vmatprep.subr.bf16.mxu0 0
        %2961 = vmatpush1.bf16.msra.mxu0 0
        %2962 = vmatprep.subr.bf16.mxu0 0
        %2963 = vmatpush1.bf16.msra.mxu0 0
        %2964 = vmatprep.subr.bf16.mxu0 0
        %2965 = vmatpush1.bf16.msra.mxu0 0
        %2966 = vmatprep.subr.bf16.mxu0 0
        %2967 = vmatpush1.bf16.msra.mxu0 0
        %2968 = vmatprep.subr.bf16.mxu0 0
        %2969 = vmatpush1.bf16.msra.mxu0 0
        %2970 = vmatprep.mubr.bf16.mxu0 0
        %2971 = vmatmul.mubr.bf16.gmra.mrb[0].mxu0 %v2933
        %v2972 = vpop.f32.mrb[0].mxu0
        %v2973 = vadd.f32 0.0, %v2972
        %v2974 = vpop.f32.mrb[0].mxu0
        %v2975 = vpop.f32.mrb[0].mxu0
        %v2976 = vpop.f32.mrb[0].mxu0
        %2977 = vdwg.mxu0
        %v2979 = vsel %vm1030, %v2619, 0
        %v2982 = vsel %vm1095, %v2620, 0
        %2984 = vmatprep.subr.bf16.mxu0 0
        %2985 = vmatpush1.bf16.msra.mxu0 %v2982
        %2986 = vmatprep.subr.bf16.mxu0 0
        %2987 = vmatpush1.bf16.msra.mxu0 0
        %2988 = vmatprep.subr.bf16.mxu0 0
        %2989 = vmatpush1.bf16.msra.mxu0 0
        %2990 = vmatprep.subr.bf16.mxu0 0
        %2991 = vmatpush1.bf16.msra.mxu0 0
        %2992 = vmatprep.subr.bf16.mxu0 0
        %2993 = vmatpush1.bf16.msra.mxu0 0
        %2994 = vmatprep.subr.bf16.mxu0 0
        %2995 = vmatpush1.bf16.msra.mxu0 0
        %2996 = vmatprep.subr.bf16.mxu0 0
        %2997 = vmatpush1.bf16.msra.mxu0 0
        %2998 = vmatprep.subr.bf16.mxu0 0
        %2999 = vmatpush1.bf16.msra.mxu0 0
        %3000 = vmatprep.subr.bf16.mxu0 0
        %3001 = vmatpush1.bf16.msra.mxu0 0
        %3002 = vmatprep.subr.bf16.mxu0 0
        %3003 = vmatpush1.bf16.msra.mxu0 0
        %3004 = vmatprep.subr.bf16.mxu0 0
        %3005 = vmatpush1.bf16.msra.mxu0 0
        %3006 = vmatprep.subr.bf16.mxu0 0
        %3007 = vmatpush1.bf16.msra.mxu0 0
        %3008 = vmatprep.subr.bf16.mxu0 0
        %3009 = vmatpush1.bf16.msra.mxu0 0
        %3010 = vmatprep.subr.bf16.mxu0 0
        %3011 = vmatpush1.bf16.msra.mxu0 0
        %3012 = vmatprep.subr.bf16.mxu0 0
        %3013 = vmatpush1.bf16.msra.mxu0 0
        %3014 = vmatprep.subr.bf16.mxu0 0
        %3015 = vmatpush1.bf16.msra.mxu0 0
        %3016 = vmatprep.mubr.bf16.mxu0 0
        %3017 = vmatmul.mubr.bf16.gmra.mrb[0].mxu0 %v2979
        %v3018 = vpop.f32.mrb[0].mxu0
        %v3019 = vadd.f32 %v2973, %v3018
        %v3020 = vpop.f32.mrb[0].mxu0
        %v3021 = vpop.f32.mrb[0].mxu0
        %v3022 = vpop.f32.mrb[0].mxu0
        %3023 = vdwg.mxu0
        %s3024 = scalar_lea.vmem %s12, 32
        %v3025 = vld [vmem:[%s3024] sm:$0xf]
        %v3026 = vld [vmem:[%s3024 + $0x4] sm:$0xf]
        %v3027 = vld [vmem:[%s3024 + $0x8] sm:$0xf]
        %v3028 = vld [vmem:[%s3024 + $0xc] sm:$0xf]
        %s3029 = scalar_lea.vmem %s13, 2
        %v3030 = vld [vmem:[%s3029] sm:$0x1]
        %v3032 = vlaneseq
        %v3033 = vshrl.u32 %v3032, 7
        %v3034 = vsub.s32 0, %v3033
        %v3035 = vrot.slane %v3030, %v3034
        %v3041 = vunpack.c.l.b16 %v3025
        %v3042 = vunpack.c.l.b16 %v3026
        %v3043 = vunpack.c.l.b16 %v3027
        %v3044 = vunpack.c.l.b16 %v3028
        %v3045 = vpack.c.b16 %v3042, %v3041
        %v3046 = vpack.c.b16 %v3044, %v3043
        %3049 = vmatprep.subr.bf16.mxu0 0
        %3050 = vmatpush1.bf16.msra.mxu0 %v3045
        %3051 = vmatprep.subr.bf16.mxu0 0
        %3052 = vmatpush1.bf16.msra.mxu0 %v3046
        %3053 = vmatprep.subr.bf16.mxu0 0
        %3054 = vmatpush1.bf16.msra.mxu0 0
        %3055 = vmatprep.subr.bf16.mxu0 0
        %3056 = vmatpush1.bf16.msra.mxu0 0
        %3057 = vmatprep.subr.bf16.mxu0 0
        %3058 = vmatpush1.bf16.msra.mxu0 0
        %3059 = vmatprep.subr.bf16.mxu0 0
        %3060 = vmatpush1.bf16.msra.mxu0 0
        %3061 = vmatprep.subr.bf16.mxu0 0
        %3062 = vmatpush1.bf16.msra.mxu0 0
        %3063 = vmatprep.subr.bf16.mxu0 0
        %3064 = vmatpush1.bf16.msra.mxu0 0
        %3065 = vmatprep.subr.bf16.mxu0 0
        %3066 = vmatpush1.bf16.msra.mxu0 0
        %3067 = vmatprep.subr.bf16.mxu0 0
        %3068 = vmatpush1.bf16.msra.mxu0 0
        %3069 = vmatprep.subr.bf16.mxu0 0
        %3070 = vmatpush1.bf16.msra.mxu0 0
        %3071 = vmatprep.subr.bf16.mxu0 0
        %3072 = vmatpush1.bf16.msra.mxu0 0
        %3073 = vmatprep.subr.bf16.mxu0 0
        %3074 = vmatpush1.bf16.msra.mxu0 0
        %3075 = vmatprep.subr.bf16.mxu0 0
        %3076 = vmatpush1.bf16.msra.mxu0 0
        %3077 = vmatprep.subr.bf16.mxu0 0
        %3078 = vmatpush1.bf16.msra.mxu0 0
        %3079 = vmatprep.subr.bf16.mxu0 0
        %3080 = vmatpush1.bf16.msra.mxu0 0
        %3081 = vmatprep.mubr.bf16.mxu0 0
        %3082 = vmatmul.mubr.bf16.gmra.mrb[0].mxu0 %v2327
        %v3083 = vpop.f32.mrb[0].mxu0
        %v3084 = vadd.f32 %v3035, %v3083
        %v3085 = vpop.f32.mrb[0].mxu0
        %v3086 = vpop.f32.mrb[0].mxu0
        %v3087 = vpop.f32.mrb[0].mxu0
        %3088 = vdwg.mxu0
        %v3089 = vpack.c.bf16 %v3084, %v3084
        %s3090 = scalar_lea.vmem %s14, 32
        %v3091 = vld [vmem:[%s3090] sm:$0xf]
        %v3092 = vld [vmem:[%s3090 + $0x4] sm:$0xf]
        %v3093 = vld [vmem:[%s3090 + $0x8] sm:$0xf]
        %v3094 = vld [vmem:[%s3090 + $0xc] sm:$0xf]
        %s3095 = scalar_lea.vmem %s15, 2
        %v3096 = vld [vmem:[%s3095] sm:$0x1]
        %v3098 = vlaneseq
        %v3099 = vshrl.u32 %v3098, 7
        %v3100 = vsub.s32 0, %v3099
        %v3101 = vrot.slane %v3096, %v3100
        %v3107 = vunpack.c.l.b16 %v3091
        %v3108 = vunpack.c.l.b16 %v3092
        %v3109 = vunpack.c.l.b16 %v3093
        %v3110 = vunpack.c.l.b16 %v3094
        %v3111 = vpack.c.b16 %v3108, %v3107
        %v3112 = vpack.c.b16 %v3110, %v3109
        %3115 = vmatprep.subr.bf16.mxu0 0
        %3116 = vmatpush1.bf16.msra.mxu0 %v3111
        %3117 = vmatprep.subr.bf16.mxu0 0
        %3118 = vmatpush1.bf16.msra.mxu0 %v3112
        %3119 = vmatprep.subr.bf16.mxu0 0
        %3120 = vmatpush1.bf16.msra.mxu0 0
        %3121 = vmatprep.subr.bf16.mxu0 0
        %3122 = vmatpush1.bf16.msra.mxu0 0
        %3123 = vmatprep.subr.bf16.mxu0 0
        %3124 = vmatpush1.bf16.msra.mxu0 0
        %3125 = vmatprep.subr.bf16.mxu0 0
        %3126 = vmatpush1.bf16.msra.mxu0 0
        %3127 = vmatprep.subr.bf16.mxu0 0
        %3128 = vmatpush1.bf16.msra.mxu0 0
        %3129 = vmatprep.subr.bf16.mxu0 0
        %3130 = vmatpush1.bf16.msra.mxu0 0
        %3131 = vmatprep.subr.bf16.mxu0 0
        %3132 = vmatpush1.bf16.msra.mxu0 0
        %3133 = vmatprep.subr.bf16.mxu0 0
        %3134 = vmatpush1.bf16.msra.mxu0 0
        %3135 = vmatprep.subr.bf16.mxu0 0
        %3136 = vmatpush1.bf16.msra.mxu0 0
        %3137 = vmatprep.subr.bf16.mxu0 0
        %3138 = vmatpush1.bf16.msra.mxu0 0
        %3139 = vmatprep.subr.bf16.mxu0 0
        %3140 = vmatpush1.bf16.msra.mxu0 0
        %3141 = vmatprep.subr.bf16.mxu0 0
        %3142 = vmatpush1.bf16.msra.mxu0 0
        %3143 = vmatprep.subr.bf16.mxu0 0
        %3144 = vmatpush1.bf16.msra.mxu0 0
        %3145 = vmatprep.subr.bf16.mxu0 0
        %3146 = vmatpush1.bf16.msra.mxu0 0
        %3147 = vmatprep.mubr.bf16.mxu0 0
        %3148 = vmatmul.mubr.bf16.gmra.mrb[0].mxu0 %v2394
        %v3149 = vpop.f32.mrb[0].mxu0
        %v3150 = vadd.f32 %v3101, %v3149
        %v3151 = vpop.f32.mrb[0].mxu0
        %v3152 = vpop.f32.mrb[0].mxu0
        %v3153 = vpop.f32.mrb[0].mxu0
        %3154 = vdwg.mxu0
        %v3155 = vpack.c.bf16 %v3150, %v3150
        %s3156 = scalar_lea.vmem %s14, 96
        %v3157 = vld [vmem:[%s3156] sm:$0xf]
        %v3158 = vld [vmem:[%s3156 + $0x4] sm:$0xf]
        %v3159 = vld [vmem:[%s3156 + $0x8] sm:$0xf]
        %v3160 = vld [vmem:[%s3156 + $0xc] sm:$0xf]
        %s3161 = scalar_lea.vmem %s15, 6
        %v3162 = vld [vmem:[%s3161] sm:$0x1]
        %v3164 = vlaneseq
        %v3165 = vshrl.u32 %v3164, 7
        %v3166 = vsub.s32 0, %v3165
        %v3167 = vrot.slane %v3162, %v3166
        %v3173 = vunpack.c.l.b16 %v3157
        %v3174 = vunpack.c.l.b16 %v3158
        %v3175 = vunpack.c.l.b16 %v3159
        %v3176 = vunpack.c.l.b16 %v3160
        %v3177 = vpack.c.b16 %v3174, %v3173
        %v3178 = vpack.c.b16 %v3176, %v3175
        %3181 = vmatprep.subr.bf16.mxu0 0
        %3182 = vmatpush1.bf16.msra.mxu0 %v3177
        %3183 = vmatprep.subr.bf16.mxu0 0
        %3184 = vmatpush1.bf16.msra.mxu0 %v3178
        %3185 = vmatprep.subr.bf16.mxu0 0
        %3186 = vmatpush1.bf16.msra.mxu0 0
        %3187 = vmatprep.subr.bf16.mxu0 0
        %3188 = vmatpush1.bf16.msra.mxu0 0
        %3189 = vmatprep.subr.bf16.mxu0 0
        %3190 = vmatpush1.bf16.msra.mxu0 0
        %3191 = vmatprep.subr.bf16.mxu0 0
        %3192 = vmatpush1.bf16.msra.mxu0 0
        %3193 = vmatprep.subr.bf16.mxu0 0
        %3194 = vmatpush1.bf16.msra.mxu0 0
        %3195 = vmatprep.subr.bf16.mxu0 0
        %3196 = vmatpush1.bf16.msra.mxu0 0
        %3197 = vmatprep.subr.bf16.mxu0 0
        %3198 = vmatpush1.bf16.msra.mxu0 0
        %3199 = vmatprep.subr.bf16.mxu0 0
        %3200 = vmatpush1.bf16.msra.mxu0 0
        %3201 = vmatprep.subr.bf16.mxu0 0
        %3202 = vmatpush1.bf16.msra.mxu0 0
        %3203 = vmatprep.subr.bf16.mxu0 0
        %3204 = vmatpush1.bf16.msra.mxu0 0
        %3205 = vmatprep.subr.bf16.mxu0 0
        %3206 = vmatpush1.bf16.msra.mxu0 0
        %3207 = vmatprep.subr.bf16.mxu0 0
        %3208 = vmatpush1.bf16.msra.mxu0 0
        %3209 = vmatprep.subr.bf16.mxu0 0
        %3210 = vmatpush1.bf16.msra.mxu0 0
        %3211 = vmatprep.subr.bf16.mxu0 0
        %3212 = vmatpush1.bf16.msra.mxu0 0
        %3213 = vmatprep.mubr.bf16.mxu0 0
        %3214 = vmatmul.mubr.bf16.gmra.mrb[0].mxu0 %v2394
        %v3215 = vpop.f32.mrb[0].mxu0
        %v3216 = vadd.f32 %v3167, %v3215
        %v3217 = vpop.f32.mrb[0].mxu0
        %v3218 = vpop.f32.mrb[0].mxu0
        %v3219 = vpop.f32.mrb[0].mxu0
        %3220 = vdwg.mxu0
        %v3221 = vpack.c.bf16 %v3216, %v3216
        %v3223 = vsel %vm1030, %v3089, 0
        %v3226 = vsel %vm1030, %v3155, 0
        %3228 = vmatprep.subr.bf16.mxu0 0
        %3229 = vmatpush1.bf16.xpose.msra.mxu0 %v3226
        %3230 = vmatprep.subr.bf16.mxu0 0
        %3231 = vmatpush1.bf16.xpose.msra.mxu0 0
        %3232 = vmatprep.subr.bf16.mxu0 0
        %3233 = vmatpush1.bf16.xpose.msra.mxu0 0
        %3234 = vmatprep.subr.bf16.mxu0 0
        %3235 = vmatpush1.bf16.xpose.msra.mxu0 0
        %3236 = vmatprep.subr.bf16.mxu0 0
        %3237 = vmatpush1.bf16.xpose.msra.mxu0 0
        %3238 = vmatprep.subr.bf16.mxu0 0
        %3239 = vmatpush1.bf16.xpose.msra.mxu0 0
        %3240 = vmatprep.subr.bf16.mxu0 0
        %3241 = vmatpush1.bf16.xpose.msra.mxu0 0
        %3242 = vmatprep.subr.bf16.mxu0 0
        %3243 = vmatpush1.bf16.xpose.msra.mxu0 0
        %3244 = vmatprep.subr.bf16.mxu0 0
        %3245 = vmatpush1.bf16.xpose.msra.mxu0 0
        %3246 = vmatprep.subr.bf16.mxu0 0
        %3247 = vmatpush1.bf16.xpose.msra.mxu0 0
        %3248 = vmatprep.subr.bf16.mxu0 0
        %3249 = vmatpush1.bf16.xpose.msra.mxu0 0
        %3250 = vmatprep.subr.bf16.mxu0 0
        %3251 = vmatpush1.bf16.xpose.msra.mxu0 0
        %3252 = vmatprep.subr.bf16.mxu0 0
        %3253 = vmatpush1.bf16.xpose.msra.mxu0 0
        %3254 = vmatprep.subr.bf16.mxu0 0
        %3255 = vmatpush1.bf16.xpose.msra.mxu0 0
        %3256 = vmatprep.subr.bf16.mxu0 0
        %3257 = vmatpush1.bf16.xpose.msra.mxu0 0
        %3258 = vmatprep.subr.bf16.mxu0 0
        %3259 = vmatpush1.bf16.xpose.msra.mxu0 0
        %3260 = vmatprep.mubr.bf16.mxu0 0
        %3261 = vmatmul.mubr.bf16.gmra.mrb[0].mxu0 %v3223
        %v3262 = vpop.f32.mrb[0].mxu0
        %v3263 = vadd.f32 %v2507, %v3262
        %v3264 = vpop.f32.mrb[0].mxu0
        %v3265 = vpop.f32.mrb[0].mxu0
        %v3266 = vpop.f32.mrb[0].mxu0
        %3267 = vdwg.mxu0
        %v3268 = vsel %vm1030, %v3263, -inf
        %3269 = vmax.xlane.f32.xlu0 %v3268
        %v3270 = vpop.xlane.xlu0 %3269
        %v3271 = vsub.f32 -inf, %v3270
        %v3272 = vmul.f32 %v3271, 1.442695
        %v3273 = vpow.pop %v3272
        %v3274 = vsub.f32 %v3263, %v3270
        %v3275 = vmul.f32 %v3274, 1.442695
        %v3276 = vpow.pop %v3275
        %v3277 = vmul.f32 %v3273, 0.0
        %v3278 = vsel %vm1030, %v3276, 0.0
        %3279 = vadd.xlane.f32.xlu0 %v3278
        %v3280 = vpop.xlane.xlu0 %3279
        %v3281 = vadd.f32 %v3277, %v3280
        %v3282 = vpack.c.bf16 %v3276, %v3276
        %v3284 = vsel %vm1030, %v3282, 0
        %v3287 = vsel %vm1095, %v3221, 0
        %3289 = vmatprep.subr.bf16.mxu0 0
        %3290 = vmatpush1.bf16.msra.mxu0 %v3287
        %3291 = vmatprep.subr.bf16.mxu0 0
        %3292 = vmatpush1.bf16.msra.mxu0 0
        %3293 = vmatprep.subr.bf16.mxu0 0
        %3294 = vmatpush1.bf16.msra.mxu0 0
        %3295 = vmatprep.subr.bf16.mxu0 0
        %3296 = vmatpush1.bf16.msra.mxu0 0
        %3297 = vmatprep.subr.bf16.mxu0 0
        %3298 = vmatpush1.bf16.msra.mxu0 0
        %3299 = vmatprep.subr.bf16.mxu0 0
        %3300 = vmatpush1.bf16.msra.mxu0 0
        %3301 = vmatprep.subr.bf16.mxu0 0
        %3302 = vmatpush1.bf16.msra.mxu0 0
        %3303 = vmatprep.subr.bf16.mxu0 0
        %3304 = vmatpush1.bf16.msra.mxu0 0
        %3305 = vmatprep.subr.bf16.mxu0 0
        %3306 = vmatpush1.bf16.msra.mxu0 0
        %3307 = vmatprep.subr.bf16.mxu0 0
        %3308 = vmatpush1.bf16.msra.mxu0 0
        %3309 = vmatprep.subr.bf16.mxu0 0
        %3310 = vmatpush1.bf16.msra.mxu0 0
        %3311 = vmatprep.subr.bf16.mxu0 0
        %3312 = vmatpush1.bf16.msra.mxu0 0
        %3313 = vmatprep.subr.bf16.mxu0 0
        %3314 = vmatpush1.bf16.msra.mxu0 0
        %3315 = vmatprep.subr.bf16.mxu0 0
        %3316 = vmatpush1.bf16.msra.mxu0 0
        %3317 = vmatprep.subr.bf16.mxu0 0
        %3318 = vmatpush1.bf16.msra.mxu0 0
        %3319 = vmatprep.subr.bf16.mxu0 0
        %3320 = vmatpush1.bf16.msra.mxu0 0
        %3321 = vmatprep.mubr.bf16.mxu0 0
        %3322 = vmatmul.mubr.bf16.gmra.mrb[0].mxu0 %v3284
        %v3323 = vpop.f32.mrb[0].mxu0
        %v3324 = vadd.f32 0.0, %v3323
        %v3325 = vpop.f32.mrb[0].mxu0
        %v3326 = vpop.f32.mrb[0].mxu0
        %v3327 = vpop.f32.mrb[0].mxu0
        %3328 = vdwg.mxu0
        %v3329 = vadd.f32 %v3277, %v3324
        %v3330 = vrcp.pop %v3281
        %v3331 = vmul.f32 %v3329, %v3330
        %v3332 = vpack.c.bf16 %v3331, %v3331
        %s3333 = scalar_lea.vmem %s16, 8
        %v3334 = vld [vmem:[%s3333] sm:$0xf]
        %v3336 = vsel %vm1030, %v3332, 0
        %v3339 = vsel %vm1095, %v3334, 0
        %3341 = vmatprep.subr.bf16.mxu0 0
        %3342 = vmatpush1.bf16.msra.mxu0 %v3339
        %3343 = vmatprep.subr.bf16.mxu0 0
        %3344 = vmatpush1.bf16.msra.mxu0 0
        %3345 = vmatprep.subr.bf16.mxu0 0
        %3346 = vmatpush1.bf16.msra.mxu0 0
        %3347 = vmatprep.subr.bf16.mxu0 0
        %3348 = vmatpush1.bf16.msra.mxu0 0
        %3349 = vmatprep.subr.bf16.mxu0 0
        %3350 = vmatpush1.bf16.msra.mxu0 0
        %3351 = vmatprep.subr.bf16.mxu0 0
        %3352 = vmatpush1.bf16.msra.mxu0 0
        %3353 = vmatprep.subr.bf16.mxu0 0
        %3354 = vmatpush1.bf16.msra.mxu0 0
        %3355 = vmatprep.subr.bf16.mxu0 0
        %3356 = vmatpush1.bf16.msra.mxu0 0
        %3357 = vmatprep.subr.bf16.mxu0 0
        %3358 = vmatpush1.bf16.msra.mxu0 0
        %3359 = vmatprep.subr.bf16.mxu0 0
        %3360 = vmatpush1.bf16.msra.mxu0 0
        %3361 = vmatprep.subr.bf16.mxu0 0
        %3362 = vmatpush1.bf16.msra.mxu0 0
        %3363 = vmatprep.subr.bf16.mxu0 0
        %3364 = vmatpush1.bf16.msra.mxu0 0
        %3365 = vmatprep.subr.bf16.mxu0 0
        %3366 = vmatpush1.bf16.msra.mxu0 0
        %3367 = vmatprep.subr.bf16.mxu0 0
        %3368 = vmatpush1.bf16.msra.mxu0 0
        %3369 = vmatprep.subr.bf16.mxu0 0
        %3370 = vmatpush1.bf16.msra.mxu0 0
        %3371 = vmatprep.subr.bf16.mxu0 0
        %3372 = vmatpush1.bf16.msra.mxu0 0
        %3373 = vmatprep.mubr.bf16.mxu0 0
        %3374 = vmatmul.mubr.bf16.gmra.mrb[0].mxu0 %v3336
        %v3375 = vpop.f32.mrb[0].mxu0
        %v3376 = vadd.f32 0.0, %v3375
        %v3377 = vpop.f32.mrb[0].mxu0
        %v3378 = vpop.f32.mrb[0].mxu0
        %v3379 = vpop.f32.mrb[0].mxu0
        %3380 = vdwg.mxu0
        %v3381 = vadd.f32 %v3019, %v3376
        %s3382 = scalar_lea.vmem %s12, 48
        %v3383 = vld [vmem:[%s3382] sm:$0xf]
        %v3384 = vld [vmem:[%s3382 + $0x4] sm:$0xf]
        %v3385 = vld [vmem:[%s3382 + $0x8] sm:$0xf]
        %v3386 = vld [vmem:[%s3382 + $0xc] sm:$0xf]
        %s3387 = scalar_lea.vmem %s13, 3
        %v3388 = vld [vmem:[%s3387] sm:$0x1]
        %v3390 = vlaneseq
        %v3391 = vshrl.u32 %v3390, 7
        %v3392 = vsub.s32 0, %v3391
        %v3393 = vrot.slane %v3388, %v3392
        %v3399 = vunpack.c.l.b16 %v3383
        %v3400 = vunpack.c.l.b16 %v3384
        %v3401 = vunpack.c.l.b16 %v3385
        %v3402 = vunpack.c.l.b16 %v3386
        %v3403 = vpack.c.b16 %v3400, %v3399
        %v3404 = vpack.c.b16 %v3402, %v3401
        %3407 = vmatprep.subr.bf16.mxu0 0
        %3408 = vmatpush1.bf16.msra.mxu0 %v3403
        %3409 = vmatprep.subr.bf16.mxu0 0
        %3410 = vmatpush1.bf16.msra.mxu0 %v3404
        %3411 = vmatprep.subr.bf16.mxu0 0
        %3412 = vmatpush1.bf16.msra.mxu0 0
        %3413 = vmatprep.subr.bf16.mxu0 0
        %3414 = vmatpush1.bf16.msra.mxu0 0
        %3415 = vmatprep.subr.bf16.mxu0 0
        %3416 = vmatpush1.bf16.msra.mxu0 0
        %3417 = vmatprep.subr.bf16.mxu0 0
        %3418 = vmatpush1.bf16.msra.mxu0 0
        %3419 = vmatprep.subr.bf16.mxu0 0
        %3420 = vmatpush1.bf16.msra.mxu0 0
        %3421 = vmatprep.subr.bf16.mxu0 0
        %3422 = vmatpush1.bf16.msra.mxu0 0
        %3423 = vmatprep.subr.bf16.mxu0 0
        %3424 = vmatpush1.bf16.msra.mxu0 0
        %3425 = vmatprep.subr.bf16.mxu0 0
        %3426 = vmatpush1.bf16.msra.mxu0 0
        %3427 = vmatprep.subr.bf16.mxu0 0
        %3428 = vmatpush1.bf16.msra.mxu0 0
        %3429 = vmatprep.subr.bf16.mxu0 0
        %3430 = vmatpush1.bf16.msra.mxu0 0
        %3431 = vmatprep.subr.bf16.mxu0 0
        %3432 = vmatpush1.bf16.msra.mxu0 0
        %3433 = vmatprep.subr.bf16.mxu0 0
        %3434 = vmatpush1.bf16.msra.mxu0 0
        %3435 = vmatprep.subr.bf16.mxu0 0
        %3436 = vmatpush1.bf16.msra.mxu0 0
        %3437 = vmatprep.subr.bf16.mxu0 0
        %3438 = vmatpush1.bf16.msra.mxu0 0
        %3439 = vmatprep.mubr.bf16.mxu0 0
        %3440 = vmatmul.mubr.bf16.gmra.mrb[0].mxu0 %v2327
        %v3441 = vpop.f32.mrb[0].mxu0
        %v3442 = vadd.f32 %v3393, %v3441
        %v3443 = vpop.f32.mrb[0].mxu0
        %v3444 = vpop.f32.mrb[0].mxu0
        %v3445 = vpop.f32.mrb[0].mxu0
        %3446 = vdwg.mxu0
        %v3447 = vpack.c.bf16 %v3442, %v3442
        %s3448 = scalar_lea.vmem %s14, 48
        %v3449 = vld [vmem:[%s3448] sm:$0xf]
        %v3450 = vld [vmem:[%s3448 + $0x4] sm:$0xf]
        %v3451 = vld [vmem:[%s3448 + $0x8] sm:$0xf]
        %v3452 = vld [vmem:[%s3448 + $0xc] sm:$0xf]
        %s3453 = scalar_lea.vmem %s15, 3
        %v3454 = vld [vmem:[%s3453] sm:$0x1]
        %v3456 = vlaneseq
        %v3457 = vshrl.u32 %v3456, 7
        %v3458 = vsub.s32 0, %v3457
        %v3459 = vrot.slane %v3454, %v3458
        %v3465 = vunpack.c.l.b16 %v3449
        %v3466 = vunpack.c.l.b16 %v3450
        %v3467 = vunpack.c.l.b16 %v3451
        %v3468 = vunpack.c.l.b16 %v3452
        %v3469 = vpack.c.b16 %v3466, %v3465
        %v3470 = vpack.c.b16 %v3468, %v3467
        %3473 = vmatprep.subr.bf16.mxu0 0
        %3474 = vmatpush1.bf16.msra.mxu0 %v3469
        %3475 = vmatprep.subr.bf16.mxu0 0
        %3476 = vmatpush1.bf16.msra.mxu0 %v3470
        %3477 = vmatprep.subr.bf16.mxu0 0
        %3478 = vmatpush1.bf16.msra.mxu0 0
        %3479 = vmatprep.subr.bf16.mxu0 0
        %3480 = vmatpush1.bf16.msra.mxu0 0
        %3481 = vmatprep.subr.bf16.mxu0 0
        %3482 = vmatpush1.bf16.msra.mxu0 0
        %3483 = vmatprep.subr.bf16.mxu0 0
        %3484 = vmatpush1.bf16.msra.mxu0 0
        %3485 = vmatprep.subr.bf16.mxu0 0
        %3486 = vmatpush1.bf16.msra.mxu0 0
        %3487 = vmatprep.subr.bf16.mxu0 0
        %3488 = vmatpush1.bf16.msra.mxu0 0
        %3489 = vmatprep.subr.bf16.mxu0 0
        %3490 = vmatpush1.bf16.msra.mxu0 0
        %3491 = vmatprep.subr.bf16.mxu0 0
        %3492 = vmatpush1.bf16.msra.mxu0 0
        %3493 = vmatprep.subr.bf16.mxu0 0
        %3494 = vmatpush1.bf16.msra.mxu0 0
        %3495 = vmatprep.subr.bf16.mxu0 0
        %3496 = vmatpush1.bf16.msra.mxu0 0
        %3497 = vmatprep.subr.bf16.mxu0 0
        %3498 = vmatpush1.bf16.msra.mxu0 0
        %3499 = vmatprep.subr.bf16.mxu0 0
        %3500 = vmatpush1.bf16.msra.mxu0 0
        %3501 = vmatprep.subr.bf16.mxu0 0
        %3502 = vmatpush1.bf16.msra.mxu0 0
        %3503 = vmatprep.subr.bf16.mxu0 0
        %3504 = vmatpush1.bf16.msra.mxu0 0
        %3505 = vmatprep.mubr.bf16.mxu0 0
        %3506 = vmatmul.mubr.bf16.gmra.mrb[0].mxu0 %v2394
        %v3507 = vpop.f32.mrb[0].mxu0
        %v3508 = vadd.f32 %v3459, %v3507
        %v3509 = vpop.f32.mrb[0].mxu0
        %v3510 = vpop.f32.mrb[0].mxu0
        %v3511 = vpop.f32.mrb[0].mxu0
        %3512 = vdwg.mxu0
        %v3513 = vpack.c.bf16 %v3508, %v3508
        %s3514 = scalar_lea.vmem %s14, 112
        %v3515 = vld [vmem:[%s3514] sm:$0xf]
        %v3516 = vld [vmem:[%s3514 + $0x4] sm:$0xf]
        %v3517 = vld [vmem:[%s3514 + $0x8] sm:$0xf]
        %v3518 = vld [vmem:[%s3514 + $0xc] sm:$0xf]
        %s3519 = scalar_lea.vmem %s15, 7
        %v3520 = vld [vmem:[%s3519] sm:$0x1]
        %v3522 = vlaneseq
        %v3523 = vshrl.u32 %v3522, 7
        %v3524 = vsub.s32 0, %v3523
        %v3525 = vrot.slane %v3520, %v3524
        %v3531 = vunpack.c.l.b16 %v3515
        %v3532 = vunpack.c.l.b16 %v3516
        %v3533 = vunpack.c.l.b16 %v3517
        %v3534 = vunpack.c.l.b16 %v3518
        %v3535 = vpack.c.b16 %v3532, %v3531
        %v3536 = vpack.c.b16 %v3534, %v3533
        %3539 = vmatprep.subr.bf16.mxu0 0
        %3540 = vmatpush1.bf16.msra.mxu0 %v3535
        %3541 = vmatprep.subr.bf16.mxu0 0
        %3542 = vmatpush1.bf16.msra.mxu0 %v3536
        %3543 = vmatprep.subr.bf16.mxu0 0
        %3544 = vmatpush1.bf16.msra.mxu0 0
        %3545 = vmatprep.subr.bf16.mxu0 0
        %3546 = vmatpush1.bf16.msra.mxu0 0
        %3547 = vmatprep.subr.bf16.mxu0 0
        %3548 = vmatpush1.bf16.msra.mxu0 0
        %3549 = vmatprep.subr.bf16.mxu0 0
        %3550 = vmatpush1.bf16.msra.mxu0 0
        %3551 = vmatprep.subr.bf16.mxu0 0
        %3552 = vmatpush1.bf16.msra.mxu0 0
        %3553 = vmatprep.subr.bf16.mxu0 0
        %3554 = vmatpush1.bf16.msra.mxu0 0
        %3555 = vmatprep.subr.bf16.mxu0 0
        %3556 = vmatpush1.bf16.msra.mxu0 0
        %3557 = vmatprep.subr.bf16.mxu0 0
        %3558 = vmatpush1.bf16.msra.mxu0 0
        %3559 = vmatprep.subr.bf16.mxu0 0
        %3560 = vmatpush1.bf16.msra.mxu0 0
        %3561 = vmatprep.subr.bf16.mxu0 0
        %3562 = vmatpush1.bf16.msra.mxu0 0
        %3563 = vmatprep.subr.bf16.mxu0 0
        %3564 = vmatpush1.bf16.msra.mxu0 0
        %3565 = vmatprep.subr.bf16.mxu0 0
        %3566 = vmatpush1.bf16.msra.mxu0 0
        %3567 = vmatprep.subr.bf16.mxu0 0
        %3568 = vmatpush1.bf16.msra.mxu0 0
        %3569 = vmatprep.subr.bf16.mxu0 0
        %3570 = vmatpush1.bf16.msra.mxu0 0
        %3571 = vmatprep.mubr.bf16.mxu0 0
        %3572 = vmatmul.mubr.bf16.gmra.mrb[0].mxu0 %v2394
        %v3573 = vpop.f32.mrb[0].mxu0
        %v3574 = vadd.f32 %v3525, %v3573
        %v3575 = vpop.f32.mrb[0].mxu0
        %v3576 = vpop.f32.mrb[0].mxu0
        %v3577 = vpop.f32.mrb[0].mxu0
        %3578 = vdwg.mxu0
        %v3579 = vpack.c.bf16 %v3574, %v3574
        %v3581 = vsel %vm1030, %v3447, 0
        %v3584 = vsel %vm1030, %v3513, 0
        %3586 = vmatprep.subr.bf16.mxu0 0
        %3587 = vmatpush1.bf16.xpose.msra.mxu0 %v3584
        %3588 = vmatprep.subr.bf16.mxu0 0
        %3589 = vmatpush1.bf16.xpose.msra.mxu0 0
        %3590 = vmatprep.subr.bf16.mxu0 0
        %3591 = vmatpush1.bf16.xpose.msra.mxu0 0
        %3592 = vmatprep.subr.bf16.mxu0 0
        %3593 = vmatpush1.bf16.xpose.msra.mxu0 0
        %3594 = vmatprep.subr.bf16.mxu0 0
        %3595 = vmatpush1.bf16.xpose.msra.mxu0 0
        %3596 = vmatprep.subr.bf16.mxu0 0
        %3597 = vmatpush1.bf16.xpose.msra.mxu0 0
        %3598 = vmatprep.subr.bf16.mxu0 0
        %3599 = vmatpush1.bf16.xpose.msra.mxu0 0
        %3600 = vmatprep.subr.bf16.mxu0 0
        %3601 = vmatpush1.bf16.xpose.msra.mxu0 0
        %3602 = vmatprep.subr.bf16.mxu0 0
        %3603 = vmatpush1.bf16.xpose.msra.mxu0 0
        %3604 = vmatprep.subr.bf16.mxu0 0
        %3605 = vmatpush1.bf16.xpose.msra.mxu0 0
        %3606 = vmatprep.subr.bf16.mxu0 0
        %3607 = vmatpush1.bf16.xpose.msra.mxu0 0
        %3608 = vmatprep.subr.bf16.mxu0 0
        %3609 = vmatpush1.bf16.xpose.msra.mxu0 0
        %3610 = vmatprep.subr.bf16.mxu0 0
        %3611 = vmatpush1.bf16.xpose.msra.mxu0 0
        %3612 = vmatprep.subr.bf16.mxu0 0
        %3613 = vmatpush1.bf16.xpose.msra.mxu0 0
        %3614 = vmatprep.subr.bf16.mxu0 0
        %3615 = vmatpush1.bf16.xpose.msra.mxu0 0
        %3616 = vmatprep.subr.bf16.mxu0 0
        %3617 = vmatpush1.bf16.xpose.msra.mxu0 0
        %3618 = vmatprep.mubr.bf16.mxu0 0
        %3619 = vmatmul.mubr.bf16.gmra.mrb[0].mxu0 %v3581
        %v3620 = vpop.f32.mrb[0].mxu0
        %v3621 = vadd.f32 %v2507, %v3620
        %v3622 = vpop.f32.mrb[0].mxu0
        %v3623 = vpop.f32.mrb[0].mxu0
        %v3624 = vpop.f32.mrb[0].mxu0
        %3625 = vdwg.mxu0
        %v3626 = vsel %vm1030, %v3621, -inf
        %3627 = vmax.xlane.f32.xlu0 %v3626
        %v3628 = vpop.xlane.xlu0 %3627
        %v3629 = vsub.f32 -inf, %v3628
        %v3630 = vmul.f32 %v3629, 1.442695
        %v3631 = vpow.pop %v3630
        %v3632 = vsub.f32 %v3621, %v3628
        %v3633 = vmul.f32 %v3632, 1.442695
        %v3634 = vpow.pop %v3633
        %v3635 = vmul.f32 %v3631, 0.0
        %v3636 = vsel %vm1030, %v3634, 0.0
        %3637 = vadd.xlane.f32.xlu0 %v3636
        %v3638 = vpop.xlane.xlu0 %3637
        %v3639 = vadd.f32 %v3635, %v3638
        %v3640 = vpack.c.bf16 %v3634, %v3634
        %v3642 = vsel %vm1030, %v3640, 0
        %v3645 = vsel %vm1095, %v3579, 0
        %3647 = vmatprep.subr.bf16.mxu0 0
        %3648 = vmatpush1.bf16.msra.mxu0 %v3645
        %3649 = vmatprep.subr.bf16.mxu0 0
        %3650 = vmatpush1.bf16.msra.mxu0 0
        %3651 = vmatprep.subr.bf16.mxu0 0
        %3652 = vmatpush1.bf16.msra.mxu0 0
        %3653 = vmatprep.subr.bf16.mxu0 0
        %3654 = vmatpush1.bf16.msra.mxu0 0
        %3655 = vmatprep.subr.bf16.mxu0 0
        %3656 = vmatpush1.bf16.msra.mxu0 0
        %3657 = vmatprep.subr.bf16.mxu0 0
        %3658 = vmatpush1.bf16.msra.mxu0 0
        %3659 = vmatprep.subr.bf16.mxu0 0
        %3660 = vmatpush1.bf16.msra.mxu0 0
        %3661 = vmatprep.subr.bf16.mxu0 0
        %3662 = vmatpush1.bf16.msra.mxu0 0
        %3663 = vmatprep.subr.bf16.mxu0 0
        %3664 = vmatpush1.bf16.msra.mxu0 0
        %3665 = vmatprep.subr.bf16.mxu0 0
        %3666 = vmatpush1.bf16.msra.mxu0 0
        %3667 = vmatprep.subr.bf16.mxu0 0
        %3668 = vmatpush1.bf16.msra.mxu0 0
        %3669 = vmatprep.subr.bf16.mxu0 0
        %3670 = vmatpush1.bf16.msra.mxu0 0
        %3671 = vmatprep.subr.bf16.mxu0 0
        %3672 = vmatpush1.bf16.msra.mxu0 0
        %3673 = vmatprep.subr.bf16.mxu0 0
        %3674 = vmatpush1.bf16.msra.mxu0 0
        %3675 = vmatprep.subr.bf16.mxu0 0
        %3676 = vmatpush1.bf16.msra.mxu0 0
        %3677 = vmatprep.subr.bf16.mxu0 0
        %3678 = vmatpush1.bf16.msra.mxu0 0
        %3679 = vmatprep.mubr.bf16.mxu0 0
        %3680 = vmatmul.mubr.bf16.gmra.mrb[0].mxu0 %v3642
        %v3681 = vpop.f32.mrb[0].mxu0
        %v3682 = vadd.f32 0.0, %v3681
        %v3683 = vpop.f32.mrb[0].mxu0
        %v3684 = vpop.f32.mrb[0].mxu0
        %v3685 = vpop.f32.mrb[0].mxu0
        %3686 = vdwg.mxu0
        %v3687 = vadd.f32 %v3635, %v3682
        %v3688 = vrcp.pop %v3639
        %v3689 = vmul.f32 %v3687, %v3688
        %v3690 = vpack.c.bf16 %v3689, %v3689
        %s3691 = scalar_lea.vmem %s16, 12
        %v3692 = vld [vmem:[%s3691] sm:$0xf]
        %v3694 = vsel %vm1030, %v3690, 0
        %v3697 = vsel %vm1095, %v3692, 0
        %3699 = vmatprep.subr.bf16.mxu0 0
        %3700 = vmatpush1.bf16.msra.mxu0 %v3697
        %3701 = vmatprep.subr.bf16.mxu0 0
        %3702 = vmatpush1.bf16.msra.mxu0 0
        %3703 = vmatprep.subr.bf16.mxu0 0
        %3704 = vmatpush1.bf16.msra.mxu0 0
        %3705 = vmatprep.subr.bf16.mxu0 0
        %3706 = vmatpush1.bf16.msra.mxu0 0
        %3707 = vmatprep.subr.bf16.mxu0 0
        %3708 = vmatpush1.bf16.msra.mxu0 0
        %3709 = vmatprep.subr.bf16.mxu0 0
        %3710 = vmatpush1.bf16.msra.mxu0 0
        %3711 = vmatprep.subr.bf16.mxu0 0
        %3712 = vmatpush1.bf16.msra.mxu0 0
        %3713 = vmatprep.subr.bf16.mxu0 0
        %3714 = vmatpush1.bf16.msra.mxu0 0
        %3715 = vmatprep.subr.bf16.mxu0 0
        %3716 = vmatpush1.bf16.msra.mxu0 0
        %3717 = vmatprep.subr.bf16.mxu0 0
        %3718 = vmatpush1.bf16.msra.mxu0 0
        %3719 = vmatprep.subr.bf16.mxu0 0
        %3720 = vmatpush1.bf16.msra.mxu0 0
        %3721 = vmatprep.subr.bf16.mxu0 0
        %3722 = vmatpush1.bf16.msra.mxu0 0
        %3723 = vmatprep.subr.bf16.mxu0 0
        %3724 = vmatpush1.bf16.msra.mxu0 0
        %3725 = vmatprep.subr.bf16.mxu0 0
        %3726 = vmatpush1.bf16.msra.mxu0 0
        %3727 = vmatprep.subr.bf16.mxu0 0
        %3728 = vmatpush1.bf16.msra.mxu0 0
        %3729 = vmatprep.subr.bf16.mxu0 0
        %3730 = vmatpush1.bf16.msra.mxu0 0
        %3731 = vmatprep.mubr.bf16.mxu0 0
        %3732 = vmatmul.mubr.bf16.gmra.mrb[0].mxu0 %v3694
        %v3733 = vpop.f32.mrb[0].mxu0
        %v3734 = vadd.f32 0.0, %v3733
        %v3735 = vpop.f32.mrb[0].mxu0
        %v3736 = vpop.f32.mrb[0].mxu0
        %v3737 = vpop.f32.mrb[0].mxu0
        %3738 = vdwg.mxu0
        %v3739 = vadd.f32 %v3381, %v3734
        %v3740 = vadd.f32 %v2271, %v3739
        %v3741 = vld [vmem:[%s17] sm:$0x1]
        %v3743 = vlaneseq
        %v3744 = vshrl.u32 %v3743, 7
        %v3745 = vsub.s32 0, %v3744
        %v3746 = vrot.slane %v3741, %v3745
        %v3748 = vadd.f32 %v3740, %v3746
        %v3749 = vld [vmem:[%s18] sm:$0x1]
        %v3750 = vld [vmem:[%s19] sm:$0x1]
        %v3751 = vsel %vm801, %v3748, 0.0
        %3752 = vadd.xlane.f32.xlu0 %v3751
        %v3753 = vpop.xlane.xlu0 %3752
        %v3754 = vmul.f32 %v3753, %v805
        %v3755 = vsub.f32 %v3748, %v3754
        %v3756 = vmul.f32 %v3755, %v3755
        %v3757 = vsel %vm801, %v3756, 0.0
        %3758 = vadd.xlane.f32.xlu0 %v3757
        %v3759 = vpop.xlane.xlu0 %3758
        %v3760 = vmul.f32 %v3759, %v805
        %v3761 = vadd.f32 %v3760, 1e-05
        %v3762 = vrsqrt.pop %v3761
        %v3763 = vmul.f32 %v3755, %v3762
        %v3765 = vlaneseq
        %v3766 = vshrl.u32 %v3765, 7
        %v3767 = vsub.s32 0, %v3766
        %v3768 = vrot.slane %v3749, %v3767
        %v3770 = vmul.f32 %v3763, %v3768
        %v3772 = vlaneseq
        %v3773 = vshrl.u32 %v3772, 7
        %v3774 = vsub.s32 0, %v3773
        %v3775 = vrot.slane %v3750, %v3774
        %v3777 = vadd.f32 %v3770, %v3775
        %v3778 = vpack.c.bf16 %v3777, %v3777
        %v3779 = vld [vmem:[%s20] sm:$0xf]
        %v3780 = vld [vmem:[%s20 + $0x4] sm:$0xf]
        %v3781 = vld [vmem:[%s20 + $0x8] sm:$0xf]
        %v3782 = vld [vmem:[%s20 + $0xc] sm:$0xf]
        %v3783 = vld [vmem:[%s21] sm:$0x1]
        %v3785 = vlaneseq
        %v3786 = vshrl.u32 %v3785, 7
        %v3787 = vsub.s32 0, %v3786
        %v3788 = vrot.slane %v3783, %v3787
        %v3794 = vunpack.c.l.b16 %v3779
        %v3795 = vunpack.c.l.b16 %v3780
        %v3796 = vunpack.c.l.b16 %v3781
        %v3797 = vunpack.c.l.b16 %v3782
        %v3798 = vpack.c.b16 %v3795, %v3794
        %v3799 = vpack.c.b16 %v3797, %v3796
        %v3803 = vsel %vm801, %v3778, 0
        %3805 = vmatprep.subr.bf16.mxu0 0
        %3806 = vmatpush1.bf16.msra.mxu0 %v3798
        %3807 = vmatprep.subr.bf16.mxu0 0
        %3808 = vmatpush1.bf16.msra.mxu0 %v3799
        %3809 = vmatprep.subr.bf16.mxu0 0
        %3810 = vmatpush1.bf16.msra.mxu0 0
        %3811 = vmatprep.subr.bf16.mxu0 0
        %3812 = vmatpush1.bf16.msra.mxu0 0
        %3813 = vmatprep.subr.bf16.mxu0 0
        %3814 = vmatpush1.bf16.msra.mxu0 0
        %3815 = vmatprep.subr.bf16.mxu0 0
        %3816 = vmatpush1.bf16.msra.mxu0 0
        %3817 = vmatprep.subr.bf16.mxu0 0
        %3818 = vmatpush1.bf16.msra.mxu0 0
        %3819 = vmatprep.subr.bf16.mxu0 0
        %3820 = vmatpush1.bf16.msra.mxu0 0
        %3821 = vmatprep.subr.bf16.mxu0 0
        %3822 = vmatpush1.bf16.msra.mxu0 0
        %3823 = vmatprep.subr.bf16.mxu0 0
        %3824 = vmatpush1.bf16.msra.mxu0 0
        %3825 = vmatprep.subr.bf16.mxu0 0
        %3826 = vmatpush1.bf16.msra.mxu0 0
        %3827 = vmatprep.subr.bf16.mxu0 0
        %3828 = vmatpush1.bf16.msra.mxu0 0
        %3829 = vmatprep.subr.bf16.mxu0 0
        %3830 = vmatpush1.bf16.msra.mxu0 0
        %3831 = vmatprep.subr.bf16.mxu0 0
        %3832 = vmatpush1.bf16.msra.mxu0 0
        %3833 = vmatprep.subr.bf16.mxu0 0
        %3834 = vmatpush1.bf16.msra.mxu0 0
        %3835 = vmatprep.subr.bf16.mxu0 0
        %3836 = vmatpush1.bf16.msra.mxu0 0
        %3837 = vmatprep.mubr.bf16.mxu0 0
        %3838 = vmatmul.mubr.bf16.gmra.mrb[0].mxu0 %v3803
        %v3839 = vpop.f32.mrb[0].mxu0
        %v3840 = vadd.f32 %v3788, %v3839
        %v3841 = vpop.f32.mrb[0].mxu0
        %v3842 = vpop.f32.mrb[0].mxu0
        %v3843 = vpop.f32.mrb[0].mxu0
        %3844 = vdwg.mxu0
        %v3845 = vmax.f32 %v3840, 0.0
        %v3846 = vpack.c.bf16 %v3845, %v3845
        %v3847 = vld [vmem:[%s22] sm:$0xf]
        %v3848 = vld [vmem:[%s22 + $0x4] sm:$0xf]
        %v3849 = vld [vmem:[%s22 + $0x8] sm:$0xf]
        %v3850 = vld [vmem:[%s22 + $0xc] sm:$0xf]
        %v3851 = vld [vmem:[%s22 + $0x10] sm:$0xf]
        %v3852 = vld [vmem:[%s22 + $0x14] sm:$0xf]
        %v3853 = vld [vmem:[%s22 + $0x18] sm:$0xf]
        %v3854 = vld [vmem:[%s22 + $0x1c] sm:$0xf]
        %v3855 = vld [vmem:[%s23] sm:$0x1]
        %v3857 = vlaneseq
        %v3858 = vshrl.u32 %v3857, 7
        %v3859 = vsub.s32 0, %v3858
        %v3860 = vrot.slane %v3855, %v3859
        %v3870 = vunpack.c.l.b16 %v3847
        %v3871 = vunpack.c.l.b16 %v3848
        %v3872 = vunpack.c.l.b16 %v3849
        %v3873 = vunpack.c.l.b16 %v3850
        %v3874 = vunpack.c.l.b16 %v3851
        %v3875 = vunpack.c.l.b16 %v3852
        %v3876 = vunpack.c.l.b16 %v3853
        %v3877 = vunpack.c.l.b16 %v3854
        %v3878 = vpack.c.b16 %v3871, %v3870
        %v3879 = vpack.c.b16 %v3873, %v3872
        %v3880 = vpack.c.b16 %v3875, %v3874
        %v3881 = vpack.c.b16 %v3877, %v3876
        %vm3886 = vcmask 523264
        %v3888 = vsel %vm3886, %v3846, 0
        %3890 = vmatprep.subr.bf16.mxu0 0
        %3891 = vmatpush1.bf16.msra.mxu0 %v3878
        %3892 = vmatprep.subr.bf16.mxu0 0
        %3893 = vmatpush1.bf16.msra.mxu0 %v3879
        %3894 = vmatprep.subr.bf16.mxu0 0
        %3895 = vmatpush1.bf16.msra.mxu0 %v3880
        %3896 = vmatprep.subr.bf16.mxu0 0
        %3897 = vmatpush1.bf16.msra.mxu0 %v3881
        %3898 = vmatprep.subr.bf16.mxu0 0
        %3899 = vmatpush1.bf16.msra.mxu0 0
        %3900 = vmatprep.subr.bf16.mxu0 0
        %3901 = vmatpush1.bf16.msra.mxu0 0
        %3902 = vmatprep.subr.bf16.mxu0 0
        %3903 = vmatpush1.bf16.msra.mxu0 0
        %3904 = vmatprep.subr.bf16.mxu0 0
        %3905 = vmatpush1.bf16.msra.mxu0 0
        %3906 = vmatprep.subr.bf16.mxu0 0
        %3907 = vmatpush1.bf16.msra.mxu0 0
        %3908 = vmatprep.subr.bf16.mxu0 0
        %3909 = vmatpush1.bf16.msra.mxu0 0
        %3910 = vmatprep.subr.bf16.mxu0 0
        %3911 = vmatpush1.bf16.msra.mxu0 0
        %3912 = vmatprep.subr.bf16.mxu0 0
        %3913 = vmatpush1.bf16.msra.mxu0 0
        %3914 = vmatprep.subr.bf16.mxu0 0
        %3915 = vmatpush1.bf16.msra.mxu0 0
        %3916 = vmatprep.subr.bf16.mxu0 0
        %3917 = vmatpush1.bf16.msra.mxu0 0
        %3918 = vmatprep.subr.bf16.mxu0 0
        %3919 = vmatpush1.bf16.msra.mxu0 0
        %3920 = vmatprep.subr.bf16.mxu0 0
        %3921 = vmatpush1.bf16.msra.mxu0 0
        %3922 = vmatprep.mubr.bf16.mxu0 0
        %3923 = vmatmul.mubr.bf16.gmra.mrb[0].mxu0 %v3888
        %v3924 = vpop.f32.mrb[0].mxu0
        %v3925 = vadd.f32 %v3860, %v3924
        %v3926 = vpop.f32.mrb[0].mxu0
        %v3927 = vpop.f32.mrb[0].mxu0
        %v3928 = vpop.f32.mrb[0].mxu0
        %3929 = vdwg.mxu0
        %v3930 = vadd.f32 %v3748, %v3925
        %3931 = vst.msk [vmem:[%s763] sm:$0xff] %vm801, %v3930
        %s3932 = sand.u32 %s570, 1
        %s3933 = scalar_lea.sflag [#allocation3], %s3932
        %s3934 = sand.u32 %s570, 1
        %s3935 = smul.addr %s3934, 8
        %s3936 = scalar_lea.vmem [#allocation2], %s3935
        // Predicated region
        $region117: #{tpu_custom_call.1} parent=115 // pred_check
          %p3937 = pneg %p580
        $region118: #{tpu_custom_call.1} parent=115 // pred_check_branch
          %3939 = sbr.rel (%p3937) target = $region120
        $region119: #{tpu_custom_call.1} parent=115 // pred_region
          %s3941 = ssub.s32 128, 128
          %3942 = vsyncadd %s3933, %s3941
          %s3943 = smul.addr %s38, 128
          %s3944 = scalar_lea.hbm %s24, %s3943
          %s3946 = sshll.u32 %s3936, 4
          %s3947 = int_to_ptr.vmem [resolvable:$true] %s3946
          %3949 = dma.vmem_to_hbm [thread:$0]  %s3947, 128, %s3944, %s3933
        $region120: #{tpu_custom_call.1} parent=115 // pred_fallthru
          _
      $region116: #{tpu_custom_call.1} parent=5 // pred_fallthru
        _
      %p3950 = scmp.le.s32.totalorder 2, %s33
      // Predicated region
      $region121: #{tpu_custom_call.1} parent=5 // pred_check
        %p3951 = pneg %p3950
      $region122: #{tpu_custom_call.1} parent=5 // pred_check_branch
        %3953 = sbr.rel (%p3951) target = $region124
      $region123: #{tpu_custom_call.1} parent=5 // pred_region
        %s3954 = ssub.s32 %s33, 2
        // Predicated region
        $region125: #{tpu_custom_call.1} parent=123 // pred_check
          %p3955 = pneg %p586
        $region126: #{tpu_custom_call.1} parent=123 // pred_check_branch
          %3957 = sbr.rel (%p3955) target = $region128
        $region127: #{tpu_custom_call.1} parent=123 // pred_region
          %s3958 = sand.u32 %s571, 1
          %s3959 = scalar_lea.sflag [#allocation3], %s3958
          %s3960 = sand.u32 %s571, 1
          %s3961 = smul.addr %s3960, 8
          %s3962 = scalar_lea.vmem [#allocation2], %s3961
          %3963 = dma.done %s3959, 128
        $region128: #{tpu_custom_call.1} parent=123 // pred_fallthru
          _
      $region124: #{tpu_custom_call.1} parent=5 // pred_fallthru
        _
    $region6: #{tpu_custom_call.1} parent=1 // loop_footer
      %s37 = sadd.s32 1, %s33
    $region7: #{tpu_custom_call.1} parent=1 // loop_footer_branch
      %32 = sbr.rel target = $region3
    $region8: #{tpu_custom_call.1} parent=1 // loop_exit
      _
    %3964 = vsyncpa [#allocation3], 1
    %s3965 = scalar_lea.sflag [#allocation3], 1
    %3966 = vsyncpa %s3965, 1

</llo_original>
